<compile_context>
chip_gen: v7x
topology: tpu7x:2x2x1
jax: 0.10.0
libtpu: 0.0.40
codegen_flags: <defaults>
</compile_context>

<pallas_src>
import math

import jax
import jax.numpy as jnp
from jax.experimental import pallas as pl
from jax.experimental.pallas import tpu as pltpu

# ---------------- configuration (small shapes consistent with the module) ----------------
CAT_COLS = ["course", "weather", "jockey"]
CAT_UNIQUE = {"course": 10, "weather": 6, "jockey": 20}
# emb_dim_real = max(min(16, unique//2 + 1), 4)
EMB_DIMS = {c: max(min(16, CAT_UNIQUE[c] // 2 + 1), 4) for c in CAT_COLS}   # 6, 4, 11
CAT_OUT_DIM = sum(EMB_DIMS.values())                                         # 21

NUM_DIM = 12          # numeric feature width (module default 50; small here)
D_MODEL = 32
NHEAD = 4
HEAD_DIM = D_MODEL // NHEAD
NUM_LAYERS = 2
DIM_FF = 2048         # nn.TransformerEncoderLayer default dim_feedforward
FF_CHUNK = 256        # FFN column-chunk width (8 chunks; caps live activations per chunk)
OUT_DIM = 7           # fc_out: Linear(d_model, 7)
OUT_PAD = 128         # lane-dense padded output width (sliced to OUT_DIM outside)
SEQ = 8
BATCH = 2
ROWS = BATCH * SEQ    # fused batch*seq rows (single row tile at these toy shapes)
HROWS = NHEAD * ROWS  # head-stacked query rows
EPS = 1e-5            # nn.LayerNorm default eps
NEG_BIG = -1e30       # additive key_padding_mask value
SCALE = 1.0 / math.sqrt(HEAD_DIM)


def _layernorm(x, w, b):
    mu = jnp.mean(x, axis=-1, keepdims=True)
    var = jnp.mean((x - mu) ** 2, axis=-1, keepdims=True)
    return (x - mu) * jax.lax.rsqrt(var + EPS) * w + b


# ------------------------------------ Pallas kernel --------------------------------------
def horse_transformer_kernel(
    emb_add_ref,      # (ROWS, D_MODEL)   fused cat-emb + PE + fused bias     [layer-invariant]
    num_x_ref,        # (ROWS, NUM_DIM)   raw numeric features                [layer-invariant]
    head_sel_ref,     # (HROWS, D_MODEL)  0/1 head-column selector            [layer-invariant]
    attn_mask_ref,    # (HROWS, ROWS)     additive block-diag + padding mask  [layer-invariant]
    num_w_ref,        # (NUM_DIM, D_MODEL) num_linear folded into out_linear  [layer-invariant]
    in_proj_w_ref,    # (1, D_MODEL, 3*D_MODEL)   per-layer slice (grid axis 0)
    in_proj_b_ref,    # (1, 1, 3*D_MODEL)
    out_proj_w_ref,   # (1, D_MODEL, D_MODEL)
    out_proj_b_ref,   # (1, 1, D_MODEL)
    ln1_w_ref, ln1_b_ref,   # (1, 1, D_MODEL)
    ln2_w_ref, ln2_b_ref,   # (1, 1, D_MODEL)
    ff1_w_ref,        # (1, D_MODEL, DIM_FF)   bfloat16
    ff1_b_ref,        # (1, 1, DIM_FF)         float32
    ff2_wt_ref,       # (1, D_MODEL, DIM_FF)   bfloat16 (ff2 pre-transposed, lane-dense)
    ff2_b_ref,        # (1, 1, D_MODEL)        float32
    fc_w_ref,         # (D_MODEL, OUT_PAD)                                    [layer-invariant]
    fc_b_ref,         # (1, OUT_PAD)                                          [layer-invariant]
    out_ref,          # (ROWS, OUT_PAD)
    h_ref,            # VMEM scratch (ROWS, D_MODEL): hidden state carried across layers
):
    layer = pl.program_id(0)

    # ---- layer 0: FeatureEmbedder (algebraically pre-fused) + PositionalEncoding ----
    @pl.when(layer == 0)
    def _():
        h_ref[...] = emb_add_ref[...] + jnp.dot(
            num_x_ref[...], num_w_ref[...], preferred_element_type=jnp.float32)

    h = h_ref[...]                                                   # (ROWS, D_MODEL)

    # ---- self-attention: all heads & batches handled by single 2-D matmuls ----
    qkv = jnp.dot(h, in_proj_w_ref[0],
                  preferred_element_type=jnp.float32) + in_proj_b_ref[0]   # (ROWS, 3D)
    q = qkv[:, :D_MODEL] * SCALE
    k = qkv[:, D_MODEL:2 * D_MODEL]
    v = qkv[:, 2 * D_MODEL:]

    sel = head_sel_ref[...]                                          # (HROWS, D_MODEL)
    # stack NHEAD head-selected copies of Q along rows: row (h*ROWS + r) keeps only
    # head h's columns, so one (HROWS, D) x (D, ROWS)^T matmul gives per-head scores.
    q_wide = jnp.concatenate([q] * NHEAD, axis=0) * sel              # (HROWS, D_MODEL)
    s = jax.lax.dot_general(q_wide, k, (((1,), (1,)), ((), ())),
                            preferred_element_type=jnp.float32)      # (HROWS, ROWS)
    s = s + attn_mask_ref[...]                                       # batch block-diag + pad
    s = s - jnp.max(s, axis=-1, keepdims=True)
    e = jnp.exp(s)
    p = e * pl.reciprocal(jnp.sum(e, axis=-1, keepdims=True), approx=True)
    ctx = jnp.dot(p, v, preferred_element_type=jnp.float32)          # (HROWS, D_MODEL)
    ctx = ctx * sel                                                  # keep head h's columns only
    # sum the NHEAD row blocks -> concatenated multi-head context (no lane concat needed)
    ctx_cat = ctx[0:ROWS]
    for hd in range(1, NHEAD):
        ctx_cat = ctx_cat + ctx[hd * ROWS:(hd + 1) * ROWS]           # (ROWS, D_MODEL)
    attn_out = jnp.dot(ctx_cat, out_proj_w_ref[0],
                       preferred_element_type=jnp.float32) + out_proj_b_ref[0]
    h = _layernorm(h + attn_out, ln1_w_ref[0], ln1_b_ref[0])

    # ---- feed-forward, chunked over the 2048-wide hidden dim (bf16 dots, f32 accum) ----
    h_bf16 = h.astype(jnp.bfloat16)

    def ff_chunk(c, acc):
        start = pl.multiple_of(c * FF_CHUNK, FF_CHUNK)
        w1c = ff1_w_ref[0, :, pl.ds(start, FF_CHUNK)]                # (D_MODEL, FF_CHUNK) bf16
        b1c = ff1_b_ref[0, :, pl.ds(start, FF_CHUNK)]                # (1, FF_CHUNK) f32
        a = jnp.dot(h_bf16, w1c, preferred_element_type=jnp.float32) + b1c
        a = jnp.maximum(a, 0.0).astype(jnp.bfloat16)                 # (ROWS, FF_CHUNK)
        w2c = ff2_wt_ref[0, :, pl.ds(start, FF_CHUNK)]               # (D_MODEL, FF_CHUNK) bf16
        return acc + jax.lax.dot_general(a, w2c, (((1,), (1,)), ((), ())),
                                         preferred_element_type=jnp.float32)

    ff = jax.lax.fori_loop(0, DIM_FF // FF_CHUNK, ff_chunk,
                           jnp.zeros((ROWS, D_MODEL), jnp.float32), unroll=True)
    ff = ff + ff2_b_ref[0]
    h = _layernorm(h + ff, ln2_w_ref[0], ln2_b_ref[0])
    h_ref[...] = h

    # ---- last layer: fc_out (lane-dense padded width, sliced to OUT_DIM in wrapper) ----
    @pl.when(layer == NUM_LAYERS - 1)
    def _():
        out_ref[...] = jnp.dot(h, fc_w_ref[...],
                               preferred_element_type=jnp.float32) + fc_b_ref[...]


# ------------------------------------ wrapper ---------------------------------------------
def prepare_kernel_params(p):
    """Algebraic fusion + layout packaging of the reference parameters for the kernel."""
    kp = {}
    # Pre-multiply each categorical embedding table by its slice of out_linear weight.
    offs = [0]
    for c in CAT_COLS:
        offs.append(offs[-1] + EMB_DIMS[c])
    kp["emb_fused"] = [p["emb"][i] @ p["out_w_cat"][offs[i]:offs[i + 1]]
                       for i in range(len(CAT_COLS))]
    # Fold num_linear through out_linear.
    kp["num_w_fused"] = p["num_w"] @ p["out_w_num"]                     # (NUM_DIM, D_MODEL)
    kp["bias_fused"] = p["num_b"] @ p["out_w_num"] + p["out_b"]         # (1, D_MODEL)
    kp["pe"] = p["pe"]                                                  # (S, D_MODEL)

    L = NUM_LAYERS
    kp["in_proj_w"] = p["in_proj_w"]
    kp["in_proj_b"] = p["in_proj_b"].reshape(L, 1, 3 * D_MODEL)
    kp["out_proj_w"] = p["out_proj_w"]
    kp["out_proj_b"] = p["out_proj_b"].reshape(L, 1, D_MODEL)
    kp["ln1_w"] = p["ln1_w"].reshape(L, 1, D_MODEL)
    kp["ln1_b"] = p["ln1_b"].reshape(L, 1, D_MODEL)
    kp["ln2_w"] = p["ln2_w"].reshape(L, 1, D_MODEL)
    kp["ln2_b"] = p["ln2_b"].reshape(L, 1, D_MODEL)
    # bf16 FF weights; ff2 pre-transposed to (L, D_MODEL, DIM_FF) = lane-dense bf16
    kp["ff1_w"] = p["ff1_w"].astype(jnp.bfloat16)
    kp["ff1_b"] = p["ff1_b"].reshape(L, 1, DIM_FF)
    kp["ff2_w_t"] = jnp.swapaxes(p["ff2_w"], 1, 2).astype(jnp.bfloat16)
    kp["ff2_b"] = p["ff2_b"].reshape(L, 1, D_MODEL)
    # lane-dense padded fc_out
    kp["fc_w"] = jnp.zeros((D_MODEL, OUT_PAD), jnp.float32).at[:, :OUT_DIM].set(p["fc_w"])
    kp["fc_b"] = jnp.zeros((1, OUT_PAD), jnp.float32).at[:, :OUT_DIM].set(p["fc_b"])
    # 0/1 selector: stacked row (h*ROWS + r) keeps only head h's D_MODEL columns
    head_sel = (jnp.arange(D_MODEL)[None, :] // HEAD_DIM
                == jnp.arange(NHEAD)[:, None]).astype(jnp.float32)      # (NHEAD, D_MODEL)
    kp["head_sel"] = jnp.repeat(head_sel, ROWS, axis=0)                 # (HROWS, D_MODEL)
    return kp


def horse_transformer_pallas(kp, src, src_key_padding_mask):
    """src: (B, S, len(CAT_COLS)+NUM_DIM) float32; mask: (B, S) bool (True = padding)."""
    B, S, _ = src.shape
    cat_idx = src[..., :len(CAT_COLS)].astype(jnp.int32)
    num_x = src[..., len(CAT_COLS):].astype(jnp.float32)

    # categorical gather on pre-fused (D_MODEL-wide) tables, summed over columns
    cat_contrib = sum(jnp.take(kp["emb_fused"][i], cat_idx[..., i], axis=0)
                      for i in range(len(CAT_COLS)))                   # (B, S, D_MODEL)
    emb_add = (cat_contrib + kp["pe"][None, :S] + kp["bias_fused"]).reshape(B * S, D_MODEL)
    num_flat = num_x.reshape(B * S, NUM_DIM)

    # Additive attention mask over the head-stacked query rows x all B*S key rows:
    # a key is visible only if it belongs to the same batch element and is not padded.
    row_batch = jnp.repeat(jnp.arange(B), S)                           # (ROWS,)
    key_valid = jnp.logical_not(src_key_padding_mask.reshape(B * S))   # (ROWS,)
    allowed = (row_batch[:, None] == row_batch[None, :]) & key_valid[None, :]
    mask2d = jnp.where(allowed, 0.0, NEG_BIG).astype(jnp.float32)      # (ROWS, ROWS)
    attn_mask = jnp.tile(mask2d, (NHEAD, 1))                           # (HROWS, ROWS)

    inputs = [
        emb_add, num_flat, kp["head_sel"], attn_mask, kp["num_w_fused"],
        kp["in_proj_w"], kp["in_proj_b"], kp["out_proj_w"], kp["out_proj_b"],
        kp["ln1_w"], kp["ln1_b"], kp["ln2_w"], kp["ln2_b"],
        kp["ff1_w"], kp["ff1_b"], kp["ff2_w_t"], kp["ff2_b"],
        kp["fc_w"], kp["fc_b"],
    ]

    def inv_spec(a):   # layer-invariant 2-D operand: resident across the layer grid
        return pl.BlockSpec(a.shape, lambda l: (0, 0))

    def lyr_spec(a):   # per-layer 3-D operand: double-buffered across the layer grid
        return pl.BlockSpec((1,) + a.shape[1:], lambda l: (l, 0, 0))

    in_specs = ([inv_spec(a) for a in inputs[:5]]
                + [lyr_spec(a) for a in inputs[5:17]]
                + [inv_spec(a) for a in inputs[17:]])

    out = pl.pallas_call(
        horse_transformer_kernel,
        out_shape=jax.ShapeDtypeStruct((B * S, OUT_PAD), jnp.float32),
        grid_spec=pltpu.PrefetchScalarGridSpec(
            num_scalar_prefetch=0,
            grid=(NUM_LAYERS,),            # layer grid: weight DMA overlaps layer compute
            in_specs=in_specs,
            out_specs=pl.BlockSpec((B * S, OUT_PAD), lambda l: (0, 0)),
            scratch_shapes=[pltpu.VMEM((B * S, D_MODEL), jnp.float32)],
        ),
        compiler_params=pltpu.CompilerParams(dimension_semantics=("arbitrary",)),
    )(*inputs)
    return out[:, :OUT_DIM].reshape(B, S, OUT_DIM)


# ------------------------------ deterministic parameter init ------------------------------
def make_positional_encoding(d_model, max_len):
    position = jnp.arange(max_len, dtype=jnp.float32)[:, None]
    div_term = jnp.exp(jnp.arange(0, d_model, 2, dtype=jnp.float32)
                       * (-math.log(10000.0) / d_model))
    pe = jnp.zeros((max_len, d_model), jnp.float32)
    pe = pe.at[:, 0::2].set(jnp.sin(position * div_term))
    pe = pe.at[:, 1::2].set(jnp.cos(position * div_term))   # d_model is even
    return pe


def init_params(key):
    s = 0.05
    keys = iter(jax.random.split(key, 64))

    def rnd(shape):
        return jax.random.normal(next(keys), shape, jnp.float32) * s

    p = {}
    p["emb"] = [rnd((CAT_UNIQUE[c], EMB_DIMS[c])) for c in CAT_COLS]
    p["num_w"] = rnd((NUM_DIM, NUM_DIM))
    p["num_b"] = rnd((1, NUM_DIM))
    p["out_w_cat"] = rnd((CAT_OUT_DIM, D_MODEL))
    p["out_w_num"] = rnd((NUM_DIM, D_MODEL))
    p["out_b"] = rnd((1, D_MODEL))
    p["pe"] = make_positional_encoding(D_MODEL, max_len=64)[:SEQ]     # (S, D_MODEL)
    L = NUM_LAYERS
    p["in_proj_w"] = rnd((L, D_MODEL, 3 * D_MODEL))
    p["in_proj_b"] = rnd((L, 3 * D_MODEL))
    p["out_proj_w"] = rnd((L, D_MODEL, D_MODEL))
    p["out_proj_b"] = rnd((L, D_MODEL))
    p["ln1_w"] = jnp.ones((L, D_MODEL), jnp.float32)
    p["ln1_b"] = jnp.zeros((L, D_MODEL), jnp.float32)
    p["ln2_w"] = jnp.ones((L, D_MODEL), jnp.float32)
    p["ln2_b"] = jnp.zeros((L, D_MODEL), jnp.float32)
    p["ff1_w"] = rnd((L, D_MODEL, DIM_FF))
    p["ff1_b"] = rnd((L, DIM_FF))
    p["ff2_w"] = rnd((L, DIM_FF, D_MODEL))
    p["ff2_b"] = rnd((L, D_MODEL))
    p["fc_w"] = rnd((D_MODEL, OUT_DIM))
    p["fc_b"] = rnd((1, OUT_DIM))
    return p


# ---------------------------------- pure-JAX reference ------------------------------------
def reference_forward(p, src, mask):
    cat_idx = src[..., :len(CAT_COLS)].astype(jnp.int32)
    num_x = src[..., len(CAT_COLS):].astype(jnp.float32)
    embs = [jnp.take(p["emb"][i], cat_idx[..., i], axis=0) for i in range(len(CAT_COLS))]
    cat_emb = jnp.concatenate(embs, axis=-1)
    num_emb = num_x @ p["num_w"] + p["num_b"][0]
    h = cat_emb @ p["out_w_cat"] + num_emb @ p["out_w_num"] + p["out_b"][0]
    h = h + p["pe"][None]
    bias = jnp.where(mask, NEG_BIG, 0.0)[:, None, None, :]            # (B,1,1,S)
    B = src.shape[0]
    for l in range(NUM_LAYERS):
        qkv = h @ p["in_proj_w"][l] + p["in_proj_b"][l]
        q, k, v = jnp.split(qkv, 3, axis=-1)
        q = q / math.sqrt(HEAD_DIM)

        def heads(x):
            return x.reshape(B, SEQ, NHEAD, HEAD_DIM).transpose(0, 2, 1, 3)

        qh, kh, vh = heads(q), heads(k), heads(v)
        scores = jnp.einsum("bhqd,bhkd->bhqk", qh, kh) + bias
        attn = jax.nn.softmax(scores, axis=-1)
        ctx = jnp.einsum("bhqk,bhkd->bhqd", attn, vh).transpose(0, 2, 1, 3)
        ctx = ctx.reshape(B, SEQ, D_MODEL)
        h = _layernorm(h + ctx @ p["out_proj_w"][l] + p["out_proj_b"][l],
                       p["ln1_w"][l], p["ln1_b"][l])
        ff = jax.nn.relu(h @ p["ff1_w"][l] + p["ff1_b"][l]) @ p["ff2_w"][l] + p["ff2_b"][l]
        h = _layernorm(h + ff, p["ln2_w"][l], p["ln2_b"][l])
    return h @ p["fc_w"] + p["fc_b"][0]


# --------------------------------------- main ---------------------------------------------
if __name__ == "__main__":
    root = jax.random.PRNGKey(0)
    k_params, k_cat, k_num = jax.random.split(root, 3)
    params = init_params(k_params)
    kparams = prepare_kernel_params(params)

    # build src: first len(CAT_COLS) columns are categorical indices (as floats), rest numeric
    cat_keys = jax.random.split(k_cat, len(CAT_COLS))
    cat_cols = [jax.random.randint(cat_keys[i], (BATCH, SEQ, 1), 0, CAT_UNIQUE[c])
                .astype(jnp.float32) for i, c in enumerate(CAT_COLS)]
    num_part = jax.random.normal(k_num, (BATCH, SEQ, NUM_DIM), jnp.float32)
    src = jnp.concatenate(cat_cols + [num_part], axis=-1)             # (B, S, 3 + NUM_DIM)

    # last two sequence positions are padding (True = masked out of attention)
    src_key_padding_mask = jnp.broadcast_to(jnp.arange(SEQ) >= SEQ - 2, (BATCH, SEQ))

    out = horse_transformer_pallas(kparams, src, src_key_padding_mask)
    out = jax.block_until_ready(out)

    ref = reference_forward(params, src, src_key_padding_mask)
    assert out.shape == (BATCH, SEQ, OUT_DIM)
    assert bool(jnp.all(jnp.isfinite(out)))
    assert bool(jnp.allclose(out, ref, rtol=1e-2, atol=1e-2)), "mismatch vs JAX reference"

    # TODO(synk): dropout layers are identity here (eval/inference mode); training-mode
    # dropout RNG is not reproduced.
    print("KERNEL_OK")
</pallas_src>

<mosaic_0001>
module attributes {stable_mosaic.version = 11 : i64} {
  func.func @horse_transformer_kernel(%arg0: i32, %arg1: memref<16x32xf32, #tpu.memory_space<vmem>>, %arg2: memref<16x12xf32, #tpu.memory_space<vmem>>, %arg3: memref<64x32xf32, #tpu.memory_space<vmem>>, %arg4: memref<64x16xf32, #tpu.memory_space<vmem>>, %arg5: memref<12x32xf32, #tpu.memory_space<vmem>>, %arg6: memref<1x32x96xf32, #tpu.memory_space<vmem>>, %arg7: memref<1x1x96xf32, #tpu.memory_space<vmem>>, %arg8: memref<1x32x32xf32, #tpu.memory_space<vmem>>, %arg9: memref<1x1x32xf32, #tpu.memory_space<vmem>>, %arg10: memref<1x1x32xf32, #tpu.memory_space<vmem>>, %arg11: memref<1x1x32xf32, #tpu.memory_space<vmem>>, %arg12: memref<1x1x32xf32, #tpu.memory_space<vmem>>, %arg13: memref<1x1x32xf32, #tpu.memory_space<vmem>>, %arg14: memref<1x32x2048xbf16, #tpu.memory_space<vmem>>, %arg15: memref<1x1x2048xf32, #tpu.memory_space<vmem>>, %arg16: memref<1x32x2048xbf16, #tpu.memory_space<vmem>>, %arg17: memref<1x1x32xf32, #tpu.memory_space<vmem>>, %arg18: memref<32x128xf32, #tpu.memory_space<vmem>>, %arg19: memref<1x128xf32, #tpu.memory_space<vmem>>, %arg20: memref<16x128xf32, #tpu.memory_space<vmem>>, %arg21: memref<16x32xf32, #tpu.memory_space<vmem>>) attributes {dimension_semantics = [#tpu.dimension_semantics<arbitrary>], iteration_bounds = array<i64: 2>, scalar_prefetch = 0 : i64, scratch_operands = 1 : i64, tpu.core_type = #tpu.core_type<tc>, window_params = [{pipeline_mode = #tpu.pipeline_mode<synchronous>, transform_indices = @transform_0, window_bounds = array<i64: 16, 32>}, {pipeline_mode = #tpu.pipeline_mode<synchronous>, transform_indices = @transform_1, window_bounds = array<i64: 16, 12>}, {pipeline_mode = #tpu.pipeline_mode<synchronous>, transform_indices = @transform_2, window_bounds = array<i64: 64, 32>}, {pipeline_mode = #tpu.pipeline_mode<synchronous>, transform_indices = @transform_3, window_bounds = array<i64: 64, 16>}, {pipeline_mode = #tpu.pipeline_mode<synchronous>, transform_indices = @transform_4, window_bounds = array<i64: 12, 32>}, {transform_indices = @transform_5, window_bounds = array<i64: 1, 32, 96>}, {transform_indices = @transform_6, window_bounds = array<i64: 1, 1, 96>}, {transform_indices = @transform_7, window_bounds = array<i64: 1, 32, 32>}, {transform_indices = @transform_8, window_bounds = array<i64: 1, 1, 32>}, {transform_indices = @transform_9, window_bounds = array<i64: 1, 1, 32>}, {transform_indices = @transform_10, window_bounds = array<i64: 1, 1, 32>}, {transform_indices = @transform_11, window_bounds = array<i64: 1, 1, 32>}, {transform_indices = @transform_12, window_bounds = array<i64: 1, 1, 32>}, {transform_indices = @transform_13, window_bounds = array<i64: 1, 32, 2048>}, {transform_indices = @transform_14, window_bounds = array<i64: 1, 1, 2048>}, {transform_indices = @transform_15, window_bounds = array<i64: 1, 32, 2048>}, {transform_indices = @transform_16, window_bounds = array<i64: 1, 1, 32>}, {pipeline_mode = #tpu.pipeline_mode<synchronous>, transform_indices = @transform_17, window_bounds = array<i64: 32, 128>}, {pipeline_mode = #tpu.pipeline_mode<synchronous>, transform_indices = @transform_18, window_bounds = array<i64: 1, 128>}, {pipeline_mode = #tpu.pipeline_mode<synchronous>, transform_indices = @transform_19, window_bounds = array<i64: 16, 128>}]} {
    %c0_i32 = arith.constant 0 : i32
    %0 = arith.cmpi eq, %arg0, %c0_i32 : i32
    %1 = arith.extui %0 : i1 to i32
    %c0_i32_0 = arith.constant 0 : i32
    %2 = arith.cmpi ne, %1, %c0_i32_0 : i32
    scf.if %2 {
      %c0_134 = arith.constant 0 : index
      %c0_135 = arith.constant 0 : index
      %264 = vector.load %arg1[%c0_134, %c0_135] : memref<16x32xf32, #tpu.memory_space<vmem>>, vector<16x32xf32>
      %c0_136 = arith.constant 0 : index
      %c0_137 = arith.constant 0 : index
      %265 = vector.load %arg2[%c0_136, %c0_137] : memref<16x12xf32, #tpu.memory_space<vmem>>, vector<16x12xf32>
      %c0_138 = arith.constant 0 : index
      %c0_139 = arith.constant 0 : index
      %266 = vector.load %arg5[%c0_138, %c0_139] : memref<12x32xf32, #tpu.memory_space<vmem>>, vector<12x32xf32>
      %cst_140 = arith.constant dense<0.000000e+00> : vector<16x32xf32>
      %267 = tpu.matmul %265, %266, %cst_140 {dimension_numbers = #tpu.dot_dimension_numbers<[1], [0], [0], [1], [0, 0, 1, 1], [], []>} : vector<16x12xf32>, vector<12x32xf32>, vector<16x32xf32> -> vector<16x32xf32>
      %268 = arith.addf %264, %267 : vector<16x32xf32>
      %c0_141 = arith.constant 0 : index
      %c0_142 = arith.constant 0 : index
      %269 = vector.load %arg21[%c0_141, %c0_142] : memref<16x32xf32, #tpu.memory_space<vmem>>, vector<16x32xf32>
      tpu.vector_store %arg21[%c0_141, %c0_142], %268 {strides = array<i32>} : memref<16x32xf32, #tpu.memory_space<vmem>>, vector<16x32xf32>,
    } else {
    }
    %c0 = arith.constant 0 : index
    %c0_1 = arith.constant 0 : index
    %3 = vector.load %arg21[%c0, %c0_1] : memref<16x32xf32, #tpu.memory_space<vmem>>, vector<16x32xf32>
    %c0_2 = arith.constant 0 : index
    %c0_3 = arith.constant 0 : index
    %c0_4 = arith.constant 0 : index
    %4 = vector.load %arg6[%c0_2, %c0_3, %c0_4] : memref<1x32x96xf32, #tpu.memory_space<vmem>>, vector<1x32x96xf32>
    %5 = vector.shape_cast %4 : vector<1x32x96xf32> to vector<32x96xf32>
    %cst = arith.constant dense<0.000000e+00> : vector<16x96xf32>
    %6 = tpu.matmul %3, %5, %cst {dimension_numbers = #tpu.dot_dimension_numbers<[1], [0], [0], [1], [0, 0, 1, 1], [], []>} : vector<16x32xf32>, vector<32x96xf32>, vector<16x96xf32> -> vector<16x96xf32>
    %c0_5 = arith.constant 0 : index
    %c0_6 = arith.constant 0 : index
    %c0_7 = arith.constant 0 : index
    %7 = vector.load %arg7[%c0_5, %c0_6, %c0_7] : memref<1x1x96xf32, #tpu.memory_space<vmem>>, vector<1x1x96xf32>
    %8 = vector.shape_cast %7 : vector<1x1x96xf32> to vector<1x96xf32>
    %9 = vector.broadcast %8 : vector<1x96xf32> to vector<16x96xf32>
    %10 = arith.addf %6, %9 : vector<16x96xf32>
    %11 = vector.extract_strided_slice %10 {offsets = [0, 0], sizes = [16, 32], strides = [1, 1]} : vector<16x96xf32> to vector<16x32xf32>
    %cst_8 = arith.constant 0.353553385 : f32
    %12 = vector.broadcast %cst_8 : f32 to vector<16x32xf32>
    %13 = arith.mulf %11, %12 : vector<16x32xf32>
    %14 = vector.extract_strided_slice %10 {offsets = [0, 32], sizes = [16, 32], strides = [1, 1]} : vector<16x96xf32> to vector<16x32xf32>
    %15 = vector.extract_strided_slice %10 {offsets = [0, 64], sizes = [16, 32], strides = [1, 1]} : vector<16x96xf32> to vector<16x32xf32>
    %c0_9 = arith.constant 0 : index
    %c0_10 = arith.constant 0 : index
    %16 = vector.load %arg3[%c0_9, %c0_10] : memref<64x32xf32, #tpu.memory_space<vmem>>, vector<64x32xf32>
    %17 = tpu.concatenate %13, %13, %13, %13 in 0 : vector<16x32xf32>, vector<16x32xf32>, vector<16x32xf32>, vector<16x32xf32> -> vector<64x32xf32>
    %18 = arith.mulf %17, %16 : vector<64x32xf32>
    %cst_11 = arith.constant dense<0.000000e+00> : vector<64x16xf32>
    %19 = tpu.matmul %18, %14, %cst_11 {dimension_numbers = #tpu.dot_dimension_numbers<[1], [1], [0], [0], [0, 0, 1, 0], [], []>} : vector<64x32xf32>, vector<16x32xf32>, vector<64x16xf32> -> vector<64x16xf32>
    %c0_12 = arith.constant 0 : index
    %c0_13 = arith.constant 0 : index
    %20 = vector.load %arg4[%c0_12, %c0_13] : memref<64x16xf32, #tpu.memory_space<vmem>>, vector<64x16xf32>
    %21 = arith.addf %19, %20 : vector<64x16xf32>
    %cst_14 = arith.constant dense<0xFF800000> : vector<64xf32>
    %22 = vector.multi_reduction <maximumf>, %21, %cst_14 [1] : vector<64x16xf32> to vector<64xf32>
    %23 = vector.shape_cast %22 : vector<64xf32> to vector<64x1xf32>
    %24 = vector.broadcast %23 : vector<64x1xf32> to vector<64x16xf32>
    %25 = arith.subf %21, %24 : vector<64x16xf32>
    %26 = math.exp %25 : vector<64x16xf32>
    %cst_15 = arith.constant dense<0.000000e+00> : vector<64xf32>
    %27 = vector.multi_reduction <add>, %26, %cst_15 [1] : vector<64x16xf32> to vector<64xf32>
    %28 = vector.shape_cast %27 : vector<64xf32> to vector<64x1xf32>
    %29 = tpu.reciprocal %28 {approx = true} : vector<64x1xf32> -> vector<64x1xf32>
    %30 = vector.broadcast %29 : vector<64x1xf32> to vector<64x16xf32>
    %31 = arith.mulf %26, %30 : vector<64x16xf32>
    %cst_16 = arith.constant dense<0.000000e+00> : vector<64x32xf32>
    %32 = tpu.matmul %31, %15, %cst_16 {dimension_numbers = #tpu.dot_dimension_numbers<[1], [0], [0], [1], [0, 0, 1, 1], [], []>} : vector<64x16xf32>, vector<16x32xf32>, vector<64x32xf32> -> vector<64x32xf32>
    %33 = arith.mulf %32, %16 : vector<64x32xf32>
    %34 = vector.extract_strided_slice %33 {offsets = [0, 0], sizes = [16, 32], strides = [1, 1]} : vector<64x32xf32> to vector<16x32xf32>
    %35 = vector.extract_strided_slice %33 {offsets = [16, 0], sizes = [16, 32], strides = [1, 1]} : vector<64x32xf32> to vector<16x32xf32>
    %36 = arith.addf %34, %35 : vector<16x32xf32>
    %37 = vector.extract_strided_slice %33 {offsets = [32, 0], sizes = [16, 32], strides = [1, 1]} : vector<64x32xf32> to vector<16x32xf32>
    %38 = arith.addf %36, %37 : vector<16x32xf32>
    %39 = vector.extract_strided_slice %33 {offsets = [48, 0], sizes = [16, 32], strides = [1, 1]} : vector<64x32xf32> to vector<16x32xf32>
    %40 = arith.addf %38, %39 : vector<16x32xf32>
    %c0_17 = arith.constant 0 : index
    %c0_18 = arith.constant 0 : index
    %c0_19 = arith.constant 0 : index
    %41 = vector.load %arg8[%c0_17, %c0_18, %c0_19] : memref<1x32x32xf32, #tpu.memory_space<vmem>>, vector<1x32x32xf32>
    %42 = vector.shape_cast %41 : vector<1x32x32xf32> to vector<32x32xf32>
    %cst_20 = arith.constant dense<0.000000e+00> : vector<16x32xf32>
    %43 = tpu.matmul %40, %42, %cst_20 {dimension_numbers = #tpu.dot_dimension_numbers<[1], [0], [0], [1], [0, 0, 1, 1], [], []>} : vector<16x32xf32>, vector<32x32xf32>, vector<16x32xf32> -> vector<16x32xf32>
    %c0_21 = arith.constant 0 : index
    %c0_22 = arith.constant 0 : index
    %c0_23 = arith.constant 0 : index
    %44 = vector.load %arg9[%c0_21, %c0_22, %c0_23] : memref<1x1x32xf32, #tpu.memory_space<vmem>>, vector<1x1x32xf32>
    %45 = vector.shape_cast %44 : vector<1x1x32xf32> to vector<1x32xf32>
    %46 = vector.broadcast %45 : vector<1x32xf32> to vector<16x32xf32>
    %47 = arith.addf %43, %46 : vector<16x32xf32>
    %48 = arith.addf %3, %47 : vector<16x32xf32>
    %c0_24 = arith.constant 0 : index
    %c0_25 = arith.constant 0 : index
    %c0_26 = arith.constant 0 : index
    %49 = vector.load %arg10[%c0_24, %c0_25, %c0_26] : memref<1x1x32xf32, #tpu.memory_space<vmem>>, vector<1x1x32xf32>
    %50 = vector.shape_cast %49 : vector<1x1x32xf32> to vector<1x32xf32>
    %c0_27 = arith.constant 0 : index
    %c0_28 = arith.constant 0 : index
    %c0_29 = arith.constant 0 : index
    %51 = vector.load %arg11[%c0_27, %c0_28, %c0_29] : memref<1x1x32xf32, #tpu.memory_space<vmem>>, vector<1x1x32xf32>
    %52 = vector.shape_cast %51 : vector<1x1x32xf32> to vector<1x32xf32>
    %cst_30 = arith.constant dense<0.000000e+00> : vector<16xf32>
    %53 = vector.multi_reduction <add>, %48, %cst_30 [1] : vector<16x32xf32> to vector<16xf32>
    %54 = vector.shape_cast %53 : vector<16xf32> to vector<16x1xf32>
    %cst_31 = arith.constant 3.200000e+01 : f32
    %55 = vector.broadcast %cst_31 : f32 to vector<16x1xf32>
    %56 = arith.divf %54, %55 : vector<16x1xf32>
    %57 = vector.broadcast %56 : vector<16x1xf32> to vector<16x32xf32>
    %58 = arith.subf %48, %57 : vector<16x32xf32>
    %59 = arith.mulf %58, %58 : vector<16x32xf32>
    %cst_32 = arith.constant dense<0.000000e+00> : vector<16xf32>
    %60 = vector.multi_reduction <add>, %59, %cst_32 [1] : vector<16x32xf32> to vector<16xf32>
    %61 = vector.shape_cast %60 : vector<16xf32> to vector<16x1xf32>
    %cst_33 = arith.constant 3.200000e+01 : f32
    %62 = vector.broadcast %cst_33 : f32 to vector<16x1xf32>
    %63 = arith.divf %61, %62 : vector<16x1xf32>
    %64 = vector.broadcast %56 : vector<16x1xf32> to vector<16x32xf32>
    %65 = arith.subf %48, %64 : vector<16x32xf32>
    %cst_34 = arith.constant 9.99999974E-6 : f32
    %66 = vector.broadcast %cst_34 : f32 to vector<16x1xf32>
    %67 = arith.addf %63, %66 : vector<16x1xf32>
    %68 = math.rsqrt %67 : vector<16x1xf32>
    %69 = vector.broadcast %68 : vector<16x1xf32> to vector<16x32xf32>
    %70 = arith.mulf %65, %69 : vector<16x32xf32>
    %71 = vector.broadcast %50 : vector<1x32xf32> to vector<16x32xf32>
    %72 = arith.mulf %70, %71 : vector<16x32xf32>
    %73 = vector.broadcast %52 : vector<1x32xf32> to vector<16x32xf32>
    %74 = arith.addf %72, %73 : vector<16x32xf32>
    %75 = arith.truncf %74 : vector<16x32xf32> to vector<16x32xbf16>
    %cst_35 = arith.constant 0.000000e+00 : f32
    %76 = vector.broadcast %cst_35 : f32 to vector<16x32xf32>
    %c0_i32_36 = arith.constant 0 : i32
    %c256_i32 = arith.constant 256 : i32
    %77 = arith.muli %c0_i32_36, %c256_i32 : i32
    %78 = tpu.assume_multiple %77, 256 : i32
    %c0_37 = arith.constant 0 : index
    %c0_38 = arith.constant 0 : index
    %79 = arith.index_cast %78 : i32 to index
    %80 = vector.load %arg14[%c0_37, %c0_38, %79] : memref<1x32x2048xbf16, #tpu.memory_space<vmem>>, vector<1x32x256xbf16>
    %81 = vector.shape_cast %80 : vector<1x32x256xbf16> to vector<32x256xbf16>
    %c0_39 = arith.constant 0 : index
    %c0_40 = arith.constant 0 : index
    %82 = arith.index_cast %78 : i32 to index
    %83 = vector.load %arg15[%c0_39, %c0_40, %82] : memref<1x1x2048xf32, #tpu.memory_space<vmem>>, vector<1x1x256xf32>
    %84 = vector.shape_cast %83 : vector<1x1x256xf32> to vector<1x256xf32>
    %cst_41 = arith.constant dense<0.000000e+00> : vector<16x256xf32>
    %85 = tpu.matmul %75, %81, %cst_41 {dimension_numbers = #tpu.dot_dimension_numbers<[1], [0], [0], [1], [0, 0, 1, 1], [], []>} : vector<16x32xbf16>, vector<32x256xbf16>, vector<16x256xf32> -> vector<16x256xf32>
    %86 = vector.broadcast %84 : vector<1x256xf32> to vector<16x256xf32>
    %87 = arith.addf %85, %86 : vector<16x256xf32>
    %cst_42 = arith.constant 0.000000e+00 : f32
    %88 = vector.broadcast %cst_42 : f32 to vector<16x256xf32>
    %89 = arith.maximumf %87, %88 : vector<16x256xf32>
    %90 = arith.truncf %89 : vector<16x256xf32> to vector<16x256xbf16>
    %c0_43 = arith.constant 0 : index
    %c0_44 = arith.constant 0 : index
    %91 = arith.index_cast %78 : i32 to index
    %92 = vector.load %arg16[%c0_43, %c0_44, %91] : memref<1x32x2048xbf16, #tpu.memory_space<vmem>>, vector<1x32x256xbf16>
    %93 = vector.shape_cast %92 : vector<1x32x256xbf16> to vector<32x256xbf16>
    %cst_45 = arith.constant dense<0.000000e+00> : vector<16x32xf32>
    %94 = tpu.matmul %90, %93, %cst_45 {dimension_numbers = #tpu.dot_dimension_numbers<[1], [1], [0], [0], [0, 0, 1, 0], [], []>} : vector<16x256xbf16>, vector<32x256xbf16>, vector<16x32xf32> -> vector<16x32xf32>
    %95 = arith.addf %76, %94 : vector<16x32xf32>
    %c1_i32 = arith.constant 1 : i32
    %c256_i32_46 = arith.constant 256 : i32
    %96 = arith.muli %c1_i32, %c256_i32_46 : i32
    %97 = tpu.assume_multiple %96, 256 : i32
    %c0_47 = arith.constant 0 : index
    %c0_48 = arith.constant 0 : index
    %98 = arith.index_cast %97 : i32 to index
    %99 = vector.load %arg14[%c0_47, %c0_48, %98] : memref<1x32x2048xbf16, #tpu.memory_space<vmem>>, vector<1x32x256xbf16>
    %100 = vector.shape_cast %99 : vector<1x32x256xbf16> to vector<32x256xbf16>
    %c0_49 = arith.constant 0 : index
    %c0_50 = arith.constant 0 : index
    %101 = arith.index_cast %97 : i32 to index
    %102 = vector.load %arg15[%c0_49, %c0_50, %101] : memref<1x1x2048xf32, #tpu.memory_space<vmem>>, vector<1x1x256xf32>
    %103 = vector.shape_cast %102 : vector<1x1x256xf32> to vector<1x256xf32>
    %cst_51 = arith.constant dense<0.000000e+00> : vector<16x256xf32>
    %104 = tpu.matmul %75, %100, %cst_51 {dimension_numbers = #tpu.dot_dimension_numbers<[1], [0], [0], [1], [0, 0, 1, 1], [], []>} : vector<16x32xbf16>, vector<32x256xbf16>, vector<16x256xf32> -> vector<16x256xf32>
    %105 = vector.broadcast %103 : vector<1x256xf32> to vector<16x256xf32>
    %106 = arith.addf %104, %105 : vector<16x256xf32>
    %cst_52 = arith.constant 0.000000e+00 : f32
    %107 = vector.broadcast %cst_52 : f32 to vector<16x256xf32>
    %108 = arith.maximumf %106, %107 : vector<16x256xf32>
    %109 = arith.truncf %108 : vector<16x256xf32> to vector<16x256xbf16>
    %c0_53 = arith.constant 0 : index
    %c0_54 = arith.constant 0 : index
    %110 = arith.index_cast %97 : i32 to index
    %111 = vector.load %arg16[%c0_53, %c0_54, %110] : memref<1x32x2048xbf16, #tpu.memory_space<vmem>>, vector<1x32x256xbf16>
    %112 = vector.shape_cast %111 : vector<1x32x256xbf16> to vector<32x256xbf16>
    %cst_55 = arith.constant dense<0.000000e+00> : vector<16x32xf32>
    %113 = tpu.matmul %109, %112, %cst_55 {dimension_numbers = #tpu.dot_dimension_numbers<[1], [1], [0], [0], [0, 0, 1, 0], [], []>} : vector<16x256xbf16>, vector<32x256xbf16>, vector<16x32xf32> -> vector<16x32xf32>
    %114 = arith.addf %95, %113 : vector<16x32xf32>
    %c2_i32 = arith.constant 2 : i32
    %c256_i32_56 = arith.constant 256 : i32
    %115 = arith.muli %c2_i32, %c256_i32_56 : i32
    %116 = tpu.assume_multiple %115, 256 : i32
    %c0_57 = arith.constant 0 : index
    %c0_58 = arith.constant 0 : index
    %117 = arith.index_cast %116 : i32 to index
    %118 = vector.load %arg14[%c0_57, %c0_58, %117] : memref<1x32x2048xbf16, #tpu.memory_space<vmem>>, vector<1x32x256xbf16>
    %119 = vector.shape_cast %118 : vector<1x32x256xbf16> to vector<32x256xbf16>
    %c0_59 = arith.constant 0 : index
    %c0_60 = arith.constant 0 : index
    %120 = arith.index_cast %116 : i32 to index
    %121 = vector.load %arg15[%c0_59, %c0_60, %120] : memref<1x1x2048xf32, #tpu.memory_space<vmem>>, vector<1x1x256xf32>
    %122 = vector.shape_cast %121 : vector<1x1x256xf32> to vector<1x256xf32>
    %cst_61 = arith.constant dense<0.000000e+00> : vector<16x256xf32>
    %123 = tpu.matmul %75, %119, %cst_61 {dimension_numbers = #tpu.dot_dimension_numbers<[1], [0], [0], [1], [0, 0, 1, 1], [], []>} : vector<16x32xbf16>, vector<32x256xbf16>, vector<16x256xf32> -> vector<16x256xf32>
    %124 = vector.broadcast %122 : vector<1x256xf32> to vector<16x256xf32>
    %125 = arith.addf %123, %124 : vector<16x256xf32>
    %cst_62 = arith.constant 0.000000e+00 : f32
    %126 = vector.broadcast %cst_62 : f32 to vector<16x256xf32>
    %127 = arith.maximumf %125, %126 : vector<16x256xf32>
    %128 = arith.truncf %127 : vector<16x256xf32> to vector<16x256xbf16>
    %c0_63 = arith.constant 0 : index
    %c0_64 = arith.constant 0 : index
    %129 = arith.index_cast %116 : i32 to index
    %130 = vector.load %arg16[%c0_63, %c0_64, %129] : memref<1x32x2048xbf16, #tpu.memory_space<vmem>>, vector<1x32x256xbf16>
    %131 = vector.shape_cast %130 : vector<1x32x256xbf16> to vector<32x256xbf16>
    %cst_65 = arith.constant dense<0.000000e+00> : vector<16x32xf32>
    %132 = tpu.matmul %128, %131, %cst_65 {dimension_numbers = #tpu.dot_dimension_numbers<[1], [1], [0], [0], [0, 0, 1, 0], [], []>} : vector<16x256xbf16>, vector<32x256xbf16>, vector<16x32xf32> -> vector<16x32xf32>
    %133 = arith.addf %114, %132 : vector<16x32xf32>
    %c3_i32 = arith.constant 3 : i32
    %c256_i32_66 = arith.constant 256 : i32
    %134 = arith.muli %c3_i32, %c256_i32_66 : i32
    %135 = tpu.assume_multiple %134, 256 : i32
    %c0_67 = arith.constant 0 : index
    %c0_68 = arith.constant 0 : index
    %136 = arith.index_cast %135 : i32 to index
    %137 = vector.load %arg14[%c0_67, %c0_68, %136] : memref<1x32x2048xbf16, #tpu.memory_space<vmem>>, vector<1x32x256xbf16>
    %138 = vector.shape_cast %137 : vector<1x32x256xbf16> to vector<32x256xbf16>
    %c0_69 = arith.constant 0 : index
    %c0_70 = arith.constant 0 : index
    %139 = arith.index_cast %135 : i32 to index
    %140 = vector.load %arg15[%c0_69, %c0_70, %139] : memref<1x1x2048xf32, #tpu.memory_space<vmem>>, vector<1x1x256xf32>
    %141 = vector.shape_cast %140 : vector<1x1x256xf32> to vector<1x256xf32>
    %cst_71 = arith.constant dense<0.000000e+00> : vector<16x256xf32>
    %142 = tpu.matmul %75, %138, %cst_71 {dimension_numbers = #tpu.dot_dimension_numbers<[1], [0], [0], [1], [0, 0, 1, 1], [], []>} : vector<16x32xbf16>, vector<32x256xbf16>, vector<16x256xf32> -> vector<16x256xf32>
    %143 = vector.broadcast %141 : vector<1x256xf32> to vector<16x256xf32>
    %144 = arith.addf %142, %143 : vector<16x256xf32>
    %cst_72 = arith.constant 0.000000e+00 : f32
    %145 = vector.broadcast %cst_72 : f32 to vector<16x256xf32>
    %146 = arith.maximumf %144, %145 : vector<16x256xf32>
    %147 = arith.truncf %146 : vector<16x256xf32> to vector<16x256xbf16>
    %c0_73 = arith.constant 0 : index
    %c0_74 = arith.constant 0 : index
    %148 = arith.index_cast %135 : i32 to index
    %149 = vector.load %arg16[%c0_73, %c0_74, %148] : memref<1x32x2048xbf16, #tpu.memory_space<vmem>>, vector<1x32x256xbf16>
    %150 = vector.shape_cast %149 : vector<1x32x256xbf16> to vector<32x256xbf16>
    %cst_75 = arith.constant dense<0.000000e+00> : vector<16x32xf32>
    %151 = tpu.matmul %147, %150, %cst_75 {dimension_numbers = #tpu.dot_dimension_numbers<[1], [1], [0], [0], [0, 0, 1, 0], [], []>} : vector<16x256xbf16>, vector<32x256xbf16>, vector<16x32xf32> -> vector<16x32xf32>
    %152 = arith.addf %133, %151 : vector<16x32xf32>
    %c4_i32 = arith.constant 4 : i32
    %c256_i32_76 = arith.constant 256 : i32
    %153 = arith.muli %c4_i32, %c256_i32_76 : i32
    %154 = tpu.assume_multiple %153, 256 : i32
    %c0_77 = arith.constant 0 : index
    %c0_78 = arith.constant 0 : index
    %155 = arith.index_cast %154 : i32 to index
    %156 = vector.load %arg14[%c0_77, %c0_78, %155] : memref<1x32x2048xbf16, #tpu.memory_space<vmem>>, vector<1x32x256xbf16>
    %157 = vector.shape_cast %156 : vector<1x32x256xbf16> to vector<32x256xbf16>
    %c0_79 = arith.constant 0 : index
    %c0_80 = arith.constant 0 : index
    %158 = arith.index_cast %154 : i32 to index
    %159 = vector.load %arg15[%c0_79, %c0_80, %158] : memref<1x1x2048xf32, #tpu.memory_space<vmem>>, vector<1x1x256xf32>
    %160 = vector.shape_cast %159 : vector<1x1x256xf32> to vector<1x256xf32>
    %cst_81 = arith.constant dense<0.000000e+00> : vector<16x256xf32>
    %161 = tpu.matmul %75, %157, %cst_81 {dimension_numbers = #tpu.dot_dimension_numbers<[1], [0], [0], [1], [0, 0, 1, 1], [], []>} : vector<16x32xbf16>, vector<32x256xbf16>, vector<16x256xf32> -> vector<16x256xf32>
    %162 = vector.broadcast %160 : vector<1x256xf32> to vector<16x256xf32>
    %163 = arith.addf %161, %162 : vector<16x256xf32>
    %cst_82 = arith.constant 0.000000e+00 : f32
    %164 = vector.broadcast %cst_82 : f32 to vector<16x256xf32>
    %165 = arith.maximumf %163, %164 : vector<16x256xf32>
    %166 = arith.truncf %165 : vector<16x256xf32> to vector<16x256xbf16>
    %c0_83 = arith.constant 0 : index
    %c0_84 = arith.constant 0 : index
    %167 = arith.index_cast %154 : i32 to index
    %168 = vector.load %arg16[%c0_83, %c0_84, %167] : memref<1x32x2048xbf16, #tpu.memory_space<vmem>>, vector<1x32x256xbf16>
    %169 = vector.shape_cast %168 : vector<1x32x256xbf16> to vector<32x256xbf16>
    %cst_85 = arith.constant dense<0.000000e+00> : vector<16x32xf32>
    %170 = tpu.matmul %166, %169, %cst_85 {dimension_numbers = #tpu.dot_dimension_numbers<[1], [1], [0], [0], [0, 0, 1, 0], [], []>} : vector<16x256xbf16>, vector<32x256xbf16>, vector<16x32xf32> -> vector<16x32xf32>
    %171 = arith.addf %152, %170 : vector<16x32xf32>
    %c5_i32 = arith.constant 5 : i32
    %c256_i32_86 = arith.constant 256 : i32
    %172 = arith.muli %c5_i32, %c256_i32_86 : i32
    %173 = tpu.assume_multiple %172, 256 : i32
    %c0_87 = arith.constant 0 : index
    %c0_88 = arith.constant 0 : index
    %174 = arith.index_cast %173 : i32 to index
    %175 = vector.load %arg14[%c0_87, %c0_88, %174] : memref<1x32x2048xbf16, #tpu.memory_space<vmem>>, vector<1x32x256xbf16>
    %176 = vector.shape_cast %175 : vector<1x32x256xbf16> to vector<32x256xbf16>
    %c0_89 = arith.constant 0 : index
    %c0_90 = arith.constant 0 : index
    %177 = arith.index_cast %173 : i32 to index
    %178 = vector.load %arg15[%c0_89, %c0_90, %177] : memref<1x1x2048xf32, #tpu.memory_space<vmem>>, vector<1x1x256xf32>
    %179 = vector.shape_cast %178 : vector<1x1x256xf32> to vector<1x256xf32>
    %cst_91 = arith.constant dense<0.000000e+00> : vector<16x256xf32>
    %180 = tpu.matmul %75, %176, %cst_91 {dimension_numbers = #tpu.dot_dimension_numbers<[1], [0], [0], [1], [0, 0, 1, 1], [], []>} : vector<16x32xbf16>, vector<32x256xbf16>, vector<16x256xf32> -> vector<16x256xf32>
    %181 = vector.broadcast %179 : vector<1x256xf32> to vector<16x256xf32>
    %182 = arith.addf %180, %181 : vector<16x256xf32>
    %cst_92 = arith.constant 0.000000e+00 : f32
    %183 = vector.broadcast %cst_92 : f32 to vector<16x256xf32>
    %184 = arith.maximumf %182, %183 : vector<16x256xf32>
    %185 = arith.truncf %184 : vector<16x256xf32> to vector<16x256xbf16>
    %c0_93 = arith.constant 0 : index
    %c0_94 = arith.constant 0 : index
    %186 = arith.index_cast %173 : i32 to index
    %187 = vector.load %arg16[%c0_93, %c0_94, %186] : memref<1x32x2048xbf16, #tpu.memory_space<vmem>>, vector<1x32x256xbf16>
    %188 = vector.shape_cast %187 : vector<1x32x256xbf16> to vector<32x256xbf16>
    %cst_95 = arith.constant dense<0.000000e+00> : vector<16x32xf32>
    %189 = tpu.matmul %185, %188, %cst_95 {dimension_numbers = #tpu.dot_dimension_numbers<[1], [1], [0], [0], [0, 0, 1, 0], [], []>} : vector<16x256xbf16>, vector<32x256xbf16>, vector<16x32xf32> -> vector<16x32xf32>
    %190 = arith.addf %171, %189 : vector<16x32xf32>
    %c6_i32 = arith.constant 6 : i32
    %c256_i32_96 = arith.constant 256 : i32
    %191 = arith.muli %c6_i32, %c256_i32_96 : i32
    %192 = tpu.assume_multiple %191, 256 : i32
    %c0_97 = arith.constant 0 : index
    %c0_98 = arith.constant 0 : index
    %193 = arith.index_cast %192 : i32 to index
    %194 = vector.load %arg14[%c0_97, %c0_98, %193] : memref<1x32x2048xbf16, #tpu.memory_space<vmem>>, vector<1x32x256xbf16>
    %195 = vector.shape_cast %194 : vector<1x32x256xbf16> to vector<32x256xbf16>
    %c0_99 = arith.constant 0 : index
    %c0_100 = arith.constant 0 : index
    %196 = arith.index_cast %192 : i32 to index
    %197 = vector.load %arg15[%c0_99, %c0_100, %196] : memref<1x1x2048xf32, #tpu.memory_space<vmem>>, vector<1x1x256xf32>
    %198 = vector.shape_cast %197 : vector<1x1x256xf32> to vector<1x256xf32>
    %cst_101 = arith.constant dense<0.000000e+00> : vector<16x256xf32>
    %199 = tpu.matmul %75, %195, %cst_101 {dimension_numbers = #tpu.dot_dimension_numbers<[1], [0], [0], [1], [0, 0, 1, 1], [], []>} : vector<16x32xbf16>, vector<32x256xbf16>, vector<16x256xf32> -> vector<16x256xf32>
    %200 = vector.broadcast %198 : vector<1x256xf32> to vector<16x256xf32>
    %201 = arith.addf %199, %200 : vector<16x256xf32>
    %cst_102 = arith.constant 0.000000e+00 : f32
    %202 = vector.broadcast %cst_102 : f32 to vector<16x256xf32>
    %203 = arith.maximumf %201, %202 : vector<16x256xf32>
    %204 = arith.truncf %203 : vector<16x256xf32> to vector<16x256xbf16>
    %c0_103 = arith.constant 0 : index
    %c0_104 = arith.constant 0 : index
    %205 = arith.index_cast %192 : i32 to index
    %206 = vector.load %arg16[%c0_103, %c0_104, %205] : memref<1x32x2048xbf16, #tpu.memory_space<vmem>>, vector<1x32x256xbf16>
    %207 = vector.shape_cast %206 : vector<1x32x256xbf16> to vector<32x256xbf16>
    %cst_105 = arith.constant dense<0.000000e+00> : vector<16x32xf32>
    %208 = tpu.matmul %204, %207, %cst_105 {dimension_numbers = #tpu.dot_dimension_numbers<[1], [1], [0], [0], [0, 0, 1, 0], [], []>} : vector<16x256xbf16>, vector<32x256xbf16>, vector<16x32xf32> -> vector<16x32xf32>
    %209 = arith.addf %190, %208 : vector<16x32xf32>
    %c7_i32 = arith.constant 7 : i32
    %c256_i32_106 = arith.constant 256 : i32
    %210 = arith.muli %c7_i32, %c256_i32_106 : i32
    %211 = tpu.assume_multiple %210, 256 : i32
    %c0_107 = arith.constant 0 : index
    %c0_108 = arith.constant 0 : index
    %212 = arith.index_cast %211 : i32 to index
    %213 = vector.load %arg14[%c0_107, %c0_108, %212] : memref<1x32x2048xbf16, #tpu.memory_space<vmem>>, vector<1x32x256xbf16>
    %214 = vector.shape_cast %213 : vector<1x32x256xbf16> to vector<32x256xbf16>
    %c0_109 = arith.constant 0 : index
    %c0_110 = arith.constant 0 : index
    %215 = arith.index_cast %211 : i32 to index
    %216 = vector.load %arg15[%c0_109, %c0_110, %215] : memref<1x1x2048xf32, #tpu.memory_space<vmem>>, vector<1x1x256xf32>
    %217 = vector.shape_cast %216 : vector<1x1x256xf32> to vector<1x256xf32>
    %cst_111 = arith.constant dense<0.000000e+00> : vector<16x256xf32>
    %218 = tpu.matmul %75, %214, %cst_111 {dimension_numbers = #tpu.dot_dimension_numbers<[1], [0], [0], [1], [0, 0, 1, 1], [], []>} : vector<16x32xbf16>, vector<32x256xbf16>, vector<16x256xf32> -> vector<16x256xf32>
    %219 = vector.broadcast %217 : vector<1x256xf32> to vector<16x256xf32>
    %220 = arith.addf %218, %219 : vector<16x256xf32>
    %cst_112 = arith.constant 0.000000e+00 : f32
    %221 = vector.broadcast %cst_112 : f32 to vector<16x256xf32>
    %222 = arith.maximumf %220, %221 : vector<16x256xf32>
    %223 = arith.truncf %222 : vector<16x256xf32> to vector<16x256xbf16>
    %c0_113 = arith.constant 0 : index
    %c0_114 = arith.constant 0 : index
    %224 = arith.index_cast %211 : i32 to index
    %225 = vector.load %arg16[%c0_113, %c0_114, %224] : memref<1x32x2048xbf16, #tpu.memory_space<vmem>>, vector<1x32x256xbf16>
    %226 = vector.shape_cast %225 : vector<1x32x256xbf16> to vector<32x256xbf16>
    %cst_115 = arith.constant dense<0.000000e+00> : vector<16x32xf32>
    %227 = tpu.matmul %223, %226, %cst_115 {dimension_numbers = #tpu.dot_dimension_numbers<[1], [1], [0], [0], [0, 0, 1, 0], [], []>} : vector<16x256xbf16>, vector<32x256xbf16>, vector<16x32xf32> -> vector<16x32xf32>
    %228 = arith.addf %209, %227 : vector<16x32xf32>
    %c8_i32 = arith.constant 8 : i32
    %c0_116 = arith.constant 0 : index
    %c0_117 = arith.constant 0 : index
    %c0_118 = arith.constant 0 : index
    %229 = vector.load %arg17[%c0_116, %c0_117, %c0_118] : memref<1x1x32xf32, #tpu.memory_space<vmem>>, vector<1x1x32xf32>
    %230 = vector.shape_cast %229 : vector<1x1x32xf32> to vector<1x32xf32>
    %231 = vector.broadcast %230 : vector<1x32xf32> to vector<16x32xf32>
    %232 = arith.addf %228, %231 : vector<16x32xf32>
    %233 = arith.addf %74, %232 : vector<16x32xf32>
    %c0_119 = arith.constant 0 : index
    %c0_120 = arith.constant 0 : index
    %c0_121 = arith.constant 0 : index
    %234 = vector.load %arg12[%c0_119, %c0_120, %c0_121] : memref<1x1x32xf32, #tpu.memory_space<vmem>>, vector<1x1x32xf32>
    %235 = vector.shape_cast %234 : vector<1x1x32xf32> to vector<1x32xf32>
    %c0_122 = arith.constant 0 : index
    %c0_123 = arith.constant 0 : index
    %c0_124 = arith.constant 0 : index
    %236 = vector.load %arg13[%c0_122, %c0_123, %c0_124] : memref<1x1x32xf32, #tpu.memory_space<vmem>>, vector<1x1x32xf32>
    %237 = vector.shape_cast %236 : vector<1x1x32xf32> to vector<1x32xf32>
    %cst_125 = arith.constant dense<0.000000e+00> : vector<16xf32>
    %238 = vector.multi_reduction <add>, %233, %cst_125 [1] : vector<16x32xf32> to vector<16xf32>
    %239 = vector.shape_cast %238 : vector<16xf32> to vector<16x1xf32>
    %cst_126 = arith.constant 3.200000e+01 : f32
    %240 = vector.broadcast %cst_126 : f32 to vector<16x1xf32>
    %241 = arith.divf %239, %240 : vector<16x1xf32>
    %242 = vector.broadcast %241 : vector<16x1xf32> to vector<16x32xf32>
    %243 = arith.subf %233, %242 : vector<16x32xf32>
    %244 = arith.mulf %243, %243 : vector<16x32xf32>
    %cst_127 = arith.constant dense<0.000000e+00> : vector<16xf32>
    %245 = vector.multi_reduction <add>, %244, %cst_127 [1] : vector<16x32xf32> to vector<16xf32>
    %246 = vector.shape_cast %245 : vector<16xf32> to vector<16x1xf32>
    %cst_128 = arith.constant 3.200000e+01 : f32
    %247 = vector.broadcast %cst_128 : f32 to vector<16x1xf32>
    %248 = arith.divf %246, %247 : vector<16x1xf32>
    %249 = vector.broadcast %241 : vector<16x1xf32> to vector<16x32xf32>
    %250 = arith.subf %233, %249 : vector<16x32xf32>
    %cst_129 = arith.constant 9.99999974E-6 : f32
    %251 = vector.broadcast %cst_129 : f32 to vector<16x1xf32>
    %252 = arith.addf %248, %251 : vector<16x1xf32>
    %253 = math.rsqrt %252 : vector<16x1xf32>
    %254 = vector.broadcast %253 : vector<16x1xf32> to vector<16x32xf32>
    %255 = arith.mulf %250, %254 : vector<16x32xf32>
    %256 = vector.broadcast %235 : vector<1x32xf32> to vector<16x32xf32>
    %257 = arith.mulf %255, %256 : vector<16x32xf32>
    %258 = vector.broadcast %237 : vector<1x32xf32> to vector<16x32xf32>
    %259 = arith.addf %257, %258 : vector<16x32xf32>
    %c0_130 = arith.constant 0 : index
    %c0_131 = arith.constant 0 : index
    %260 = vector.load %arg21[%c0_130, %c0_131] : memref<16x32xf32, #tpu.memory_space<vmem>>, vector<16x32xf32>
    tpu.vector_store %arg21[%c0_130, %c0_131], %259 {strides = array<i32>} : memref<16x32xf32, #tpu.memory_space<vmem>>, vector<16x32xf32>,
    %c1_i32_132 = arith.constant 1 : i32
    %261 = arith.cmpi eq, %arg0, %c1_i32_132 : i32
    %262 = arith.extui %261 : i1 to i32
    %c0_i32_133 = arith.constant 0 : i32
    %263 = arith.cmpi ne, %262, %c0_i32_133 : i32
    scf.if %263 {
      %c0_134 = arith.constant 0 : index
      %c0_135 = arith.constant 0 : index
      %264 = vector.load %arg18[%c0_134, %c0_135] : memref<32x128xf32, #tpu.memory_space<vmem>>, vector<32x128xf32>
      %cst_136 = arith.constant dense<0.000000e+00> : vector<16x128xf32>
      %265 = tpu.matmul %259, %264, %cst_136 {dimension_numbers = #tpu.dot_dimension_numbers<[1], [0], [0], [1], [0, 0, 1, 1], [], []>} : vector<16x32xf32>, vector<32x128xf32>, vector<16x128xf32> -> vector<16x128xf32>
      %c0_137 = arith.constant 0 : index
      %c0_138 = arith.constant 0 : index
      %266 = vector.load %arg19[%c0_137, %c0_138] : memref<1x128xf32, #tpu.memory_space<vmem>>, vector<1x128xf32>
      %267 = vector.broadcast %266 : vector<1x128xf32> to vector<16x128xf32>
      %268 = arith.addf %265, %267 : vector<16x128xf32>
      %c0_139 = arith.constant 0 : index
      %c0_140 = arith.constant 0 : index
      %269 = vector.load %arg20[%c0_139, %c0_140] : memref<16x128xf32, #tpu.memory_space<vmem>>, vector<16x128xf32>
      tpu.vector_store %arg20[%c0_139, %c0_140], %268 {strides = array<i32>} : memref<16x128xf32, #tpu.memory_space<vmem>>, vector<16x128xf32>,
    } else {
    }
    return
  }
  func.func @transform_0(%arg0: i32) -> (i32, i32) {
    %c0_i32 = arith.constant 0 : i32
    %c0_i32_0 = arith.constant 0 : i32
    %c0_i32_1 = arith.constant 0 : i32
    return %c0_i32, %c0_i32_0 : i32, i32
  }
  func.func @transform_1(%arg0: i32) -> (i32, i32) {
    %c0_i32 = arith.constant 0 : i32
    %c0_i32_0 = arith.constant 0 : i32
    %c0_i32_1 = arith.constant 0 : i32
    return %c0_i32, %c0_i32_0 : i32, i32
  }
  func.func @transform_2(%arg0: i32) -> (i32, i32) {
    %c0_i32 = arith.constant 0 : i32
    %c0_i32_0 = arith.constant 0 : i32
    %c0_i32_1 = arith.constant 0 : i32
    return %c0_i32, %c0_i32_0 : i32, i32
  }
  func.func @transform_3(%arg0: i32) -> (i32, i32) {
    %c0_i32 = arith.constant 0 : i32
    %c0_i32_0 = arith.constant 0 : i32
    %c0_i32_1 = arith.constant 0 : i32
    return %c0_i32, %c0_i32_0 : i32, i32
  }
  func.func @transform_4(%arg0: i32) -> (i32, i32) {
    %c0_i32 = arith.constant 0 : i32
    %c0_i32_0 = arith.constant 0 : i32
    %c0_i32_1 = arith.constant 0 : i32
    return %c0_i32, %c0_i32_0 : i32, i32
  }
  func.func @transform_5(%arg0: i32) -> (i32, i32, i32) {
    %c0_i32 = arith.constant 0 : i32
    %c0_i32_0 = arith.constant 0 : i32
    %c0_i32_1 = arith.constant 0 : i32
    return %arg0, %c0_i32, %c0_i32_0 : i32, i32, i32
  }
  func.func @transform_6(%arg0: i32) -> (i32, i32, i32) {
    %c0_i32 = arith.constant 0 : i32
    %c0_i32_0 = arith.constant 0 : i32
    %c0_i32_1 = arith.constant 0 : i32
    return %arg0, %c0_i32, %c0_i32_0 : i32, i32, i32
  }
  func.func @transform_7(%arg0: i32) -> (i32, i32, i32) {
    %c0_i32 = arith.constant 0 : i32
    %c0_i32_0 = arith.constant 0 : i32
    %c0_i32_1 = arith.constant 0 : i32
    return %arg0, %c0_i32, %c0_i32_0 : i32, i32, i32
  }
  func.func @transform_8(%arg0: i32) -> (i32, i32, i32) {
    %c0_i32 = arith.constant 0 : i32
    %c0_i32_0 = arith.constant 0 : i32
    %c0_i32_1 = arith.constant 0 : i32
    return %arg0, %c0_i32, %c0_i32_0 : i32, i32, i32
  }
  func.func @transform_9(%arg0: i32) -> (i32, i32, i32) {
    %c0_i32 = arith.constant 0 : i32
    %c0_i32_0 = arith.constant 0 : i32
    %c0_i32_1 = arith.constant 0 : i32
    return %arg0, %c0_i32, %c0_i32_0 : i32, i32, i32
  }
  func.func @transform_10(%arg0: i32) -> (i32, i32, i32) {
    %c0_i32 = arith.constant 0 : i32
    %c0_i32_0 = arith.constant 0 : i32
    %c0_i32_1 = arith.constant 0 : i32
    return %arg0, %c0_i32, %c0_i32_0 : i32, i32, i32
  }
  func.func @transform_11(%arg0: i32) -> (i32, i32, i32) {
    %c0_i32 = arith.constant 0 : i32
    %c0_i32_0 = arith.constant 0 : i32
    %c0_i32_1 = arith.constant 0 : i32
    return %arg0, %c0_i32, %c0_i32_0 : i32, i32, i32
  }
  func.func @transform_12(%arg0: i32) -> (i32, i32, i32) {
    %c0_i32 = arith.constant 0 : i32
    %c0_i32_0 = arith.constant 0 : i32
    %c0_i32_1 = arith.constant 0 : i32
    return %arg0, %c0_i32, %c0_i32_0 : i32, i32, i32
  }
  func.func @transform_13(%arg0: i32) -> (i32, i32, i32) {
    %c0_i32 = arith.constant 0 : i32
    %c0_i32_0 = arith.constant 0 : i32
    %c0_i32_1 = arith.constant 0 : i32
    return %arg0, %c0_i32, %c0_i32_0 : i32, i32, i32
  }
  func.func @transform_14(%arg0: i32) -> (i32, i32, i32) {
    %c0_i32 = arith.constant 0 : i32
    %c0_i32_0 = arith.constant 0 : i32
    %c0_i32_1 = arith.constant 0 : i32
    return %arg0, %c0_i32, %c0_i32_0 : i32, i32, i32
  }
  func.func @transform_15(%arg0: i32) -> (i32, i32, i32) {
    %c0_i32 = arith.constant 0 : i32
    %c0_i32_0 = arith.constant 0 : i32
    %c0_i32_1 = arith.constant 0 : i32
    return %arg0, %c0_i32, %c0_i32_0 : i32, i32, i32
  }
  func.func @transform_16(%arg0: i32) -> (i32, i32, i32) {
    %c0_i32 = arith.constant 0 : i32
    %c0_i32_0 = arith.constant 0 : i32
    %c0_i32_1 = arith.constant 0 : i32
    return %arg0, %c0_i32, %c0_i32_0 : i32, i32, i32
  }
  func.func @transform_17(%arg0: i32) -> (i32, i32) {
    %c0_i32 = arith.constant 0 : i32
    %c0_i32_0 = arith.constant 0 : i32
    %c0_i32_1 = arith.constant 0 : i32
    return %c0_i32, %c0_i32_0 : i32, i32
  }
  func.func @transform_18(%arg0: i32) -> (i32, i32) {
    %c0_i32 = arith.constant 0 : i32
    %c0_i32_0 = arith.constant 0 : i32
    %c0_i32_1 = arith.constant 0 : i32
    return %c0_i32, %c0_i32_0 : i32, i32
  }
  func.func @transform_19(%arg0: i32) -> (i32, i32) {
    %c0_i32 = arith.constant 0 : i32
    %c0_i32_0 = arith.constant 0 : i32
    %c0_i32_1 = arith.constant 0 : i32
    return %c0_i32, %c0_i32_0 : i32, i32
  }
}

</mosaic_0001>

<llo_original>
// kernel: tpu_custom_call.1
$region0: #{tpu_custom_call.1}
  #allocation0 [shape = 'u32[]', space=smem, size = 0x4, offset = 0x4, fixed_abs, tag = 'smem constant byte address 0x4 - core index']
  #allocation1 [shape = 'u32[144,128]{1,0:T(1,128)}', space=vmem, size = 0x12000, scoped, tag = 'internal scratch']
  #allocation2 [shape = 'f32[16,32]{1,0:T(8,128)}', space=vmem, size = 0x2000, scoped, tag = 'scratch operand']
  %s0 = inlined_call_operand.hbm [shape: f32[16,32], index: 0, kind: input, shape index: {}]
  %s1 = inlined_call_operand.hbm [shape: f32[16,12], index: 1, kind: input, shape index: {}]
  %s2 = inlined_call_operand.vmem [shape: f32[64,32], index: 2, kind: input, shape index: {}]
  %s3 = inlined_call_operand.vmem [shape: f32[64,16], index: 3, kind: input, shape index: {}]
  %s4 = inlined_call_operand.hbm [shape: f32[12,32], index: 4, kind: input, shape index: {}]
  %s5 = inlined_call_operand.vmem [shape: f32[2,32,96], index: 5, kind: input, shape index: {}]
  %s6 = inlined_call_operand.vmem [shape: f32[2,1,96], index: 6, kind: input, shape index: {}]
  %s7 = inlined_call_operand.vmem [shape: f32[2,32,32], index: 7, kind: input, shape index: {}]
  %s8 = inlined_call_operand.vmem [shape: f32[2,1,32], index: 8, kind: input, shape index: {}]
  %s9 = inlined_call_operand.vmem [shape: f32[2,1,32], index: 9, kind: input, shape index: {}]
  %s10 = inlined_call_operand.vmem [shape: f32[2,1,32], index: 10, kind: input, shape index: {}]
  %s11 = inlined_call_operand.vmem [shape: f32[2,1,32], index: 11, kind: input, shape index: {}]
  %s12 = inlined_call_operand.vmem [shape: f32[2,1,32], index: 12, kind: input, shape index: {}]
  %s13 = inlined_call_operand.hbm [shape: bf16[2,32,2048], index: 13, kind: input, shape index: {}]
  %s14 = inlined_call_operand.vmem [shape: f32[2,1,2048], index: 14, kind: input, shape index: {}]
  %s15 = inlined_call_operand.hbm [shape: bf16[2,32,2048], index: 15, kind: input, shape index: {}]
  %s16 = inlined_call_operand.vmem [shape: f32[2,1,32], index: 16, kind: input, shape index: {}]
  %s17 = inlined_call_operand.vmem [shape: f32[32,128], index: 17, kind: input, shape index: {}]
  %s18 = inlined_call_operand.vmem [shape: f32[1,128], index: 18, kind: input, shape index: {}]
  %s19 = inlined_call_operand.hbm [shape: f32[16,128], index: 19, kind: output, shape index: {}]
  %s20 = sld [smem:[#allocation0]]
  $region137: #{tpu_custom_call.1} parent=0
    _
  %s22 = ssub.s32 1, %s20
  %s23 = scalar_select 0, %s22, %s20
  $region1: #{tpu_custom_call.1} parent=0
    #allocation3 [shape = 'u8[8192]{0}', space=vmem, size = 0x2000, scoped, tag = 'input window, operand 0, single buffered']
    #allocation4 [shape = 's32[2]{0}', space=sflag, size = 0x8, scoped, tag = 'scoped memory for tpu_custom_call.1']
    #allocation5 [shape = 's32[2]{0}', space=sflag, size = 0x8, scoped, tag = 'scoped memory for tpu_custom_call.1']
    #allocation6 [shape = 'u8[8192]{0}', space=vmem, size = 0x2000, scoped, tag = 'input window, operand 1, single buffered']
    #allocation7 [shape = 's32[1]{0}', space=sflag, size = 0x4, scoped, tag = 'scoped memory for tpu_custom_call.1']
    #allocation8 [shape = 'u8[8192]{0}', space=vmem, size = 0x2000, scoped, tag = 'input window, operand 4, single buffered']
    #allocation9 [shape = 'u8[262144]{0}', space=vmem, size = 0x40000, scoped, tag = 'input window, operand 13']
    #allocation10 [shape = 's32[2]{0}', space=sflag, size = 0x8, scoped, tag = 'scoped memory for tpu_custom_call.1']
    #allocation11 [shape = 'u8[262144]{0}', space=vmem, size = 0x40000, scoped, tag = 'input window, operand 15']
    #allocation12 [shape = 'u8[8192]{0}', space=vmem, size = 0x2000, scoped, tag = 'output window, operand 0, single buffered']
    %24 = vsyncpa [#allocation4], 0
    %25 = vsyncpa [#allocation7], 0
    %26 = vsyncpa [#allocation10], 0
    %s27 = scalar_lea.sflag [#allocation10], 1
    %28 = vsyncpa %s27, 0
    %29 = vsyncpa [#allocation5], 0
    loop: start=0, step=1, limit=4
    $region2: #{tpu_custom_call.1} parent=1 // loop_pre_header
      _
    $region3: #{tpu_custom_call.1} parent=1 // loop_header
      %s31 = sphi 0, %s35
      %p32 = scmp.ge.s32.totalorder %s31, 4
      %s39 = sphi 0, %s39
      %s41 = sphi 0, %s39
      %s42 = sphi 0, %s41
      %s56 = sphi 0, %s42
      %s60 = sphi 0, %s60
      %s62 = sphi 0, %s60
      %s63 = sphi 0, %s62
      %s77 = sphi 0, %s63
      %s81 = sphi 0, %s81
      %s83 = sphi 0, %s81
      %s84 = sphi 0, %s83
      %s98 = sphi 0, %s84
      %s102 = sphi 0, %s102
      %s104 = sphi 0, %s102
      %s105 = sphi 0, %s104
      %s119 = sphi 0, %s105
      %s123 = sphi 0, %s123
      %s125 = sphi 0, %s123
      %s126 = sphi 0, %s125
      %s140 = sphi 0, %s126
      %s146 = sphi 0, %s148
      %s149 = sphi 0, %s146
      %s150 = sphi 0, %s149
      %s166 = sphi 0, %s150
      %s172 = sphi 0, %s174
      %s175 = sphi 0, %s172
      %s176 = sphi 0, %s175
      %s192 = sphi 0, %s176
      %s198 = sphi 0, %s200
      %s201 = sphi 0, %s198
      %s202 = sphi 0, %s201
      %s218 = sphi 0, %s202
      %s224 = sphi 0, %s226
      %s227 = sphi 0, %s224
      %s228 = sphi 0, %s227
      %s244 = sphi 0, %s228
      %s250 = sphi 0, %s252
      %s253 = sphi 0, %s250
      %s254 = sphi 0, %s253
      %s270 = sphi 0, %s254
      %s276 = sphi 0, %s278
      %s279 = sphi 0, %s276
      %s280 = sphi 0, %s279
      %s296 = sphi 0, %s280
      %s302 = sphi 0, %s304
      %s305 = sphi 0, %s302
      %s306 = sphi 0, %s305
      %s322 = sphi 0, %s306
      %s328 = sphi 0, %s330
      %s331 = sphi 0, %s328
      %s332 = sphi 0, %s331
      %s348 = sphi 0, %s332
      %s354 = sphi 0, %s356
      %s357 = sphi 0, %s354
      %s358 = sphi 0, %s357
      %s374 = sphi 0, %s358
      %s380 = sphi 0, %s382
      %s383 = sphi 0, %s380
      %s384 = sphi 0, %s383
      %s400 = sphi 0, %s384
      %s406 = sphi 0, %s408
      %s409 = sphi 0, %s406
      %s410 = sphi 0, %s409
      %s426 = sphi 0, %s410
      %s432 = sphi 0, %s434
      %s435 = sphi 0, %s432
      %s436 = sphi 0, %s435
      %s452 = sphi 0, %s436
      %s456 = sphi 0, %s456
      %s458 = sphi 0, %s456
      %s459 = sphi 0, %s458
      %s473 = sphi 0, %s459
      %s477 = sphi 0, %s477
      %s479 = sphi 0, %s477
      %s480 = sphi 0, %s479
      %s494 = sphi 0, %s480
      %s498 = sphi 0, %s498
      %s500 = sphi 0, %s498
      %s501 = sphi 0, %s500
      %s515 = sphi 0, %s501
    $region4: #{tpu_custom_call.1} parent=1 // loop_header_branch
      %34 = sbr.rel (%p32) target = $region8
    $region5: #{tpu_custom_call.1} parent=1 // loop_body
      %s36 = ssub.s32 %s31, 1
      %s37 = ssub.s32 %s31, 2
      %s38 = sadd.s32 %s31, 1
      %s40 = sadd.s32 %s39, 1
      %p43 = scmp.eq.s32.totalorder %s31, 1
      %p44 = scmp.ne.s32.totalorder %s39, %s41
      %p45 = scmp.eq.s32.totalorder %s31, 0
      %p46 = por %p44, %p45
      %p47 = scmp.ne.s32.totalorder %s39, %s41
      %p48 = scmp.eq.s32.totalorder %s36, 1
      %p49 = por %p47, %p48
      %p50 = scmp.ne.s32.totalorder %s41, %s42
      %p51 = scmp.eq.s32.totalorder %s36, 0
      %p52 = por %p50, %p51
      %p53 = scmp.ne.s32.totalorder %s41, %s42
      %p54 = scmp.eq.s32.totalorder %s37, 1
      %p55 = por %p53, %p54
      %p57 = scmp.ne.s32.totalorder %s42, %s56
      %p58 = scmp.eq.s32.totalorder %s37, 0
      %p59 = por %p57, %p58
      %s61 = sadd.s32 %s60, 1
      %p64 = scmp.eq.s32.totalorder %s31, 1
      %p65 = scmp.ne.s32.totalorder %s60, %s62
      %p66 = scmp.eq.s32.totalorder %s31, 0
      %p67 = por %p65, %p66
      %p68 = scmp.ne.s32.totalorder %s60, %s62
      %p69 = scmp.eq.s32.totalorder %s36, 1
      %p70 = por %p68, %p69
      %p71 = scmp.ne.s32.totalorder %s62, %s63
      %p72 = scmp.eq.s32.totalorder %s36, 0
      %p73 = por %p71, %p72
      %p74 = scmp.ne.s32.totalorder %s62, %s63
      %p75 = scmp.eq.s32.totalorder %s37, 1
      %p76 = por %p74, %p75
      %p78 = scmp.ne.s32.totalorder %s63, %s77
      %p79 = scmp.eq.s32.totalorder %s37, 0
      %p80 = por %p78, %p79
      %s82 = sadd.s32 %s81, 1
      %p85 = scmp.eq.s32.totalorder %s31, 1
      %p86 = scmp.ne.s32.totalorder %s81, %s83
      %p87 = scmp.eq.s32.totalorder %s31, 0
      %p88 = por %p86, %p87
      %p89 = scmp.ne.s32.totalorder %s81, %s83
      %p90 = scmp.eq.s32.totalorder %s36, 1
      %p91 = por %p89, %p90
      %p92 = scmp.ne.s32.totalorder %s83, %s84
      %p93 = scmp.eq.s32.totalorder %s36, 0
      %p94 = por %p92, %p93
      %p95 = scmp.ne.s32.totalorder %s83, %s84
      %p96 = scmp.eq.s32.totalorder %s37, 1
      %p97 = por %p95, %p96
      %p99 = scmp.ne.s32.totalorder %s84, %s98
      %p100 = scmp.eq.s32.totalorder %s37, 0
      %p101 = por %p99, %p100
      %s103 = sadd.s32 %s102, 1
      %p106 = scmp.eq.s32.totalorder %s31, 1
      %p107 = scmp.ne.s32.totalorder %s102, %s104
      %p108 = scmp.eq.s32.totalorder %s31, 0
      %p109 = por %p107, %p108
      %p110 = scmp.ne.s32.totalorder %s102, %s104
      %p111 = scmp.eq.s32.totalorder %s36, 1
      %p112 = por %p110, %p111
      %p113 = scmp.ne.s32.totalorder %s104, %s105
      %p114 = scmp.eq.s32.totalorder %s36, 0
      %p115 = por %p113, %p114
      %p116 = scmp.ne.s32.totalorder %s104, %s105
      %p117 = scmp.eq.s32.totalorder %s37, 1
      %p118 = por %p116, %p117
      %p120 = scmp.ne.s32.totalorder %s105, %s119
      %p121 = scmp.eq.s32.totalorder %s37, 0
      %p122 = por %p120, %p121
      %s124 = sadd.s32 %s123, 1
      %p127 = scmp.eq.s32.totalorder %s31, 1
      %p128 = scmp.ne.s32.totalorder %s123, %s125
      %p129 = scmp.eq.s32.totalorder %s31, 0
      %p130 = por %p128, %p129
      %p131 = scmp.ne.s32.totalorder %s123, %s125
      %p132 = scmp.eq.s32.totalorder %s36, 1
      %p133 = por %p131, %p132
      %p134 = scmp.ne.s32.totalorder %s125, %s126
      %p135 = scmp.eq.s32.totalorder %s36, 0
      %p136 = por %p134, %p135
      %p137 = scmp.ne.s32.totalorder %s125, %s126
      %p138 = scmp.eq.s32.totalorder %s37, 1
      %p139 = por %p137, %p138
      %p141 = scmp.ne.s32.totalorder %s126, %s140
      %p142 = scmp.eq.s32.totalorder %s37, 0
      %p143 = por %p141, %p142
      %s144 = ssub.s32 %s31, %s38
      %p145 = scmp.eq.s32.totalorder %s144, 0
      %s147 = sadd.s32 %s146, 1
      %s148 = scalar_select %p145, %s146, %s147
      %p151 = pneg %p145
      %p152 = scmp.eq.s32.totalorder %s31, 1
      %p153 = por %p151, %p152
      %p154 = scmp.ne.s32.totalorder %s146, %s149
      %p155 = scmp.eq.s32.totalorder %s31, 0
      %p156 = por %p154, %p155
      %p157 = scmp.ne.s32.totalorder %s146, %s149
      %p158 = scmp.eq.s32.totalorder %s36, 1
      %p159 = por %p157, %p158
      %p160 = scmp.ne.s32.totalorder %s149, %s150
      %p161 = scmp.eq.s32.totalorder %s36, 0
      %p162 = por %p160, %p161
      %p163 = scmp.ne.s32.totalorder %s149, %s150
      %p164 = scmp.eq.s32.totalorder %s37, 1
      %p165 = por %p163, %p164
      %p167 = scmp.ne.s32.totalorder %s150, %s166
      %p168 = scmp.eq.s32.totalorder %s37, 0
      %p169 = por %p167, %p168
      %s170 = ssub.s32 %s31, %s38
      %p171 = scmp.eq.s32.totalorder %s170, 0
      %s173 = sadd.s32 %s172, 1
      %s174 = scalar_select %p171, %s172, %s173
      %p177 = pneg %p171
      %p178 = scmp.eq.s32.totalorder %s31, 1
      %p179 = por %p177, %p178
      %p180 = scmp.ne.s32.totalorder %s172, %s175
      %p181 = scmp.eq.s32.totalorder %s31, 0
      %p182 = por %p180, %p181
      %p183 = scmp.ne.s32.totalorder %s172, %s175
      %p184 = scmp.eq.s32.totalorder %s36, 1
      %p185 = por %p183, %p184
      %p186 = scmp.ne.s32.totalorder %s175, %s176
      %p187 = scmp.eq.s32.totalorder %s36, 0
      %p188 = por %p186, %p187
      %p189 = scmp.ne.s32.totalorder %s175, %s176
      %p190 = scmp.eq.s32.totalorder %s37, 1
      %p191 = por %p189, %p190
      %p193 = scmp.ne.s32.totalorder %s176, %s192
      %p194 = scmp.eq.s32.totalorder %s37, 0
      %p195 = por %p193, %p194
      %s196 = ssub.s32 %s31, %s38
      %p197 = scmp.eq.s32.totalorder %s196, 0
      %s199 = sadd.s32 %s198, 1
      %s200 = scalar_select %p197, %s198, %s199
      %p203 = pneg %p197
      %p204 = scmp.eq.s32.totalorder %s31, 1
      %p205 = por %p203, %p204
      %p206 = scmp.ne.s32.totalorder %s198, %s201
      %p207 = scmp.eq.s32.totalorder %s31, 0
      %p208 = por %p206, %p207
      %p209 = scmp.ne.s32.totalorder %s198, %s201
      %p210 = scmp.eq.s32.totalorder %s36, 1
      %p211 = por %p209, %p210
      %p212 = scmp.ne.s32.totalorder %s201, %s202
      %p213 = scmp.eq.s32.totalorder %s36, 0
      %p214 = por %p212, %p213
      %p215 = scmp.ne.s32.totalorder %s201, %s202
      %p216 = scmp.eq.s32.totalorder %s37, 1
      %p217 = por %p215, %p216
      %p219 = scmp.ne.s32.totalorder %s202, %s218
      %p220 = scmp.eq.s32.totalorder %s37, 0
      %p221 = por %p219, %p220
      %s222 = ssub.s32 %s31, %s38
      %p223 = scmp.eq.s32.totalorder %s222, 0
      %s225 = sadd.s32 %s224, 1
      %s226 = scalar_select %p223, %s224, %s225
      %p229 = pneg %p223
      %p230 = scmp.eq.s32.totalorder %s31, 1
      %p231 = por %p229, %p230
      %p232 = scmp.ne.s32.totalorder %s224, %s227
      %p233 = scmp.eq.s32.totalorder %s31, 0
      %p234 = por %p232, %p233
      %p235 = scmp.ne.s32.totalorder %s224, %s227
      %p236 = scmp.eq.s32.totalorder %s36, 1
      %p237 = por %p235, %p236
      %p238 = scmp.ne.s32.totalorder %s227, %s228
      %p239 = scmp.eq.s32.totalorder %s36, 0
      %p240 = por %p238, %p239
      %p241 = scmp.ne.s32.totalorder %s227, %s228
      %p242 = scmp.eq.s32.totalorder %s37, 1
      %p243 = por %p241, %p242
      %p245 = scmp.ne.s32.totalorder %s228, %s244
      %p246 = scmp.eq.s32.totalorder %s37, 0
      %p247 = por %p245, %p246
      %s248 = ssub.s32 %s31, %s38
      %p249 = scmp.eq.s32.totalorder %s248, 0
      %s251 = sadd.s32 %s250, 1
      %s252 = scalar_select %p249, %s250, %s251
      %p255 = pneg %p249
      %p256 = scmp.eq.s32.totalorder %s31, 1
      %p257 = por %p255, %p256
      %p258 = scmp.ne.s32.totalorder %s250, %s253
      %p259 = scmp.eq.s32.totalorder %s31, 0
      %p260 = por %p258, %p259
      %p261 = scmp.ne.s32.totalorder %s250, %s253
      %p262 = scmp.eq.s32.totalorder %s36, 1
      %p263 = por %p261, %p262
      %p264 = scmp.ne.s32.totalorder %s253, %s254
      %p265 = scmp.eq.s32.totalorder %s36, 0
      %p266 = por %p264, %p265
      %p267 = scmp.ne.s32.totalorder %s253, %s254
      %p268 = scmp.eq.s32.totalorder %s37, 1
      %p269 = por %p267, %p268
      %p271 = scmp.ne.s32.totalorder %s254, %s270
      %p272 = scmp.eq.s32.totalorder %s37, 0
      %p273 = por %p271, %p272
      %s274 = ssub.s32 %s31, %s38
      %p275 = scmp.eq.s32.totalorder %s274, 0
      %s277 = sadd.s32 %s276, 1
      %s278 = scalar_select %p275, %s276, %s277
      %p281 = pneg %p275
      %p282 = scmp.eq.s32.totalorder %s31, 1
      %p283 = por %p281, %p282
      %p284 = scmp.ne.s32.totalorder %s276, %s279
      %p285 = scmp.eq.s32.totalorder %s31, 0
      %p286 = por %p284, %p285
      %p287 = scmp.ne.s32.totalorder %s276, %s279
      %p288 = scmp.eq.s32.totalorder %s36, 1
      %p289 = por %p287, %p288
      %p290 = scmp.ne.s32.totalorder %s279, %s280
      %p291 = scmp.eq.s32.totalorder %s36, 0
      %p292 = por %p290, %p291
      %p293 = scmp.ne.s32.totalorder %s279, %s280
      %p294 = scmp.eq.s32.totalorder %s37, 1
      %p295 = por %p293, %p294
      %p297 = scmp.ne.s32.totalorder %s280, %s296
      %p298 = scmp.eq.s32.totalorder %s37, 0
      %p299 = por %p297, %p298
      %s300 = ssub.s32 %s31, %s38
      %p301 = scmp.eq.s32.totalorder %s300, 0
      %s303 = sadd.s32 %s302, 1
      %s304 = scalar_select %p301, %s302, %s303
      %p307 = pneg %p301
      %p308 = scmp.eq.s32.totalorder %s31, 1
      %p309 = por %p307, %p308
      %p310 = scmp.ne.s32.totalorder %s302, %s305
      %p311 = scmp.eq.s32.totalorder %s31, 0
      %p312 = por %p310, %p311
      %p313 = scmp.ne.s32.totalorder %s302, %s305
      %p314 = scmp.eq.s32.totalorder %s36, 1
      %p315 = por %p313, %p314
      %p316 = scmp.ne.s32.totalorder %s305, %s306
      %p317 = scmp.eq.s32.totalorder %s36, 0
      %p318 = por %p316, %p317
      %p319 = scmp.ne.s32.totalorder %s305, %s306
      %p320 = scmp.eq.s32.totalorder %s37, 1
      %p321 = por %p319, %p320
      %p323 = scmp.ne.s32.totalorder %s306, %s322
      %p324 = scmp.eq.s32.totalorder %s37, 0
      %p325 = por %p323, %p324
      %s326 = ssub.s32 %s31, %s38
      %p327 = scmp.eq.s32.totalorder %s326, 0
      %s329 = sadd.s32 %s328, 1
      %s330 = scalar_select %p327, %s328, %s329
      %p333 = pneg %p327
      %p334 = scmp.eq.s32.totalorder %s31, 1
      %p335 = por %p333, %p334
      %p336 = scmp.ne.s32.totalorder %s328, %s331
      %p337 = scmp.eq.s32.totalorder %s31, 0
      %p338 = por %p336, %p337
      %p339 = scmp.ne.s32.totalorder %s328, %s331
      %p340 = scmp.eq.s32.totalorder %s36, 1
      %p341 = por %p339, %p340
      %p342 = scmp.ne.s32.totalorder %s331, %s332
      %p343 = scmp.eq.s32.totalorder %s36, 0
      %p344 = por %p342, %p343
      %p345 = scmp.ne.s32.totalorder %s331, %s332
      %p346 = scmp.eq.s32.totalorder %s37, 1
      %p347 = por %p345, %p346
      %p349 = scmp.ne.s32.totalorder %s332, %s348
      %p350 = scmp.eq.s32.totalorder %s37, 0
      %p351 = por %p349, %p350
      %s352 = ssub.s32 %s31, %s38
      %p353 = scmp.eq.s32.totalorder %s352, 0
      %s355 = sadd.s32 %s354, 1
      %s356 = scalar_select %p353, %s354, %s355
      %p359 = pneg %p353
      %p360 = scmp.eq.s32.totalorder %s31, 1
      %p361 = por %p359, %p360
      %p362 = scmp.ne.s32.totalorder %s354, %s357
      %p363 = scmp.eq.s32.totalorder %s31, 0
      %p364 = por %p362, %p363
      %p365 = scmp.ne.s32.totalorder %s354, %s357
      %p366 = scmp.eq.s32.totalorder %s36, 1
      %p367 = por %p365, %p366
      %p368 = scmp.ne.s32.totalorder %s357, %s358
      %p369 = scmp.eq.s32.totalorder %s36, 0
      %p370 = por %p368, %p369
      %p371 = scmp.ne.s32.totalorder %s357, %s358
      %p372 = scmp.eq.s32.totalorder %s37, 1
      %p373 = por %p371, %p372
      %p375 = scmp.ne.s32.totalorder %s358, %s374
      %p376 = scmp.eq.s32.totalorder %s37, 0
      %p377 = por %p375, %p376
      %s378 = ssub.s32 %s31, %s38
      %p379 = scmp.eq.s32.totalorder %s378, 0
      %s381 = sadd.s32 %s380, 1
      %s382 = scalar_select %p379, %s380, %s381
      %p385 = pneg %p379
      %p386 = scmp.eq.s32.totalorder %s31, 1
      %p387 = por %p385, %p386
      %p388 = scmp.ne.s32.totalorder %s380, %s383
      %p389 = scmp.eq.s32.totalorder %s31, 0
      %p390 = por %p388, %p389
      %p391 = scmp.ne.s32.totalorder %s380, %s383
      %p392 = scmp.eq.s32.totalorder %s36, 1
      %p393 = por %p391, %p392
      %p394 = scmp.ne.s32.totalorder %s383, %s384
      %p395 = scmp.eq.s32.totalorder %s36, 0
      %p396 = por %p394, %p395
      %p397 = scmp.ne.s32.totalorder %s383, %s384
      %p398 = scmp.eq.s32.totalorder %s37, 1
      %p399 = por %p397, %p398
      %p401 = scmp.ne.s32.totalorder %s384, %s400
      %p402 = scmp.eq.s32.totalorder %s37, 0
      %p403 = por %p401, %p402
      %s404 = ssub.s32 %s31, %s38
      %p405 = scmp.eq.s32.totalorder %s404, 0
      %s407 = sadd.s32 %s406, 1
      %s408 = scalar_select %p405, %s406, %s407
      %p411 = pneg %p405
      %p412 = scmp.eq.s32.totalorder %s31, 1
      %p413 = por %p411, %p412
      %p414 = scmp.ne.s32.totalorder %s406, %s409
      %p415 = scmp.eq.s32.totalorder %s31, 0
      %p416 = por %p414, %p415
      %p417 = scmp.ne.s32.totalorder %s406, %s409
      %p418 = scmp.eq.s32.totalorder %s36, 1
      %p419 = por %p417, %p418
      %p420 = scmp.ne.s32.totalorder %s409, %s410
      %p421 = scmp.eq.s32.totalorder %s36, 0
      %p422 = por %p420, %p421
      %p423 = scmp.ne.s32.totalorder %s409, %s410
      %p424 = scmp.eq.s32.totalorder %s37, 1
      %p425 = por %p423, %p424
      %p427 = scmp.ne.s32.totalorder %s410, %s426
      %p428 = scmp.eq.s32.totalorder %s37, 0
      %p429 = por %p427, %p428
      %s430 = ssub.s32 %s31, %s38
      %p431 = scmp.eq.s32.totalorder %s430, 0
      %s433 = sadd.s32 %s432, 1
      %s434 = scalar_select %p431, %s432, %s433
      %p437 = pneg %p431
      %p438 = scmp.eq.s32.totalorder %s31, 1
      %p439 = por %p437, %p438
      %p440 = scmp.ne.s32.totalorder %s432, %s435
      %p441 = scmp.eq.s32.totalorder %s31, 0
      %p442 = por %p440, %p441
      %p443 = scmp.ne.s32.totalorder %s432, %s435
      %p444 = scmp.eq.s32.totalorder %s36, 1
      %p445 = por %p443, %p444
      %p446 = scmp.ne.s32.totalorder %s435, %s436
      %p447 = scmp.eq.s32.totalorder %s36, 0
      %p448 = por %p446, %p447
      %p449 = scmp.ne.s32.totalorder %s435, %s436
      %p450 = scmp.eq.s32.totalorder %s37, 1
      %p451 = por %p449, %p450
      %p453 = scmp.ne.s32.totalorder %s436, %s452
      %p454 = scmp.eq.s32.totalorder %s37, 0
      %p455 = por %p453, %p454
      %s457 = sadd.s32 %s456, 1
      %p460 = scmp.eq.s32.totalorder %s31, 1
      %p461 = scmp.ne.s32.totalorder %s456, %s458
      %p462 = scmp.eq.s32.totalorder %s31, 0
      %p463 = por %p461, %p462
      %p464 = scmp.ne.s32.totalorder %s456, %s458
      %p465 = scmp.eq.s32.totalorder %s36, 1
      %p466 = por %p464, %p465
      %p467 = scmp.ne.s32.totalorder %s458, %s459
      %p468 = scmp.eq.s32.totalorder %s36, 0
      %p469 = por %p467, %p468
      %p470 = scmp.ne.s32.totalorder %s458, %s459
      %p471 = scmp.eq.s32.totalorder %s37, 1
      %p472 = por %p470, %p471
      %p474 = scmp.ne.s32.totalorder %s459, %s473
      %p475 = scmp.eq.s32.totalorder %s37, 0
      %p476 = por %p474, %p475
      %s478 = sadd.s32 %s477, 1
      %p481 = scmp.eq.s32.totalorder %s31, 1
      %p482 = scmp.ne.s32.totalorder %s477, %s479
      %p483 = scmp.eq.s32.totalorder %s31, 0
      %p484 = por %p482, %p483
      %p485 = scmp.ne.s32.totalorder %s477, %s479
      %p486 = scmp.eq.s32.totalorder %s36, 1
      %p487 = por %p485, %p486
      %p488 = scmp.ne.s32.totalorder %s479, %s480
      %p489 = scmp.eq.s32.totalorder %s36, 0
      %p490 = por %p488, %p489
      %p491 = scmp.ne.s32.totalorder %s479, %s480
      %p492 = scmp.eq.s32.totalorder %s37, 1
      %p493 = por %p491, %p492
      %p495 = scmp.ne.s32.totalorder %s480, %s494
      %p496 = scmp.eq.s32.totalorder %s37, 0
      %p497 = por %p495, %p496
      %s499 = sadd.s32 %s498, 1
      %p502 = scmp.eq.s32.totalorder %s31, 1
      %p503 = scmp.ne.s32.totalorder %s498, %s500
      %p504 = scmp.eq.s32.totalorder %s31, 0
      %p505 = por %p503, %p504
      %p506 = scmp.ne.s32.totalorder %s498, %s500
      %p507 = scmp.eq.s32.totalorder %s36, 1
      %p508 = por %p506, %p507
      %p509 = scmp.ne.s32.totalorder %s500, %s501
      %p510 = scmp.eq.s32.totalorder %s36, 0
      %p511 = por %p509, %p510
      %p512 = scmp.ne.s32.totalorder %s500, %s501
      %p513 = scmp.eq.s32.totalorder %s37, 1
      %p514 = por %p512, %p513
      %p516 = scmp.ne.s32.totalorder %s501, %s515
      %p517 = scmp.eq.s32.totalorder %s37, 0
      %p518 = por %p516, %p517
      %p519 = scmp.le.s32.totalorder 1, %s31
      %p520 = scmp.lt.s32.totalorder %s31, 3
      %p521 = pnand %p519, %p520
      %p522 = pneg %p521
      // Predicated region
      $region9: #{tpu_custom_call.1} parent=5 // pred_check
        _
      $region10: #{tpu_custom_call.1} parent=5 // pred_check_branch
        %524 = sbr.rel (%p521) target = $region12
      $region11: #{tpu_custom_call.1} parent=5 // pred_region
        %s525 = ssub.s32 %s31, 1
        // Predicated region
        $region13: #{tpu_custom_call.1} parent=11 // pred_check
          %p526 = pneg %p52
        $region14: #{tpu_custom_call.1} parent=11 // pred_check_branch
          %528 = sbr.rel (%p526) target = $region16
        $region15: #{tpu_custom_call.1} parent=11 // pred_region
          %s530 = ssub.s32 256, 256
          %531 = vsyncadd [#allocation4], %s530
          %s532 = sshll.u32 [#allocation3], 4
          %s533 = int_to_ptr.vmem [resolvable:$true] %s532
          %538 = dma.hbm_to_vmem [thread:$0]  %s0, 256, %s533, [#allocation4], 128, 128, 8
        $region16: #{tpu_custom_call.1} parent=11 // pred_fallthru
          _
        // Predicated region
        $region17: #{tpu_custom_call.1} parent=11 // pred_check
          %p539 = pneg %p73
        $region18: #{tpu_custom_call.1} parent=11 // pred_check_branch
          %541 = sbr.rel (%p539) target = $region20
        $region19: #{tpu_custom_call.1} parent=11 // pred_region
          %s543 = ssub.s32 256, 256
          %544 = vsyncadd [#allocation7], %s543
          %s545 = sshll.u32 [#allocation6], 4
          %s546 = int_to_ptr.vmem [resolvable:$true] %s545
          %551 = dma.hbm_to_vmem [thread:$0]  %s1, 256, %s546, [#allocation7], 128, 128, 8
        $region20: #{tpu_custom_call.1} parent=11 // pred_fallthru
          _
        // Predicated region
        $region21: #{tpu_custom_call.1} parent=11 // pred_check
          %p552 = pneg %p94
        $region22: #{tpu_custom_call.1} parent=11 // pred_check_branch
          %554 = sbr.rel (%p552) target = $region24
        $region23: #{tpu_custom_call.1} parent=11 // pred_region
          _
        $region24: #{tpu_custom_call.1} parent=11 // pred_fallthru
          _
        // Predicated region
        $region25: #{tpu_custom_call.1} parent=11 // pred_check
          %p555 = pneg %p115
        $region26: #{tpu_custom_call.1} parent=11 // pred_check_branch
          %557 = sbr.rel (%p555) target = $region28
        $region27: #{tpu_custom_call.1} parent=11 // pred_region
          _
        $region28: #{tpu_custom_call.1} parent=11 // pred_fallthru
          _
        // Predicated region
        $region29: #{tpu_custom_call.1} parent=11 // pred_check
          %p558 = pneg %p136
        $region30: #{tpu_custom_call.1} parent=11 // pred_check_branch
          %560 = sbr.rel (%p558) target = $region32
        $region31: #{tpu_custom_call.1} parent=11 // pred_region
          %s562 = ssub.s32 256, 256
          %563 = vsyncadd [#allocation7], %s562
          %s564 = sshll.u32 [#allocation8], 4
          %s565 = int_to_ptr.vmem [resolvable:$true] %s564
          %570 = dma.hbm_to_vmem [thread:$0]  %s4, 256, %s565, [#allocation7], 128, 128, 8
        $region32: #{tpu_custom_call.1} parent=11 // pred_fallthru
          _
        // Predicated region
        $region33: #{tpu_custom_call.1} parent=11 // pred_check
          %p571 = pneg %p469
        $region34: #{tpu_custom_call.1} parent=11 // pred_check_branch
          %573 = sbr.rel (%p571) target = $region36
        $region35: #{tpu_custom_call.1} parent=11 // pred_region
          _
        $region36: #{tpu_custom_call.1} parent=11 // pred_fallthru
          _
        // Predicated region
        $region37: #{tpu_custom_call.1} parent=11 // pred_check
          %p574 = pneg %p490
        $region38: #{tpu_custom_call.1} parent=11 // pred_check_branch
          %576 = sbr.rel (%p574) target = $region40
        $region39: #{tpu_custom_call.1} parent=11 // pred_region
          _
        $region40: #{tpu_custom_call.1} parent=11 // pred_fallthru
          _
      $region12: #{tpu_custom_call.1} parent=5 // pred_fallthru
        _
      %p577 = scmp.lt.s32.totalorder %s31, 2
      // Predicated region
      $region41: #{tpu_custom_call.1} parent=5 // pred_check
        %p578 = pneg %p577
      $region42: #{tpu_custom_call.1} parent=5 // pred_check_branch
        %580 = sbr.rel (%p578) target = $region44
      $region43: #{tpu_custom_call.1} parent=5 // pred_region
        // Predicated region
        $region45: #{tpu_custom_call.1} parent=43 // pred_check
          %p581 = pneg %p156
        $region46: #{tpu_custom_call.1} parent=43 // pred_check_branch
          %583 = sbr.rel (%p581) target = $region48
        $region47: #{tpu_custom_call.1} parent=43 // pred_region
          %p584 = scmp.lt.s32.totalorder %s31, 1
          %s585 = scalar_select %p584, %s31, 1
          %s586 = smul.addr %s585, 4
          %s587 = smul.addr %s586, 8
          %s588 = scalar_lea.vmem %s5, %s587
        $region48: #{tpu_custom_call.1} parent=43 // pred_fallthru
          _
        // Predicated region
        $region49: #{tpu_custom_call.1} parent=43 // pred_check
          %p589 = pneg %p182
        $region50: #{tpu_custom_call.1} parent=43 // pred_check_branch
          %591 = sbr.rel (%p589) target = $region52
        $region51: #{tpu_custom_call.1} parent=43 // pred_region
          %p592 = scmp.lt.s32.totalorder %s31, 1
          %s593 = scalar_select %p592, %s31, 1
          %s594 = scalar_lea.vmem %s6, %s593
        $region52: #{tpu_custom_call.1} parent=43 // pred_fallthru
          _
        // Predicated region
        $region53: #{tpu_custom_call.1} parent=43 // pred_check
          %p595 = pneg %p208
        $region54: #{tpu_custom_call.1} parent=43 // pred_check_branch
          %597 = sbr.rel (%p595) target = $region56
        $region55: #{tpu_custom_call.1} parent=43 // pred_region
          %p598 = scmp.lt.s32.totalorder %s31, 1
          %s599 = scalar_select %p598, %s31, 1
          %s600 = smul.addr %s599, 4
          %s601 = smul.addr %s600, 8
          %s602 = scalar_lea.vmem %s7, %s601
        $region56: #{tpu_custom_call.1} parent=43 // pred_fallthru
          _
        // Predicated region
        $region57: #{tpu_custom_call.1} parent=43 // pred_check
          %p603 = pneg %p234
        $region58: #{tpu_custom_call.1} parent=43 // pred_check_branch
          %605 = sbr.rel (%p603) target = $region60
        $region59: #{tpu_custom_call.1} parent=43 // pred_region
          %p606 = scmp.lt.s32.totalorder %s31, 1
          %s607 = scalar_select %p606, %s31, 1
          %s608 = scalar_lea.vmem %s8, %s607
        $region60: #{tpu_custom_call.1} parent=43 // pred_fallthru
          _
        // Predicated region
        $region61: #{tpu_custom_call.1} parent=43 // pred_check
          %p609 = pneg %p260
        $region62: #{tpu_custom_call.1} parent=43 // pred_check_branch
          %611 = sbr.rel (%p609) target = $region64
        $region63: #{tpu_custom_call.1} parent=43 // pred_region
          %p612 = scmp.lt.s32.totalorder %s31, 1
          %s613 = scalar_select %p612, %s31, 1
          %s614 = scalar_lea.vmem %s9, %s613
        $region64: #{tpu_custom_call.1} parent=43 // pred_fallthru
          _
        // Predicated region
        $region65: #{tpu_custom_call.1} parent=43 // pred_check
          %p615 = pneg %p286
        $region66: #{tpu_custom_call.1} parent=43 // pred_check_branch
          %617 = sbr.rel (%p615) target = $region68
        $region67: #{tpu_custom_call.1} parent=43 // pred_region
          %p618 = scmp.lt.s32.totalorder %s31, 1
          %s619 = scalar_select %p618, %s31, 1
          %s620 = scalar_lea.vmem %s10, %s619
        $region68: #{tpu_custom_call.1} parent=43 // pred_fallthru
          _
        // Predicated region
        $region69: #{tpu_custom_call.1} parent=43 // pred_check
          %p621 = pneg %p312
        $region70: #{tpu_custom_call.1} parent=43 // pred_check_branch
          %623 = sbr.rel (%p621) target = $region72
        $region71: #{tpu_custom_call.1} parent=43 // pred_region
          %p624 = scmp.lt.s32.totalorder %s31, 1
          %s625 = scalar_select %p624, %s31, 1
          %s626 = scalar_lea.vmem %s11, %s625
        $region72: #{tpu_custom_call.1} parent=43 // pred_fallthru
          _
        // Predicated region
        $region73: #{tpu_custom_call.1} parent=43 // pred_check
          %p627 = pneg %p338
        $region74: #{tpu_custom_call.1} parent=43 // pred_check_branch
          %629 = sbr.rel (%p627) target = $region76
        $region75: #{tpu_custom_call.1} parent=43 // pred_region
          %p630 = scmp.lt.s32.totalorder %s31, 1
          %s631 = scalar_select %p630, %s31, 1
          %s632 = scalar_lea.vmem %s12, %s631
        $region76: #{tpu_custom_call.1} parent=43 // pred_fallthru
          _
        // Predicated region
        $region77: #{tpu_custom_call.1} parent=43 // pred_check
          %p633 = pneg %p364
        $region78: #{tpu_custom_call.1} parent=43 // pred_check_branch
          %635 = sbr.rel (%p633) target = $region80
        $region79: #{tpu_custom_call.1} parent=43 // pred_region
          %s636 = sand.u32 %s31, 1
          %s637 = scalar_lea.sflag [#allocation10], %s636
          %s638 = sand.u32 %s354, 1
          %s639 = smul.addr %s638, 256
          %s640 = scalar_lea.vmem [#allocation9], %s639
          %s642 = ssub.s32 4096, 4096
          %643 = vsyncadd %s637, %s642
          %s644 = smul.addr %s31, 64
          %s645 = smul.addr %s644, 64
          %s646 = scalar_lea.hbm %s13, %s645
          %s647 = sshll.u32 %s640, 4
          %s648 = int_to_ptr.vmem [resolvable:$true] %s647
          %653 = dma.hbm_to_vmem [thread:$0]  %s646, 4096, %s648, %s637, 1024, 1024, 64
        $region80: #{tpu_custom_call.1} parent=43 // pred_fallthru
          _
        // Predicated region
        $region81: #{tpu_custom_call.1} parent=43 // pred_check
          %p654 = pneg %p390
        $region82: #{tpu_custom_call.1} parent=43 // pred_check_branch
          %656 = sbr.rel (%p654) target = $region84
        $region83: #{tpu_custom_call.1} parent=43 // pred_region
          %p657 = scmp.lt.s32.totalorder %s31, 1
          %s658 = scalar_select %p657, %s31, 1
          %s659 = smul.addr %s658, 16
          %s660 = scalar_lea.vmem %s14, %s659
        $region84: #{tpu_custom_call.1} parent=43 // pred_fallthru
          _
        // Predicated region
        $region85: #{tpu_custom_call.1} parent=43 // pred_check
          %p661 = pneg %p416
        $region86: #{tpu_custom_call.1} parent=43 // pred_check_branch
          %663 = sbr.rel (%p661) target = $region88
        $region87: #{tpu_custom_call.1} parent=43 // pred_region
          %s664 = sand.u32 %s31, 1
          %s665 = scalar_lea.sflag [#allocation10], %s664
          %s666 = sand.u32 %s406, 1
          %s667 = smul.addr %s666, 256
          %s668 = scalar_lea.vmem [#allocation11], %s667
          %s670 = ssub.s32 4096, 4096
          %671 = vsyncadd %s665, %s670
          %s672 = smul.addr %s31, 64
          %s673 = smul.addr %s672, 64
          %s674 = scalar_lea.hbm %s15, %s673
          %s675 = sshll.u32 %s668, 4
          %s676 = int_to_ptr.vmem [resolvable:$true] %s675
          %681 = dma.hbm_to_vmem [thread:$0]  %s674, 4096, %s676, %s665, 1024, 1024, 64
        $region88: #{tpu_custom_call.1} parent=43 // pred_fallthru
          _
        // Predicated region
        $region89: #{tpu_custom_call.1} parent=43 // pred_check
          %p682 = pneg %p442
        $region90: #{tpu_custom_call.1} parent=43 // pred_check_branch
          %684 = sbr.rel (%p682) target = $region92
        $region91: #{tpu_custom_call.1} parent=43 // pred_region
          %p685 = scmp.lt.s32.totalorder %s31, 1
          %s686 = scalar_select %p685, %s31, 1
          %s687 = scalar_lea.vmem %s16, %s686
        $region92: #{tpu_custom_call.1} parent=43 // pred_fallthru
          _
      $region44: #{tpu_custom_call.1} parent=5 // pred_fallthru
        _
      %p688 = scmp.le.s32.totalorder 1, %s31
      %p689 = scmp.lt.s32.totalorder %s31, 3
      %p690 = pnand %p688, %p689
      %p691 = pneg %p690
      // Predicated region
      $region93: #{tpu_custom_call.1} parent=5 // pred_check
        _
      $region94: #{tpu_custom_call.1} parent=5 // pred_check_branch
        %693 = sbr.rel (%p690) target = $region96
      $region95: #{tpu_custom_call.1} parent=5 // pred_region
        %s694 = ssub.s32 %s31, 1
        // Predicated region
        $region97: #{tpu_custom_call.1} parent=95 // pred_check
          %p695 = pneg %p52
        $region98: #{tpu_custom_call.1} parent=95 // pred_check_branch
          %697 = sbr.rel (%p695) target = $region100
        $region99: #{tpu_custom_call.1} parent=95 // pred_region
          %698 = dma.done [#allocation4], 256
        $region100: #{tpu_custom_call.1} parent=95 // pred_fallthru
          _
        // Predicated region
        $region101: #{tpu_custom_call.1} parent=95 // pred_check
          %p699 = pneg %p73
        $region102: #{tpu_custom_call.1} parent=95 // pred_check_branch
          %701 = sbr.rel (%p699) target = $region104
        $region103: #{tpu_custom_call.1} parent=95 // pred_region
          %702 = dma.done [#allocation7], 256
        $region104: #{tpu_custom_call.1} parent=95 // pred_fallthru
          _
        // Predicated region
        $region105: #{tpu_custom_call.1} parent=95 // pred_check
          %p703 = pneg %p136
        $region106: #{tpu_custom_call.1} parent=95 // pred_check_branch
          %705 = sbr.rel (%p703) target = $region108
        $region107: #{tpu_custom_call.1} parent=95 // pred_region
          %706 = dma.done [#allocation7], 256
        $region108: #{tpu_custom_call.1} parent=95 // pred_fallthru
          _
        %s707 = sand.u32 %s36, 1
        %s708 = scalar_lea.sflag [#allocation10], %s707
        %s709 = sand.u32 %s357, 1
        %s710 = smul.addr %s709, 256
        %s711 = scalar_lea.vmem [#allocation9], %s710
        // Predicated region
        $region109: #{tpu_custom_call.1} parent=95 // pred_check
          %p712 = pneg %p370
        $region110: #{tpu_custom_call.1} parent=95 // pred_check_branch
          %714 = sbr.rel (%p712) target = $region112
        $region111: #{tpu_custom_call.1} parent=95 // pred_region
          %715 = dma.done %s708, 4096
        $region112: #{tpu_custom_call.1} parent=95 // pred_fallthru
          _
        %s716 = sand.u32 %s36, 1
        %s717 = scalar_lea.sflag [#allocation10], %s716
        %s718 = sand.u32 %s409, 1
        %s719 = smul.addr %s718, 256
        %s720 = scalar_lea.vmem [#allocation11], %s719
        // Predicated region
        $region113: #{tpu_custom_call.1} parent=95 // pred_check
          %p721 = pneg %p422
        $region114: #{tpu_custom_call.1} parent=95 // pred_check_branch
          %723 = sbr.rel (%p721) target = $region116
        $region115: #{tpu_custom_call.1} parent=95 // pred_region
          %724 = dma.done %s717, 4096
        $region116: #{tpu_custom_call.1} parent=95 // pred_fallthru
          _
        %p725 = pneg %p52
        %p726 = pneg %p49
        %p727 = pneg %p73
        %p728 = pneg %p70
        %p729 = pneg %p94
        %p730 = pneg %p91
        %p731 = pneg %p115
        %p732 = pneg %p112
        %p733 = pneg %p136
        %p734 = pneg %p133
        %p735 = scmp.lt.s32.totalorder %s36, 1
        %s736 = scalar_select %p735, %s36, 1
        %s737 = smul.addr %s736, 4
        %s738 = smul.addr %s737, 8
        %s739 = scalar_lea.vmem %s5, %s738
        %p740 = pneg %p162
        %p741 = pneg %p159
        %p742 = scmp.lt.s32.totalorder %s36, 1
        %s743 = scalar_select %p742, %s36, 1
        %s744 = scalar_lea.vmem %s6, %s743
        %p745 = pneg %p188
        %p746 = pneg %p185
        %p747 = scmp.lt.s32.totalorder %s36, 1
        %s748 = scalar_select %p747, %s36, 1
        %s749 = smul.addr %s748, 4
        %s750 = smul.addr %s749, 8
        %s751 = scalar_lea.vmem %s7, %s750
        %p752 = pneg %p214
        %p753 = pneg %p211
        %p754 = scmp.lt.s32.totalorder %s36, 1
        %s755 = scalar_select %p754, %s36, 1
        %s756 = scalar_lea.vmem %s8, %s755
        %p757 = pneg %p240
        %p758 = pneg %p237
        %p759 = scmp.lt.s32.totalorder %s36, 1
        %s760 = scalar_select %p759, %s36, 1
        %s761 = scalar_lea.vmem %s9, %s760
        %p762 = pneg %p266
        %p763 = pneg %p263
        %p764 = scmp.lt.s32.totalorder %s36, 1
        %s765 = scalar_select %p764, %s36, 1
        %s766 = scalar_lea.vmem %s10, %s765
        %p767 = pneg %p292
        %p768 = pneg %p289
        %p769 = scmp.lt.s32.totalorder %s36, 1
        %s770 = scalar_select %p769, %s36, 1
        %s771 = scalar_lea.vmem %s11, %s770
        %p772 = pneg %p318
        %p773 = pneg %p315
        %p774 = scmp.lt.s32.totalorder %s36, 1
        %s775 = scalar_select %p774, %s36, 1
        %s776 = scalar_lea.vmem %s12, %s775
        %p777 = pneg %p344
        %p778 = pneg %p341
        %s779 = sand.u32 %s36, 1
        %s780 = scalar_lea.sflag [#allocation10], %s779
        %s781 = sand.u32 %s357, 1
        %s782 = smul.addr %s781, 256
        %s783 = scalar_lea.vmem [#allocation9], %s782
        %p784 = pneg %p370
        %p785 = pneg %p367
        %p786 = scmp.lt.s32.totalorder %s36, 1
        %s787 = scalar_select %p786, %s36, 1
        %s788 = smul.addr %s787, 16
        %s789 = scalar_lea.vmem %s14, %s788
        %p790 = pneg %p396
        %p791 = pneg %p393
        %s792 = sand.u32 %s36, 1
        %s793 = scalar_lea.sflag [#allocation10], %s792
        %s794 = sand.u32 %s409, 1
        %s795 = smul.addr %s794, 256
        %s796 = scalar_lea.vmem [#allocation11], %s795
        %p797 = pneg %p422
        %p798 = pneg %p419
        %p799 = scmp.lt.s32.totalorder %s36, 1
        %s800 = scalar_select %p799, %s36, 1
        %s801 = scalar_lea.vmem %s16, %s800
        %p802 = pneg %p448
        %p803 = pneg %p445
        %p804 = pneg %p469
        %p805 = pneg %p466
        %p806 = pneg %p490
        %p807 = pneg %p487
        %p808 = pneg %p511
        %p809 = pneg %p508
        %p810 = scmp.lt.s32.totalorder %s36, 1
        %s811 = scalar_select %p810, %s36, 1
        %s812 = smul.addr %s811, 4
        %s813 = smul.addr %s812, 8
        %s814 = scalar_lea.vmem %s5, %s813
        %p815 = scmp.lt.s32.totalorder %s36, 1
        %s816 = scalar_select %p815, %s36, 1
        %s817 = scalar_lea.vmem %s6, %s816
        %p818 = scmp.lt.s32.totalorder %s36, 1
        %s819 = scalar_select %p818, %s36, 1
        %s820 = smul.addr %s819, 4
        %s821 = smul.addr %s820, 8
        %s822 = scalar_lea.vmem %s7, %s821
        %p823 = scmp.lt.s32.totalorder %s36, 1
        %s824 = scalar_select %p823, %s36, 1
        %s825 = scalar_lea.vmem %s8, %s824
        %p826 = scmp.lt.s32.totalorder %s36, 1
        %s827 = scalar_select %p826, %s36, 1
        %s828 = scalar_lea.vmem %s9, %s827
        %p829 = scmp.lt.s32.totalorder %s36, 1
        %s830 = scalar_select %p829, %s36, 1
        %s831 = scalar_lea.vmem %s10, %s830
        %p832 = scmp.lt.s32.totalorder %s36, 1
        %s833 = scalar_select %p832, %s36, 1
        %s834 = scalar_lea.vmem %s11, %s833
        %p835 = scmp.lt.s32.totalorder %s36, 1
        %s836 = scalar_select %p835, %s36, 1
        %s837 = scalar_lea.vmem %s12, %s836
        %p838 = scmp.lt.s32.totalorder %s36, 1
        %s839 = scalar_select %p838, %s36, 1
        %s840 = smul.addr %s839, 16
        %s841 = scalar_lea.vmem %s14, %s840
        %p842 = scmp.lt.s32.totalorder %s36, 1
        %s843 = scalar_select %p842, %s36, 1
        %s844 = scalar_lea.vmem %s16, %s843
        %p846 = scmp.eq.s32.totalorder %s36, 0
        // Predicated region
        $region117: #{tpu_custom_call.1} parent=95 // pred_check
          %p847 = pneg %p846
        $region118: #{tpu_custom_call.1} parent=95 // pred_check_branch
          %849 = sbr.rel (%p847) target = $region120
        $region119: #{tpu_custom_call.1} parent=95 // pred_region
          %v850 = vld [vmem:[#allocation3] sm:$0xff]
          %v851 = vld [vmem:[#allocation3 + $0x8] sm:$0xff]
          %v852 = vld [vmem:[#allocation6] sm:$0xff]
          %v853 = vld [vmem:[#allocation6 + $0x8] sm:$0xff]
          %v854 = vld [vmem:[#allocation8] sm:$0xff]
          %v855 = vld [vmem:[#allocation8 + $0x8] sm:$0xf]
          %vm856 = vcmask 97280
          %v858 = vsel %vm856, %v852, 0
          %v861 = vsel %vm856, %v853, 0
          %vm863 = vcmask 1043456
          %v865 = vsel %vm863, %v855, 0
          %867 = vmatprep.subr.mxu0 0.0
          %868 = vmatpush1.msra.mxu0 %v854
          %869 = vmatprep.subr.mxu0 0.0
          %870 = vmatpush1.msra.mxu0 %v865
          %871 = vmatprep.subr.mxu0 0.0
          %872 = vmatpush1.msra.mxu0 0.0
          %873 = vmatprep.subr.mxu0 0.0
          %874 = vmatpush1.msra.mxu0 0.0
          %875 = vmatprep.subr.mxu0 0.0
          %876 = vmatpush1.msra.mxu0 0.0
          %877 = vmatprep.subr.mxu0 0.0
          %878 = vmatpush1.msra.mxu0 0.0
          %879 = vmatprep.subr.mxu0 0.0
          %880 = vmatpush1.msra.mxu0 0.0
          %881 = vmatprep.subr.mxu0 0.0
          %882 = vmatpush1.msra.mxu0 0.0
          %883 = vmatprep.subr.mxu0 0.0
          %884 = vmatpush1.msra.mxu0 0.0
          %885 = vmatprep.subr.mxu0 0.0
          %886 = vmatpush1.msra.mxu0 0.0
          %887 = vmatprep.subr.mxu0 0.0
          %888 = vmatpush1.msra.mxu0 0.0
          %889 = vmatprep.subr.mxu0 0.0
          %890 = vmatpush1.msra.mxu0 0.0
          %891 = vmatprep.subr.mxu0 0.0
          %892 = vmatpush1.msra.mxu0 0.0
          %893 = vmatprep.subr.mxu0 0.0
          %894 = vmatpush1.msra.mxu0 0.0
          %895 = vmatprep.subr.mxu0 0.0
          %896 = vmatpush1.msra.mxu0 0.0
          %897 = vmatprep.subr.mxu0 0.0
          %898 = vmatpush1.msra.mxu0 0.0
          %899 = vmatprep.subr.mxu0 0.0
          %900 = vmatpush1.msra.mxu0 0.0
          %901 = vmatprep.subr.mxu0 0.0
          %902 = vmatpush1.msra.mxu0 0.0
          %903 = vmatprep.subr.mxu0 0.0
          %904 = vmatpush1.msra.mxu0 0.0
          %905 = vmatprep.subr.mxu0 0.0
          %906 = vmatpush1.msra.mxu0 0.0
          %907 = vmatprep.subr.mxu0 0.0
          %908 = vmatpush1.msra.mxu0 0.0
          %909 = vmatprep.subr.mxu0 0.0
          %910 = vmatpush1.msra.mxu0 0.0
          %911 = vmatprep.subr.mxu0 0.0
          %912 = vmatpush1.msra.mxu0 0.0
          %913 = vmatprep.subr.mxu0 0.0
          %914 = vmatpush1.msra.mxu0 0.0
          %915 = vmatprep.subr.mxu0 0.0
          %916 = vmatpush1.msra.mxu0 0.0
          %917 = vmatprep.subr.mxu0 0.0
          %918 = vmatpush1.msra.mxu0 0.0
          %919 = vmatprep.subr.mxu0 0.0
          %920 = vmatpush1.msra.mxu0 0.0
          %921 = vmatprep.subr.mxu0 0.0
          %922 = vmatpush1.msra.mxu0 0.0
          %923 = vmatprep.subr.mxu0 0.0
          %924 = vmatpush1.msra.mxu0 0.0
          %925 = vmatprep.subr.mxu0 0.0
          %926 = vmatpush1.msra.mxu0 0.0
          %927 = vmatprep.subr.mxu0 0.0
          %928 = vmatpush1.msra.mxu0 0.0
          %929 = vmatprep.subr.mxu0 0.0
          %930 = vmatpush1.msra.mxu0 0.0
          %931 = vmatprep.mubr.f32.mxu0 0.0
          %932 = vmatmul.mubr.f32.gmra.mrb[0].mxu0 %v858
          %v933 = vpop.f32.mrb[0].mxu0
          %v934 = vadd.f32 0.0, %v933
          %v935 = vpop.f32.mrb[0].mxu0
          %936 = vmatprep.mubr.f32.mxu0 0.0
          %937 = vmatmul.mubr.f32.gmra.mrb[0].mxu0 %v861
          %v938 = vpop.f32.mrb[0].mxu0
          %v939 = vadd.f32 0.0, %v938
          %v940 = vpop.f32.mrb[0].mxu0
          %941 = vdwg.mxu0
          %v942 = vadd.f32 %v850, %v934
          %v943 = vadd.f32 %v851, %v939
          %vm944 = vcmask 261120
          %945 = vst.msk [vmem:[#allocation2] sm:$0xff] %vm944, %v942
          %946 = vst.msk [vmem:[#allocation2 + $0x8] sm:$0xff] %vm944, %v943
        $region120: #{tpu_custom_call.1} parent=95 // pred_fallthru
          _
        %v947 = vld [vmem:[#allocation2] sm:$0xff]
        %v948 = vld [vmem:[#allocation2 + $0x8] sm:$0xff]
        %v949 = vld [vmem:[%s814] sm:$0xff]
        %v950 = vld [vmem:[%s814 + $0x8] sm:$0xff]
        %v951 = vld [vmem:[%s814 + $0x10] sm:$0xff]
        %v952 = vld [vmem:[%s814 + $0x18] sm:$0xff]
        %v953 = vld [vmem:[%s817] sm:$0x1]
        %v955 = vlaneseq
        %v956 = vshrl.u32 %v955, 7
        %v957 = vsub.s32 0, %v956
        %v958 = vrot.slane %v953, %v957
        %vm960 = vcmask 261120
        %v962 = vsel %vm960, %v947, 0
        %v965 = vsel %vm960, %v948, 0
        %967 = vmatprep.subr.mxu0 0.0
        %968 = vmatpush1.msra.mxu0 %v949
        %969 = vmatprep.subr.mxu0 0.0
        %970 = vmatpush1.msra.mxu0 %v950
        %971 = vmatprep.subr.mxu0 0.0
        %972 = vmatpush1.msra.mxu0 %v951
        %973 = vmatprep.subr.mxu0 0.0
        %974 = vmatpush1.msra.mxu0 %v952
        %975 = vmatprep.subr.mxu0 0.0
        %976 = vmatpush1.msra.mxu0 0.0
        %977 = vmatprep.subr.mxu0 0.0
        %978 = vmatpush1.msra.mxu0 0.0
        %979 = vmatprep.subr.mxu0 0.0
        %980 = vmatpush1.msra.mxu0 0.0
        %981 = vmatprep.subr.mxu0 0.0
        %982 = vmatpush1.msra.mxu0 0.0
        %983 = vmatprep.subr.mxu0 0.0
        %984 = vmatpush1.msra.mxu0 0.0
        %985 = vmatprep.subr.mxu0 0.0
        %986 = vmatpush1.msra.mxu0 0.0
        %987 = vmatprep.subr.mxu0 0.0
        %988 = vmatpush1.msra.mxu0 0.0
        %989 = vmatprep.subr.mxu0 0.0
        %990 = vmatpush1.msra.mxu0 0.0
        %991 = vmatprep.subr.mxu0 0.0
        %992 = vmatpush1.msra.mxu0 0.0
        %993 = vmatprep.subr.mxu0 0.0
        %994 = vmatpush1.msra.mxu0 0.0
        %995 = vmatprep.subr.mxu0 0.0
        %996 = vmatpush1.msra.mxu0 0.0
        %997 = vmatprep.subr.mxu0 0.0
        %998 = vmatpush1.msra.mxu0 0.0
        %999 = vmatprep.subr.mxu0 0.0
        %1000 = vmatpush1.msra.mxu0 0.0
        %1001 = vmatprep.subr.mxu0 0.0
        %1002 = vmatpush1.msra.mxu0 0.0
        %1003 = vmatprep.subr.mxu0 0.0
        %1004 = vmatpush1.msra.mxu0 0.0
        %1005 = vmatprep.subr.mxu0 0.0
        %1006 = vmatpush1.msra.mxu0 0.0
        %1007 = vmatprep.subr.mxu0 0.0
        %1008 = vmatpush1.msra.mxu0 0.0
        %1009 = vmatprep.subr.mxu0 0.0
        %1010 = vmatpush1.msra.mxu0 0.0
        %1011 = vmatprep.subr.mxu0 0.0
        %1012 = vmatpush1.msra.mxu0 0.0
        %1013 = vmatprep.subr.mxu0 0.0
        %1014 = vmatpush1.msra.mxu0 0.0
        %1015 = vmatprep.subr.mxu0 0.0
        %1016 = vmatpush1.msra.mxu0 0.0
        %1017 = vmatprep.subr.mxu0 0.0
        %1018 = vmatpush1.msra.mxu0 0.0
        %1019 = vmatprep.subr.mxu0 0.0
        %1020 = vmatpush1.msra.mxu0 0.0
        %1021 = vmatprep.subr.mxu0 0.0
        %1022 = vmatpush1.msra.mxu0 0.0
        %1023 = vmatprep.subr.mxu0 0.0
        %1024 = vmatpush1.msra.mxu0 0.0
        %1025 = vmatprep.subr.mxu0 0.0
        %1026 = vmatpush1.msra.mxu0 0.0
        %1027 = vmatprep.subr.mxu0 0.0
        %1028 = vmatpush1.msra.mxu0 0.0
        %1029 = vmatprep.subr.mxu0 0.0
        %1030 = vmatpush1.msra.mxu0 0.0
        %1031 = vmatprep.mubr.f32.mxu0 0.0
        %1032 = vmatmul.mubr.f32.gmra.mrb[0].mxu0 %v962
        %v1033 = vpop.f32.mrb[0].mxu0
        %v1034 = vadd.f32 %v958, %v1033
        %v1035 = vpop.f32.mrb[0].mxu0
        %1036 = vmatprep.mubr.f32.mxu0 0.0
        %1037 = vmatmul.mubr.f32.gmra.mrb[0].mxu0 %v965
        %v1038 = vpop.f32.mrb[0].mxu0
        %v1039 = vadd.f32 %v958, %v1038
        %v1040 = vpop.f32.mrb[0].mxu0
        %1041 = vdwg.mxu0
        %v1042 = vmul.f32 %v1034, 0.35355338
        %v1043 = vmul.f32 %v1039, 0.35355338
        %v1044 = vld [vmem:[%s2] sm:$0xff]
        %v1045 = vld [vmem:[%s2 + $0x8] sm:$0xff]
        %v1046 = vld [vmem:[%s2 + $0x10] sm:$0xff]
        %v1047 = vld [vmem:[%s2 + $0x18] sm:$0xff]
        %v1048 = vld [vmem:[%s2 + $0x20] sm:$0xff]
        %v1049 = vld [vmem:[%s2 + $0x28] sm:$0xff]
        %v1050 = vld [vmem:[%s2 + $0x30] sm:$0xff]
        %v1051 = vld [vmem:[%s2 + $0x38] sm:$0xff]
        %v1052 = vmul.f32 %v1042, %v1044
        %v1053 = vmul.f32 %v1043, %v1045
        %v1054 = vmul.f32 %v1042, %v1046
        %v1055 = vmul.f32 %v1043, %v1047
        %v1056 = vmul.f32 %v1042, %v1048
        %v1057 = vmul.f32 %v1043, %v1049
        %v1058 = vmul.f32 %v1042, %v1050
        %v1059 = vmul.f32 %v1043, %v1051
        %v1060 = vld [vmem:[%s3] sm:$0xff]
        %v1061 = vld [vmem:[%s3 + $0x8] sm:$0xff]
        %v1062 = vld [vmem:[%s3 + $0x10] sm:$0xff]
        %v1063 = vld [vmem:[%s3 + $0x18] sm:$0xff]
        %v1064 = vld [vmem:[%s3 + $0x20] sm:$0xff]
        %v1065 = vld [vmem:[%s3 + $0x28] sm:$0xff]
        %v1066 = vld [vmem:[%s3 + $0x30] sm:$0xff]
        %v1067 = vld [vmem:[%s3 + $0x38] sm:$0xff]
        %1070 = vrot.lane.b32.xlu0 %v1034, 96
        %v1071 = vpop.permute.xlu0 %1070
        %1072 = vrot.lane.b32.xlu0 %v1039, 96
        %v1073 = vpop.permute.xlu0 %1072
        %v1075 = vsel %vm960, %v1052, 0
        %v1078 = vsel %vm960, %v1053, 0
        %v1081 = vsel %vm960, %v1054, 0
        %v1084 = vsel %vm960, %v1055, 0
        %v1087 = vsel %vm960, %v1056, 0
        %v1090 = vsel %vm960, %v1057, 0
        %v1093 = vsel %vm960, %v1058, 0
        %v1096 = vsel %vm960, %v1059, 0
        %v1098 = vsel %vm960, %v1071, 0
        %v1100 = vsel %vm960, %v1073, 0
        %1102 = vmatprep.subr.mxu0 0.0
        %1103 = vmatpush1.xpose.msra.mxu0 %v1098
        %1104 = vmatprep.subr.mxu0 0.0
        %1105 = vmatpush1.xpose.msra.mxu0 %v1100
        %1106 = vmatprep.subr.mxu0 0.0
        %1107 = vmatpush1.xpose.msra.mxu0 0.0
        %1108 = vmatprep.subr.mxu0 0.0
        %1109 = vmatpush1.xpose.msra.mxu0 0.0
        %1110 = vmatprep.subr.mxu0 0.0
        %1111 = vmatpush1.xpose.msra.mxu0 0.0
        %1112 = vmatprep.subr.mxu0 0.0
        %1113 = vmatpush1.xpose.msra.mxu0 0.0
        %1114 = vmatprep.subr.mxu0 0.0
        %1115 = vmatpush1.xpose.msra.mxu0 0.0
        %1116 = vmatprep.subr.mxu0 0.0
        %1117 = vmatpush1.xpose.msra.mxu0 0.0
        %1118 = vmatprep.subr.mxu0 0.0
        %1119 = vmatpush1.xpose.msra.mxu0 0.0
        %1120 = vmatprep.subr.mxu0 0.0
        %1121 = vmatpush1.xpose.msra.mxu0 0.0
        %1122 = vmatprep.subr.mxu0 0.0
        %1123 = vmatpush1.xpose.msra.mxu0 0.0
        %1124 = vmatprep.subr.mxu0 0.0
        %1125 = vmatpush1.xpose.msra.mxu0 0.0
        %1126 = vmatprep.subr.mxu0 0.0
        %1127 = vmatpush1.xpose.msra.mxu0 0.0
        %1128 = vmatprep.subr.mxu0 0.0
        %1129 = vmatpush1.xpose.msra.mxu0 0.0
        %1130 = vmatprep.subr.mxu0 0.0
        %1131 = vmatpush1.xpose.msra.mxu0 0.0
        %1132 = vmatprep.subr.mxu0 0.0
        %1133 = vmatpush1.xpose.msra.mxu0 0.0
        %1134 = vmatprep.subr.mxu0 0.0
        %1135 = vmatpush1.xpose.msra.mxu0 0.0
        %1136 = vmatprep.subr.mxu0 0.0
        %1137 = vmatpush1.xpose.msra.mxu0 0.0
        %1138 = vmatprep.subr.mxu0 0.0
        %1139 = vmatpush1.xpose.msra.mxu0 0.0
        %1140 = vmatprep.subr.mxu0 0.0
        %1141 = vmatpush1.xpose.msra.mxu0 0.0
        %1142 = vmatprep.subr.mxu0 0.0
        %1143 = vmatpush1.xpose.msra.mxu0 0.0
        %1144 = vmatprep.subr.mxu0 0.0
        %1145 = vmatpush1.xpose.msra.mxu0 0.0
        %1146 = vmatprep.subr.mxu0 0.0
        %1147 = vmatpush1.xpose.msra.mxu0 0.0
        %1148 = vmatprep.subr.mxu0 0.0
        %1149 = vmatpush1.xpose.msra.mxu0 0.0
        %1150 = vmatprep.subr.mxu0 0.0
        %1151 = vmatpush1.xpose.msra.mxu0 0.0
        %1152 = vmatprep.subr.mxu0 0.0
        %1153 = vmatpush1.xpose.msra.mxu0 0.0
        %1154 = vmatprep.subr.mxu0 0.0
        %1155 = vmatpush1.xpose.msra.mxu0 0.0
        %1156 = vmatprep.subr.mxu0 0.0
        %1157 = vmatpush1.xpose.msra.mxu0 0.0
        %1158 = vmatprep.subr.mxu0 0.0
        %1159 = vmatpush1.xpose.msra.mxu0 0.0
        %1160 = vmatprep.subr.mxu0 0.0
        %1161 = vmatpush1.xpose.msra.mxu0 0.0
        %1162 = vmatprep.subr.mxu0 0.0
        %1163 = vmatpush1.xpose.msra.mxu0 0.0
        %1164 = vmatprep.subr.mxu0 0.0
        %1165 = vmatpush1.xpose.msra.mxu0 0.0
        %1166 = vmatprep.mubr.f32.mxu0 0.0
        %1167 = vmatmul.mubr.f32.gmra.mrb[0].mxu0 %v1075
        %v1168 = vpop.f32.mrb[0].mxu0
        %v1169 = vadd.f32 %v1060, %v1168
        %v1170 = vpop.f32.mrb[0].mxu0
        %1171 = vmatprep.mubr.f32.mxu0 0.0
        %1172 = vmatmul.mubr.f32.gmra.mrb[0].mxu0 %v1078
        %v1173 = vpop.f32.mrb[0].mxu0
        %v1174 = vadd.f32 %v1061, %v1173
        %v1175 = vpop.f32.mrb[0].mxu0
        %1176 = vmatprep.mubr.f32.mxu0 0.0
        %1177 = vmatmul.mubr.f32.gmra.mrb[0].mxu0 %v1081
        %v1178 = vpop.f32.mrb[0].mxu0
        %v1179 = vadd.f32 %v1062, %v1178
        %v1180 = vpop.f32.mrb[0].mxu0
        %1181 = vmatprep.mubr.f32.mxu0 0.0
        %1182 = vmatmul.mubr.f32.gmra.mrb[0].mxu0 %v1084
        %v1183 = vpop.f32.mrb[0].mxu0
        %v1184 = vadd.f32 %v1063, %v1183
        %v1185 = vpop.f32.mrb[0].mxu0
        %1186 = vmatprep.mubr.f32.mxu0 0.0
        %1187 = vmatmul.mubr.f32.gmra.mrb[0].mxu0 %v1087
        %v1188 = vpop.f32.mrb[0].mxu0
        %v1189 = vadd.f32 %v1064, %v1188
        %v1190 = vpop.f32.mrb[0].mxu0
        %1191 = vmatprep.mubr.f32.mxu0 0.0
        %1192 = vmatmul.mubr.f32.gmra.mrb[0].mxu0 %v1090
        %v1193 = vpop.f32.mrb[0].mxu0
        %v1194 = vadd.f32 %v1065, %v1193
        %v1195 = vpop.f32.mrb[0].mxu0
        %1196 = vmatprep.mubr.f32.mxu0 0.0
        %1197 = vmatmul.mubr.f32.gmra.mrb[0].mxu0 %v1093
        %v1198 = vpop.f32.mrb[0].mxu0
        %v1199 = vadd.f32 %v1066, %v1198
        %v1200 = vpop.f32.mrb[0].mxu0
        %1201 = vmatprep.mubr.f32.mxu0 0.0
        %1202 = vmatmul.mubr.f32.gmra.mrb[0].mxu0 %v1096
        %v1203 = vpop.f32.mrb[0].mxu0
        %v1204 = vadd.f32 %v1067, %v1203
        %v1205 = vpop.f32.mrb[0].mxu0
        %1206 = vdwg.mxu0
        %vm1207 = vcmask 130048
        %v1208 = vsel %vm1207, %v1169, -inf
        %1209 = vmax.xlane.f32.xlu0 %v1208
        %v1210 = vpop.xlane.xlu0 %1209
        %v1211 = vsel %vm1207, %v1174, -inf
        %1212 = vmax.xlane.f32.xlu0 %v1211
        %v1213 = vpop.xlane.xlu0 %1212
        %v1214 = vsel %vm1207, %v1179, -inf
        %1215 = vmax.xlane.f32.xlu0 %v1214
        %v1216 = vpop.xlane.xlu0 %1215
        %v1217 = vsel %vm1207, %v1184, -inf
        %1218 = vmax.xlane.f32.xlu0 %v1217
        %v1219 = vpop.xlane.xlu0 %1218
        %v1220 = vsel %vm1207, %v1189, -inf
        %1221 = vmax.xlane.f32.xlu0 %v1220
        %v1222 = vpop.xlane.xlu0 %1221
        %v1223 = vsel %vm1207, %v1194, -inf
        %1224 = vmax.xlane.f32.xlu0 %v1223
        %v1225 = vpop.xlane.xlu0 %1224
        %v1226 = vsel %vm1207, %v1199, -inf
        %1227 = vmax.xlane.f32.xlu0 %v1226
        %v1228 = vpop.xlane.xlu0 %1227
        %v1229 = vsel %vm1207, %v1204, -inf
        %1230 = vmax.xlane.f32.xlu0 %v1229
        %v1231 = vpop.xlane.xlu0 %1230
        %v1232 = vsub.f32 %v1169, %v1210
        %v1233 = vsub.f32 %v1174, %v1213
        %v1234 = vsub.f32 %v1179, %v1216
        %v1235 = vsub.f32 %v1184, %v1219
        %v1236 = vsub.f32 %v1189, %v1222
        %v1237 = vsub.f32 %v1194, %v1225
        %v1238 = vsub.f32 %v1199, %v1228
        %v1239 = vsub.f32 %v1204, %v1231
        %v1240 = vmul.f32 %v1232, 1.442695
        %v1241 = vpow.pop %v1240
        %v1242 = vmul.f32 %v1233, 1.442695
        %v1243 = vpow.pop %v1242
        %v1244 = vmul.f32 %v1234, 1.442695
        %v1245 = vpow.pop %v1244
        %v1246 = vmul.f32 %v1235, 1.442695
        %v1247 = vpow.pop %v1246
        %v1248 = vmul.f32 %v1236, 1.442695
        %v1249 = vpow.pop %v1248
        %v1250 = vmul.f32 %v1237, 1.442695
        %v1251 = vpow.pop %v1250
        %v1252 = vmul.f32 %v1238, 1.442695
        %v1253 = vpow.pop %v1252
        %v1254 = vmul.f32 %v1239, 1.442695
        %v1255 = vpow.pop %v1254
        %v1256 = vsel %vm1207, %v1241, 0.0
        %1257 = vadd.xlane.f32.xlu0 %v1256
        %v1258 = vpop.xlane.xlu0 %1257
        %v1259 = vsel %vm1207, %v1243, 0.0
        %1260 = vadd.xlane.f32.xlu0 %v1259
        %v1261 = vpop.xlane.xlu0 %1260
        %v1262 = vsel %vm1207, %v1245, 0.0
        %1263 = vadd.xlane.f32.xlu0 %v1262
        %v1264 = vpop.xlane.xlu0 %1263
        %v1265 = vsel %vm1207, %v1247, 0.0
        %1266 = vadd.xlane.f32.xlu0 %v1265
        %v1267 = vpop.xlane.xlu0 %1266
        %v1268 = vsel %vm1207, %v1249, 0.0
        %1269 = vadd.xlane.f32.xlu0 %v1268
        %v1270 = vpop.xlane.xlu0 %1269
        %v1271 = vsel %vm1207, %v1251, 0.0
        %1272 = vadd.xlane.f32.xlu0 %v1271
        %v1273 = vpop.xlane.xlu0 %1272
        %v1274 = vsel %vm1207, %v1253, 0.0
        %1275 = vadd.xlane.f32.xlu0 %v1274
        %v1276 = vpop.xlane.xlu0 %1275
        %v1277 = vsel %vm1207, %v1255, 0.0
        %1278 = vadd.xlane.f32.xlu0 %v1277
        %v1279 = vpop.xlane.xlu0 %1278
        %v1280 = vrcp.pop %v1258
        %v1281 = vrcp.pop %v1261
        %v1282 = vrcp.pop %v1264
        %v1283 = vrcp.pop %v1267
        %v1284 = vrcp.pop %v1270
        %v1285 = vrcp.pop %v1273
        %v1286 = vrcp.pop %v1276
        %v1287 = vrcp.pop %v1279
        %v1288 = vmul.f32 %v1241, %v1280
        %v1289 = vmul.f32 %v1243, %v1281
        %v1290 = vmul.f32 %v1245, %v1282
        %v1291 = vmul.f32 %v1247, %v1283
        %v1292 = vmul.f32 %v1249, %v1284
        %v1293 = vmul.f32 %v1251, %v1285
        %v1294 = vmul.f32 %v1253, %v1286
        %v1295 = vmul.f32 %v1255, %v1287
        %1296 = vrot.lane.b32.xlu0 %v1034, 64
        %v1297 = vpop.permute.xlu0 %1296
        %1298 = vrot.lane.b32.xlu0 %v1039, 64
        %v1299 = vpop.permute.xlu0 %1298
        %v1303 = vsel %vm1207, %v1288, 0
        %v1306 = vsel %vm1207, %v1289, 0
        %v1309 = vsel %vm1207, %v1290, 0
        %v1312 = vsel %vm1207, %v1291, 0
        %v1315 = vsel %vm1207, %v1292, 0
        %v1318 = vsel %vm1207, %v1293, 0
        %v1321 = vsel %vm1207, %v1294, 0
        %v1324 = vsel %vm1207, %v1295, 0
        %1326 = vmatprep.subr.mxu0 0.0
        %1327 = vmatpush1.msra.mxu0 %v1297
        %1328 = vmatprep.subr.mxu0 0.0
        %1329 = vmatpush1.msra.mxu0 %v1299
        %1330 = vmatprep.subr.mxu0 0.0
        %1331 = vmatpush1.msra.mxu0 0.0
        %1332 = vmatprep.subr.mxu0 0.0
        %1333 = vmatpush1.msra.mxu0 0.0
        %1334 = vmatprep.subr.mxu0 0.0
        %1335 = vmatpush1.msra.mxu0 0.0
        %1336 = vmatprep.subr.mxu0 0.0
        %1337 = vmatpush1.msra.mxu0 0.0
        %1338 = vmatprep.subr.mxu0 0.0
        %1339 = vmatpush1.msra.mxu0 0.0
        %1340 = vmatprep.subr.mxu0 0.0
        %1341 = vmatpush1.msra.mxu0 0.0
        %1342 = vmatprep.subr.mxu0 0.0
        %1343 = vmatpush1.msra.mxu0 0.0
        %1344 = vmatprep.subr.mxu0 0.0
        %1345 = vmatpush1.msra.mxu0 0.0
        %1346 = vmatprep.subr.mxu0 0.0
        %1347 = vmatpush1.msra.mxu0 0.0
        %1348 = vmatprep.subr.mxu0 0.0
        %1349 = vmatpush1.msra.mxu0 0.0
        %1350 = vmatprep.subr.mxu0 0.0
        %1351 = vmatpush1.msra.mxu0 0.0
        %1352 = vmatprep.subr.mxu0 0.0
        %1353 = vmatpush1.msra.mxu0 0.0
        %1354 = vmatprep.subr.mxu0 0.0
        %1355 = vmatpush1.msra.mxu0 0.0
        %1356 = vmatprep.subr.mxu0 0.0
        %1357 = vmatpush1.msra.mxu0 0.0
        %1358 = vmatprep.subr.mxu0 0.0
        %1359 = vmatpush1.msra.mxu0 0.0
        %1360 = vmatprep.subr.mxu0 0.0
        %1361 = vmatpush1.msra.mxu0 0.0
        %1362 = vmatprep.subr.mxu0 0.0
        %1363 = vmatpush1.msra.mxu0 0.0
        %1364 = vmatprep.subr.mxu0 0.0
        %1365 = vmatpush1.msra.mxu0 0.0
        %1366 = vmatprep.subr.mxu0 0.0
        %1367 = vmatpush1.msra.mxu0 0.0
        %1368 = vmatprep.subr.mxu0 0.0
        %1369 = vmatpush1.msra.mxu0 0.0
        %1370 = vmatprep.subr.mxu0 0.0
        %1371 = vmatpush1.msra.mxu0 0.0
        %1372 = vmatprep.subr.mxu0 0.0
        %1373 = vmatpush1.msra.mxu0 0.0
        %1374 = vmatprep.subr.mxu0 0.0
        %1375 = vmatpush1.msra.mxu0 0.0
        %1376 = vmatprep.subr.mxu0 0.0
        %1377 = vmatpush1.msra.mxu0 0.0
        %1378 = vmatprep.subr.mxu0 0.0
        %1379 = vmatpush1.msra.mxu0 0.0
        %1380 = vmatprep.subr.mxu0 0.0
        %1381 = vmatpush1.msra.mxu0 0.0
        %1382 = vmatprep.subr.mxu0 0.0
        %1383 = vmatpush1.msra.mxu0 0.0
        %1384 = vmatprep.subr.mxu0 0.0
        %1385 = vmatpush1.msra.mxu0 0.0
        %1386 = vmatprep.subr.mxu0 0.0
        %1387 = vmatpush1.msra.mxu0 0.0
        %1388 = vmatprep.subr.mxu0 0.0
        %1389 = vmatpush1.msra.mxu0 0.0
        %1390 = vmatprep.mubr.f32.mxu0 0.0
        %1391 = vmatmul.mubr.f32.gmra.mrb[0].mxu0 %v1303
        %v1392 = vpop.f32.mrb[0].mxu0
        %v1393 = vadd.f32 0.0, %v1392
        %v1394 = vpop.f32.mrb[0].mxu0
        %1395 = vmatprep.mubr.f32.mxu0 0.0
        %1396 = vmatmul.mubr.f32.gmra.mrb[0].mxu0 %v1306
        %v1397 = vpop.f32.mrb[0].mxu0
        %v1398 = vadd.f32 0.0, %v1397
        %v1399 = vpop.f32.mrb[0].mxu0
        %1400 = vmatprep.mubr.f32.mxu0 0.0
        %1401 = vmatmul.mubr.f32.gmra.mrb[0].mxu0 %v1309
        %v1402 = vpop.f32.mrb[0].mxu0
        %v1403 = vadd.f32 0.0, %v1402
        %v1404 = vpop.f32.mrb[0].mxu0
        %1405 = vmatprep.mubr.f32.mxu0 0.0
        %1406 = vmatmul.mubr.f32.gmra.mrb[0].mxu0 %v1312
        %v1407 = vpop.f32.mrb[0].mxu0
        %v1408 = vadd.f32 0.0, %v1407
        %v1409 = vpop.f32.mrb[0].mxu0
        %1410 = vmatprep.mubr.f32.mxu0 0.0
        %1411 = vmatmul.mubr.f32.gmra.mrb[0].mxu0 %v1315
        %v1412 = vpop.f32.mrb[0].mxu0
        %v1413 = vadd.f32 0.0, %v1412
        %v1414 = vpop.f32.mrb[0].mxu0
        %1415 = vmatprep.mubr.f32.mxu0 0.0
        %1416 = vmatmul.mubr.f32.gmra.mrb[0].mxu0 %v1318
        %v1417 = vpop.f32.mrb[0].mxu0
        %v1418 = vadd.f32 0.0, %v1417
        %v1419 = vpop.f32.mrb[0].mxu0
        %1420 = vmatprep.mubr.f32.mxu0 0.0
        %1421 = vmatmul.mubr.f32.gmra.mrb[0].mxu0 %v1321
        %v1422 = vpop.f32.mrb[0].mxu0
        %v1423 = vadd.f32 0.0, %v1422
        %v1424 = vpop.f32.mrb[0].mxu0
        %1425 = vmatprep.mubr.f32.mxu0 0.0
        %1426 = vmatmul.mubr.f32.gmra.mrb[0].mxu0 %v1324
        %v1427 = vpop.f32.mrb[0].mxu0
        %v1428 = vadd.f32 0.0, %v1427
        %v1429 = vpop.f32.mrb[0].mxu0
        %1430 = vdwg.mxu0
        %v1431 = vmul.f32 %v1393, %v1044
        %v1432 = vmul.f32 %v1398, %v1045
        %v1433 = vmul.f32 %v1403, %v1046
        %v1434 = vmul.f32 %v1408, %v1047
        %v1435 = vmul.f32 %v1413, %v1048
        %v1436 = vmul.f32 %v1418, %v1049
        %v1437 = vmul.f32 %v1423, %v1050
        %v1438 = vmul.f32 %v1428, %v1051
        %v1439 = vadd.f32 %v1431, %v1433
        %v1440 = vadd.f32 %v1432, %v1434
        %v1441 = vadd.f32 %v1439, %v1435
        %v1442 = vadd.f32 %v1440, %v1436
        %v1443 = vadd.f32 %v1441, %v1437
        %v1444 = vadd.f32 %v1442, %v1438
        %v1445 = vld [vmem:[%s822] sm:$0xff]
        %v1446 = vld [vmem:[%s822 + $0x8] sm:$0xff]
        %v1447 = vld [vmem:[%s822 + $0x10] sm:$0xff]
        %v1448 = vld [vmem:[%s822 + $0x18] sm:$0xff]
        %v1449 = vld [vmem:[%s825] sm:$0x1]
        %v1451 = vlaneseq
        %v1452 = vshrl.u32 %v1451, 7
        %v1453 = vsub.s32 0, %v1452
        %v1454 = vrot.slane %v1449, %v1453
        %v1457 = vsel %vm960, %v1443, 0
        %v1460 = vsel %vm960, %v1444, 0
        %1462 = vmatprep.subr.mxu0 0.0
        %1463 = vmatpush1.msra.mxu0 %v1445
        %1464 = vmatprep.subr.mxu0 0.0
        %1465 = vmatpush1.msra.mxu0 %v1446
        %1466 = vmatprep.subr.mxu0 0.0
        %1467 = vmatpush1.msra.mxu0 %v1447
        %1468 = vmatprep.subr.mxu0 0.0
        %1469 = vmatpush1.msra.mxu0 %v1448
        %1470 = vmatprep.subr.mxu0 0.0
        %1471 = vmatpush1.msra.mxu0 0.0
        %1472 = vmatprep.subr.mxu0 0.0
        %1473 = vmatpush1.msra.mxu0 0.0
        %1474 = vmatprep.subr.mxu0 0.0
        %1475 = vmatpush1.msra.mxu0 0.0
        %1476 = vmatprep.subr.mxu0 0.0
        %1477 = vmatpush1.msra.mxu0 0.0
        %1478 = vmatprep.subr.mxu0 0.0
        %1479 = vmatpush1.msra.mxu0 0.0
        %1480 = vmatprep.subr.mxu0 0.0
        %1481 = vmatpush1.msra.mxu0 0.0
        %1482 = vmatprep.subr.mxu0 0.0
        %1483 = vmatpush1.msra.mxu0 0.0
        %1484 = vmatprep.subr.mxu0 0.0
        %1485 = vmatpush1.msra.mxu0 0.0
        %1486 = vmatprep.subr.mxu0 0.0
        %1487 = vmatpush1.msra.mxu0 0.0
        %1488 = vmatprep.subr.mxu0 0.0
        %1489 = vmatpush1.msra.mxu0 0.0
        %1490 = vmatprep.subr.mxu0 0.0
        %1491 = vmatpush1.msra.mxu0 0.0
        %1492 = vmatprep.subr.mxu0 0.0
        %1493 = vmatpush1.msra.mxu0 0.0
        %1494 = vmatprep.subr.mxu0 0.0
        %1495 = vmatpush1.msra.mxu0 0.0
        %1496 = vmatprep.subr.mxu0 0.0
        %1497 = vmatpush1.msra.mxu0 0.0
        %1498 = vmatprep.subr.mxu0 0.0
        %1499 = vmatpush1.msra.mxu0 0.0
        %1500 = vmatprep.subr.mxu0 0.0
        %1501 = vmatpush1.msra.mxu0 0.0
        %1502 = vmatprep.subr.mxu0 0.0
        %1503 = vmatpush1.msra.mxu0 0.0
        %1504 = vmatprep.subr.mxu0 0.0
        %1505 = vmatpush1.msra.mxu0 0.0
        %1506 = vmatprep.subr.mxu0 0.0
        %1507 = vmatpush1.msra.mxu0 0.0
        %1508 = vmatprep.subr.mxu0 0.0
        %1509 = vmatpush1.msra.mxu0 0.0
        %1510 = vmatprep.subr.mxu0 0.0
        %1511 = vmatpush1.msra.mxu0 0.0
        %1512 = vmatprep.subr.mxu0 0.0
        %1513 = vmatpush1.msra.mxu0 0.0
        %1514 = vmatprep.subr.mxu0 0.0
        %1515 = vmatpush1.msra.mxu0 0.0
        %1516 = vmatprep.subr.mxu0 0.0
        %1517 = vmatpush1.msra.mxu0 0.0
        %1518 = vmatprep.subr.mxu0 0.0
        %1519 = vmatpush1.msra.mxu0 0.0
        %1520 = vmatprep.subr.mxu0 0.0
        %1521 = vmatpush1.msra.mxu0 0.0
        %1522 = vmatprep.subr.mxu0 0.0
        %1523 = vmatpush1.msra.mxu0 0.0
        %1524 = vmatprep.subr.mxu0 0.0
        %1525 = vmatpush1.msra.mxu0 0.0
        %1526 = vmatprep.mubr.f32.mxu0 0.0
        %1527 = vmatmul.mubr.f32.gmra.mrb[0].mxu0 %v1457
        %v1528 = vpop.f32.mrb[0].mxu0
        %v1529 = vadd.f32 %v1454, %v1528
        %v1530 = vpop.f32.mrb[0].mxu0
        %1531 = vmatprep.mubr.f32.mxu0 0.0
        %1532 = vmatmul.mubr.f32.gmra.mrb[0].mxu0 %v1460
        %v1533 = vpop.f32.mrb[0].mxu0
        %v1534 = vadd.f32 %v1454, %v1533
        %v1535 = vpop.f32.mrb[0].mxu0
        %1536 = vdwg.mxu0
        %v1537 = vadd.f32 %v947, %v1529
        %v1538 = vadd.f32 %v948, %v1534
        %v1539 = vld [vmem:[%s828] sm:$0x1]
        %v1540 = vld [vmem:[%s831] sm:$0x1]
        %v1541 = vsel %vm960, %v1537, 0.0
        %1542 = vadd.xlane.f32.xlu0 %v1541
        %v1543 = vpop.xlane.xlu0 %1542
        %v1544 = vsel %vm960, %v1538, 0.0
        %1545 = vadd.xlane.f32.xlu0 %v1544
        %v1546 = vpop.xlane.xlu0 %1545
        %v1547 = vrcp.pop 32.0
        %v1548 = vmul.f32 %v1543, %v1547
        %v1549 = vmul.f32 %v1546, %v1547
        %v1550 = vsub.f32 %v1537, %v1548
        %v1551 = vsub.f32 %v1538, %v1549
        %v1552 = vmul.f32 %v1550, %v1550
        %v1553 = vmul.f32 %v1551, %v1551
        %v1554 = vsel %vm960, %v1552, 0.0
        %1555 = vadd.xlane.f32.xlu0 %v1554
        %v1556 = vpop.xlane.xlu0 %1555
        %v1557 = vsel %vm960, %v1553, 0.0
        %1558 = vadd.xlane.f32.xlu0 %v1557
        %v1559 = vpop.xlane.xlu0 %1558
        %v1560 = vmul.f32 %v1556, %v1547
        %v1561 = vmul.f32 %v1559, %v1547
        %v1562 = vadd.f32 %v1560, 1e-05
        %v1563 = vadd.f32 %v1561, 1e-05
        %v1564 = vrsqrt.pop %v1562
        %v1565 = vrsqrt.pop %v1563
        %v1566 = vmul.f32 %v1550, %v1564
        %v1567 = vmul.f32 %v1551, %v1565
        %v1569 = vlaneseq
        %v1570 = vshrl.u32 %v1569, 7
        %v1571 = vsub.s32 0, %v1570
        %v1572 = vrot.slane %v1539, %v1571
        %v1574 = vmul.f32 %v1566, %v1572
        %v1575 = vmul.f32 %v1567, %v1572
        %v1577 = vlaneseq
        %v1578 = vshrl.u32 %v1577, 7
        %v1579 = vsub.s32 0, %v1578
        %v1580 = vrot.slane %v1540, %v1579
        %v1582 = vadd.f32 %v1574, %v1580
        %v1583 = vadd.f32 %v1575, %v1580
        %v1584 = vpack.c.bf16 %v1583, %v1582
        %v1585 = vld [vmem:[%s711] sm:$0xff]
        %v1586 = vld [vmem:[%s711 + $0x40] sm:$0xff]
        %v1587 = vld [vmem:[%s711 + $0x80] sm:$0xff]
        %v1588 = vld [vmem:[%s711 + $0xc0] sm:$0xff]
        %v1589 = vld [vmem:[%s841] sm:$0x3]
        %v1591 = vlaneseq
        %v1592 = vshrl.u32 %v1591, 7
        %v1593 = vsub.s32 0, %v1592
        %v1594 = vrot.slane %v1589, %v1593
        %v1595 = vlaneseq
        %v1596 = vshrl.u32 %v1595, 7
        %v1597 = vsub.s32 1, %v1596
        %v1598 = vrot.slane %v1589, %v1597
        %v1605 = vunpack.c.l.b16 %v1585
        %v1606 = vunpack.c.h.b16 %v1585
        %v1607 = vunpack.c.l.b16 %v1586
        %v1608 = vunpack.c.h.b16 %v1586
        %v1609 = vunpack.c.l.b16 %v1587
        %v1610 = vunpack.c.h.b16 %v1587
        %v1611 = vunpack.c.l.b16 %v1588
        %v1612 = vunpack.c.h.b16 %v1588
        %v1613 = vpack.c.b16 %v1607, %v1605
        %v1614 = vpack.c.b16 %v1608, %v1606
        %v1615 = vpack.c.b16 %v1611, %v1609
        %v1616 = vpack.c.b16 %v1612, %v1610
        %v1622 = vsel %vm960, %v1584, 0
        %1624 = vmatprep.subr.bf16.mxu0 %v1614
        %1625 = vmatpush1.bf16.msra.mxu0 %v1613
        %1626 = vmatprep.subr.bf16.mxu0 %v1616
        %1627 = vmatpush1.bf16.msra.mxu0 %v1615
        %1628 = vmatprep.subr.bf16.mxu0 0
        %1629 = vmatpush1.bf16.msra.mxu0 0
        %1630 = vmatprep.subr.bf16.mxu0 0
        %1631 = vmatpush1.bf16.msra.mxu0 0
        %1632 = vmatprep.subr.bf16.mxu0 0
        %1633 = vmatpush1.bf16.msra.mxu0 0
        %1634 = vmatprep.subr.bf16.mxu0 0
        %1635 = vmatpush1.bf16.msra.mxu0 0
        %1636 = vmatprep.subr.bf16.mxu0 0
        %1637 = vmatpush1.bf16.msra.mxu0 0
        %1638 = vmatprep.subr.bf16.mxu0 0
        %1639 = vmatpush1.bf16.msra.mxu0 0
        %1640 = vmatprep.subr.bf16.mxu0 0
        %1641 = vmatpush1.bf16.msra.mxu0 0
        %1642 = vmatprep.subr.bf16.mxu0 0
        %1643 = vmatpush1.bf16.msra.mxu0 0
        %1644 = vmatprep.subr.bf16.mxu0 0
        %1645 = vmatpush1.bf16.msra.mxu0 0
        %1646 = vmatprep.subr.bf16.mxu0 0
        %1647 = vmatpush1.bf16.msra.mxu0 0
        %1648 = vmatprep.subr.bf16.mxu0 0
        %1649 = vmatpush1.bf16.msra.mxu0 0
        %1650 = vmatprep.subr.bf16.mxu0 0
        %1651 = vmatpush1.bf16.msra.mxu0 0
        %1652 = vmatprep.subr.bf16.mxu0 0
        %1653 = vmatpush1.bf16.msra.mxu0 0
        %1654 = vmatprep.subr.bf16.mxu0 0
        %1655 = vmatpush1.bf16.msra.mxu0 0
        %1656 = vmatprep.mubr.bf16.mxu0 0
        %1657 = vmatmul.mubr.bf16.gmra.mrb[0].mxu0 %v1622
        %v1658 = vpop.f32.mrb[0].mxu0
        %v1659 = vadd.f32 %v1594, %v1658
        %v1660 = vpop.f32.mrb[0].mxu0
        %v1661 = vadd.f32 %v1598, %v1660
        %v1662 = vpop.f32.mrb[0].mxu0
        %v1663 = vadd.f32 %v1594, %v1662
        %v1664 = vpop.f32.mrb[0].mxu0
        %v1665 = vadd.f32 %v1598, %v1664
        %1666 = vdwg.mxu0
        %v1667 = vmax.f32 %v1659, 0.0
        %v1668 = vmax.f32 %v1661, 0.0
        %v1669 = vmax.f32 %v1663, 0.0
        %v1670 = vmax.f32 %v1665, 0.0
        %v1671 = vpack.c.bf16 %v1669, %v1667
        %v1672 = vpack.c.bf16 %v1670, %v1668
        %v1673 = vld [vmem:[%s720] sm:$0xff]
        %v1674 = vld [vmem:[%s720 + $0x40] sm:$0xff]
        %v1675 = vld [vmem:[%s720 + $0x80] sm:$0xff]
        %v1676 = vld [vmem:[%s720 + $0xc0] sm:$0xff]
        %s1677 = scalar_lea.vmem %s711, 8 [#allocation9]
        %v1678 = vld [vmem:[%s1677] sm:$0xff]
        %v1679 = vld [vmem:[%s1677 + $0x40] sm:$0xff]
        %v1680 = vld [vmem:[%s1677 + $0x80] sm:$0xff]
        %v1681 = vld [vmem:[%s1677 + $0xc0] sm:$0xff]
        %s1682 = scalar_lea.vmem %s841, 2
        %v1683 = vld [vmem:[%s1682] sm:$0x3]
        %v1685 = vlaneseq
        %v1686 = vshrl.u32 %v1685, 7
        %v1687 = vsub.s32 0, %v1686
        %v1688 = vrot.slane %v1683, %v1687
        %v1689 = vlaneseq
        %v1690 = vshrl.u32 %v1689, 7
        %v1691 = vsub.s32 1, %v1690
        %v1692 = vrot.slane %v1683, %v1691
        %v1699 = vunpack.c.l.b16 %v1678
        %v1700 = vunpack.c.h.b16 %v1678
        %v1701 = vunpack.c.l.b16 %v1679
        %v1702 = vunpack.c.h.b16 %v1679
        %v1703 = vunpack.c.l.b16 %v1680
        %v1704 = vunpack.c.h.b16 %v1680
        %v1705 = vunpack.c.l.b16 %v1681
        %v1706 = vunpack.c.h.b16 %v1681
        %v1707 = vpack.c.b16 %v1701, %v1699
        %v1708 = vpack.c.b16 %v1702, %v1700
        %v1709 = vpack.c.b16 %v1705, %v1703
        %v1710 = vpack.c.b16 %v1706, %v1704
        %1715 = vmatprep.subr.bf16.mxu0 %v1708
        %1716 = vmatpush1.bf16.msra.mxu0 %v1707
        %1717 = vmatprep.subr.bf16.mxu0 %v1710
        %1718 = vmatpush1.bf16.msra.mxu0 %v1709
        %1719 = vmatprep.subr.bf16.mxu0 0
        %1720 = vmatpush1.bf16.msra.mxu0 0
        %1721 = vmatprep.subr.bf16.mxu0 0
        %1722 = vmatpush1.bf16.msra.mxu0 0
        %1723 = vmatprep.subr.bf16.mxu0 0
        %1724 = vmatpush1.bf16.msra.mxu0 0
        %1725 = vmatprep.subr.bf16.mxu0 0
        %1726 = vmatpush1.bf16.msra.mxu0 0
        %1727 = vmatprep.subr.bf16.mxu0 0
        %1728 = vmatpush1.bf16.msra.mxu0 0
        %1729 = vmatprep.subr.bf16.mxu0 0
        %1730 = vmatpush1.bf16.msra.mxu0 0
        %1731 = vmatprep.subr.bf16.mxu0 0
        %1732 = vmatpush1.bf16.msra.mxu0 0
        %1733 = vmatprep.subr.bf16.mxu0 0
        %1734 = vmatpush1.bf16.msra.mxu0 0
        %1735 = vmatprep.subr.bf16.mxu0 0
        %1736 = vmatpush1.bf16.msra.mxu0 0
        %1737 = vmatprep.subr.bf16.mxu0 0
        %1738 = vmatpush1.bf16.msra.mxu0 0
        %1739 = vmatprep.subr.bf16.mxu0 0
        %1740 = vmatpush1.bf16.msra.mxu0 0
        %1741 = vmatprep.subr.bf16.mxu0 0
        %1742 = vmatpush1.bf16.msra.mxu0 0
        %1743 = vmatprep.subr.bf16.mxu0 0
        %1744 = vmatpush1.bf16.msra.mxu0 0
        %1745 = vmatprep.subr.bf16.mxu0 0
        %1746 = vmatpush1.bf16.msra.mxu0 0
        %1747 = vmatprep.mubr.bf16.mxu0 0
        %1748 = vmatmul.mubr.bf16.gmra.mrb[0].mxu0 %v1622
        %v1749 = vpop.f32.mrb[0].mxu0
        %v1750 = vadd.f32 %v1688, %v1749
        %v1751 = vpop.f32.mrb[0].mxu0
        %v1752 = vadd.f32 %v1692, %v1751
        %v1753 = vpop.f32.mrb[0].mxu0
        %v1754 = vadd.f32 %v1688, %v1753
        %v1755 = vpop.f32.mrb[0].mxu0
        %v1756 = vadd.f32 %v1692, %v1755
        %1757 = vdwg.mxu0
        %v1758 = vmax.f32 %v1750, 0.0
        %v1759 = vmax.f32 %v1752, 0.0
        %v1760 = vmax.f32 %v1754, 0.0
        %v1761 = vmax.f32 %v1756, 0.0
        %v1762 = vpack.c.bf16 %v1760, %v1758
        %v1763 = vpack.c.bf16 %v1761, %v1759
        %s1764 = scalar_lea.vmem %s720, 8 [#allocation11]
        %v1765 = vld [vmem:[%s1764] sm:$0xff]
        %v1766 = vld [vmem:[%s1764 + $0x40] sm:$0xff]
        %v1767 = vld [vmem:[%s1764 + $0x80] sm:$0xff]
        %v1768 = vld [vmem:[%s1764 + $0xc0] sm:$0xff]
        %v1773 = vunpack.c.l.b16 %v1765
        %v1774 = vunpack.c.h.b16 %v1765
        %v1775 = vunpack.c.l.b16 %v1766
        %v1776 = vunpack.c.h.b16 %v1766
        %v1777 = vunpack.c.l.b16 %v1767
        %v1778 = vunpack.c.h.b16 %v1767
        %v1779 = vunpack.c.l.b16 %v1768
        %v1780 = vunpack.c.h.b16 %v1768
        %v1781 = vpack.c.b16 %v1775, %v1773
        %v1782 = vpack.c.b16 %v1776, %v1774
        %v1783 = vpack.c.b16 %v1779, %v1777
        %v1784 = vpack.c.b16 %v1780, %v1778
        %1789 = vmatprep.subr.bf16.mxu0 %v1782
        %1790 = vmatpush1.bf16.xpose.msra.mxu0 %v1781
        %1791 = vmatprep.subr.bf16.mxu0 %v1784
        %1792 = vmatpush1.bf16.xpose.msra.mxu0 %v1783
        %1793 = vmatprep.subr.bf16.mxu0 0
        %1794 = vmatpush1.bf16.xpose.msra.mxu0 0
        %1795 = vmatprep.subr.bf16.mxu0 0
        %1796 = vmatpush1.bf16.xpose.msra.mxu0 0
        %1797 = vmatprep.subr.bf16.mxu0 0
        %1798 = vmatpush1.bf16.xpose.msra.mxu0 0
        %1799 = vmatprep.subr.bf16.mxu0 0
        %1800 = vmatpush1.bf16.xpose.msra.mxu0 0
        %1801 = vmatprep.subr.bf16.mxu0 0
        %1802 = vmatpush1.bf16.xpose.msra.mxu0 0
        %1803 = vmatprep.subr.bf16.mxu0 0
        %1804 = vmatpush1.bf16.xpose.msra.mxu0 0
        %1805 = vmatprep.subr.bf16.mxu0 0
        %1806 = vmatpush1.bf16.xpose.msra.mxu0 0
        %1807 = vmatprep.subr.bf16.mxu0 0
        %1808 = vmatpush1.bf16.xpose.msra.mxu0 0
        %1809 = vmatprep.subr.bf16.mxu0 0
        %1810 = vmatpush1.bf16.xpose.msra.mxu0 0
        %1811 = vmatprep.subr.bf16.mxu0 0
        %1812 = vmatpush1.bf16.xpose.msra.mxu0 0
        %1813 = vmatprep.subr.bf16.mxu0 0
        %1814 = vmatpush1.bf16.xpose.msra.mxu0 0
        %1815 = vmatprep.subr.bf16.mxu0 0
        %1816 = vmatpush1.bf16.xpose.msra.mxu0 0
        %1817 = vmatprep.subr.bf16.mxu0 0
        %1818 = vmatpush1.bf16.xpose.msra.mxu0 0
        %1819 = vmatprep.subr.bf16.mxu0 0
        %1820 = vmatpush1.bf16.xpose.msra.mxu0 0
        %1821 = vmatprep.mubr.bf16.mxu0 %v1763
        %1822 = vmatmul.mubr.bf16.gmra.mrb[0].mxu0 %v1762
        %v1823 = vpop.f32.mrb[0].mxu0
        %v1824 = vadd.f32 0.0, %v1823
        %v1825 = vpop.f32.mrb[0].mxu0
        %v1826 = vpop.f32.mrb[0].mxu0
        %v1827 = vadd.f32 0.0, %v1826
        %v1828 = vpop.f32.mrb[0].mxu0
        %1829 = vdwg.mxu0
        %v1834 = vunpack.c.l.b16 %v1673
        %v1835 = vunpack.c.h.b16 %v1673
        %v1836 = vunpack.c.l.b16 %v1674
        %v1837 = vunpack.c.h.b16 %v1674
        %v1838 = vunpack.c.l.b16 %v1675
        %v1839 = vunpack.c.h.b16 %v1675
        %v1840 = vunpack.c.l.b16 %v1676
        %v1841 = vunpack.c.h.b16 %v1676
        %v1842 = vpack.c.b16 %v1836, %v1834
        %v1843 = vpack.c.b16 %v1837, %v1835
        %v1844 = vpack.c.b16 %v1840, %v1838
        %v1845 = vpack.c.b16 %v1841, %v1839
        %1850 = vmatprep.subr.bf16.mxu0 %v1843
        %1851 = vmatpush1.bf16.xpose.msra.mxu0 %v1842
        %1852 = vmatprep.subr.bf16.mxu0 %v1845
        %1853 = vmatpush1.bf16.xpose.msra.mxu0 %v1844
        %1854 = vmatprep.subr.bf16.mxu0 0
        %1855 = vmatpush1.bf16.xpose.msra.mxu0 0
        %1856 = vmatprep.subr.bf16.mxu0 0
        %1857 = vmatpush1.bf16.xpose.msra.mxu0 0
        %1858 = vmatprep.subr.bf16.mxu0 0
        %1859 = vmatpush1.bf16.xpose.msra.mxu0 0
        %1860 = vmatprep.subr.bf16.mxu0 0
        %1861 = vmatpush1.bf16.xpose.msra.mxu0 0
        %1862 = vmatprep.subr.bf16.mxu0 0
        %1863 = vmatpush1.bf16.xpose.msra.mxu0 0
        %1864 = vmatprep.subr.bf16.mxu0 0
        %1865 = vmatpush1.bf16.xpose.msra.mxu0 0
        %1866 = vmatprep.subr.bf16.mxu0 0
        %1867 = vmatpush1.bf16.xpose.msra.mxu0 0
        %1868 = vmatprep.subr.bf16.mxu0 0
        %1869 = vmatpush1.bf16.xpose.msra.mxu0 0
        %1870 = vmatprep.subr.bf16.mxu0 0
        %1871 = vmatpush1.bf16.xpose.msra.mxu0 0
        %1872 = vmatprep.subr.bf16.mxu0 0
        %1873 = vmatpush1.bf16.xpose.msra.mxu0 0
        %1874 = vmatprep.subr.bf16.mxu0 0
        %1875 = vmatpush1.bf16.xpose.msra.mxu0 0
        %1876 = vmatprep.subr.bf16.mxu0 0
        %1877 = vmatpush1.bf16.xpose.msra.mxu0 0
        %1878 = vmatprep.subr.bf16.mxu0 0
        %1879 = vmatpush1.bf16.xpose.msra.mxu0 0
        %1880 = vmatprep.subr.bf16.mxu0 0
        %1881 = vmatpush1.bf16.xpose.msra.mxu0 0
        %1882 = vmatprep.mubr.bf16.mxu0 %v1672
        %1883 = vmatmul.mubr.bf16.gmra.mrb[0].mxu0 %v1671
        %v1884 = vpop.f32.mrb[0].mxu0
        %v1885 = vadd.f32 %v1824, %v1884
        %v1886 = vpop.f32.mrb[0].mxu0
        %v1887 = vpop.f32.mrb[0].mxu0
        %v1888 = vadd.f32 %v1827, %v1887
        %v1889 = vpop.f32.mrb[0].mxu0
        %1890 = vdwg.mxu0
        %s1891 = scalar_lea.vmem %s711, 16 [#allocation9]
        %v1892 = vld [vmem:[%s1891] sm:$0xff]
        %v1893 = vld [vmem:[%s1891 + $0x40] sm:$0xff]
        %v1894 = vld [vmem:[%s1891 + $0x80] sm:$0xff]
        %v1895 = vld [vmem:[%s1891 + $0xc0] sm:$0xff]
        %s1896 = scalar_lea.vmem %s841, 4
        %v1897 = vld [vmem:[%s1896] sm:$0x3]
        %v1899 = vlaneseq
        %v1900 = vshrl.u32 %v1899, 7
        %v1901 = vsub.s32 0, %v1900
        %v1902 = vrot.slane %v1897, %v1901
        %v1903 = vlaneseq
        %v1904 = vshrl.u32 %v1903, 7
        %v1905 = vsub.s32 1, %v1904
        %v1906 = vrot.slane %v1897, %v1905
        %v1913 = vunpack.c.l.b16 %v1892
        %v1914 = vunpack.c.h.b16 %v1892
        %v1915 = vunpack.c.l.b16 %v1893
        %v1916 = vunpack.c.h.b16 %v1893
        %v1917 = vunpack.c.l.b16 %v1894
        %v1918 = vunpack.c.h.b16 %v1894
        %v1919 = vunpack.c.l.b16 %v1895
        %v1920 = vunpack.c.h.b16 %v1895
        %v1921 = vpack.c.b16 %v1915, %v1913
        %v1922 = vpack.c.b16 %v1916, %v1914
        %v1923 = vpack.c.b16 %v1919, %v1917
        %v1924 = vpack.c.b16 %v1920, %v1918
        %1929 = vmatprep.subr.bf16.mxu0 %v1922
        %1930 = vmatpush1.bf16.msra.mxu0 %v1921
        %1931 = vmatprep.subr.bf16.mxu0 %v1924
        %1932 = vmatpush1.bf16.msra.mxu0 %v1923
        %1933 = vmatprep.subr.bf16.mxu0 0
        %1934 = vmatpush1.bf16.msra.mxu0 0
        %1935 = vmatprep.subr.bf16.mxu0 0
        %1936 = vmatpush1.bf16.msra.mxu0 0
        %1937 = vmatprep.subr.bf16.mxu0 0
        %1938 = vmatpush1.bf16.msra.mxu0 0
        %1939 = vmatprep.subr.bf16.mxu0 0
        %1940 = vmatpush1.bf16.msra.mxu0 0
        %1941 = vmatprep.subr.bf16.mxu0 0
        %1942 = vmatpush1.bf16.msra.mxu0 0
        %1943 = vmatprep.subr.bf16.mxu0 0
        %1944 = vmatpush1.bf16.msra.mxu0 0
        %1945 = vmatprep.subr.bf16.mxu0 0
        %1946 = vmatpush1.bf16.msra.mxu0 0
        %1947 = vmatprep.subr.bf16.mxu0 0
        %1948 = vmatpush1.bf16.msra.mxu0 0
        %1949 = vmatprep.subr.bf16.mxu0 0
        %1950 = vmatpush1.bf16.msra.mxu0 0
        %1951 = vmatprep.subr.bf16.mxu0 0
        %1952 = vmatpush1.bf16.msra.mxu0 0
        %1953 = vmatprep.subr.bf16.mxu0 0
        %1954 = vmatpush1.bf16.msra.mxu0 0
        %1955 = vmatprep.subr.bf16.mxu0 0
        %1956 = vmatpush1.bf16.msra.mxu0 0
        %1957 = vmatprep.subr.bf16.mxu0 0
        %1958 = vmatpush1.bf16.msra.mxu0 0
        %1959 = vmatprep.subr.bf16.mxu0 0
        %1960 = vmatpush1.bf16.msra.mxu0 0
        %1961 = vmatprep.mubr.bf16.mxu0 0
        %1962 = vmatmul.mubr.bf16.gmra.mrb[0].mxu0 %v1622
        %v1963 = vpop.f32.mrb[0].mxu0
        %v1964 = vadd.f32 %v1902, %v1963
        %v1965 = vpop.f32.mrb[0].mxu0
        %v1966 = vadd.f32 %v1906, %v1965
        %v1967 = vpop.f32.mrb[0].mxu0
        %v1968 = vadd.f32 %v1902, %v1967
        %v1969 = vpop.f32.mrb[0].mxu0
        %v1970 = vadd.f32 %v1906, %v1969
        %1971 = vdwg.mxu0
        %v1972 = vmax.f32 %v1964, 0.0
        %v1973 = vmax.f32 %v1966, 0.0
        %v1974 = vmax.f32 %v1968, 0.0
        %v1975 = vmax.f32 %v1970, 0.0
        %v1976 = vpack.c.bf16 %v1974, %v1972
        %v1977 = vpack.c.bf16 %v1975, %v1973
        %s1978 = scalar_lea.vmem %s720, 16 [#allocation11]
        %v1979 = vld [vmem:[%s1978] sm:$0xff]
        %v1980 = vld [vmem:[%s1978 + $0x40] sm:$0xff]
        %v1981 = vld [vmem:[%s1978 + $0x80] sm:$0xff]
        %v1982 = vld [vmem:[%s1978 + $0xc0] sm:$0xff]
        %v1987 = vunpack.c.l.b16 %v1979
        %v1988 = vunpack.c.h.b16 %v1979
        %v1989 = vunpack.c.l.b16 %v1980
        %v1990 = vunpack.c.h.b16 %v1980
        %v1991 = vunpack.c.l.b16 %v1981
        %v1992 = vunpack.c.h.b16 %v1981
        %v1993 = vunpack.c.l.b16 %v1982
        %v1994 = vunpack.c.h.b16 %v1982
        %v1995 = vpack.c.b16 %v1989, %v1987
        %v1996 = vpack.c.b16 %v1990, %v1988
        %v1997 = vpack.c.b16 %v1993, %v1991
        %v1998 = vpack.c.b16 %v1994, %v1992
        %2003 = vmatprep.subr.bf16.mxu0 %v1996
        %2004 = vmatpush1.bf16.xpose.msra.mxu0 %v1995
        %2005 = vmatprep.subr.bf16.mxu0 %v1998
        %2006 = vmatpush1.bf16.xpose.msra.mxu0 %v1997
        %2007 = vmatprep.subr.bf16.mxu0 0
        %2008 = vmatpush1.bf16.xpose.msra.mxu0 0
        %2009 = vmatprep.subr.bf16.mxu0 0
        %2010 = vmatpush1.bf16.xpose.msra.mxu0 0
        %2011 = vmatprep.subr.bf16.mxu0 0
        %2012 = vmatpush1.bf16.xpose.msra.mxu0 0
        %2013 = vmatprep.subr.bf16.mxu0 0
        %2014 = vmatpush1.bf16.xpose.msra.mxu0 0
        %2015 = vmatprep.subr.bf16.mxu0 0
        %2016 = vmatpush1.bf16.xpose.msra.mxu0 0
        %2017 = vmatprep.subr.bf16.mxu0 0
        %2018 = vmatpush1.bf16.xpose.msra.mxu0 0
        %2019 = vmatprep.subr.bf16.mxu0 0
        %2020 = vmatpush1.bf16.xpose.msra.mxu0 0
        %2021 = vmatprep.subr.bf16.mxu0 0
        %2022 = vmatpush1.bf16.xpose.msra.mxu0 0
        %2023 = vmatprep.subr.bf16.mxu0 0
        %2024 = vmatpush1.bf16.xpose.msra.mxu0 0
        %2025 = vmatprep.subr.bf16.mxu0 0
        %2026 = vmatpush1.bf16.xpose.msra.mxu0 0
        %2027 = vmatprep.subr.bf16.mxu0 0
        %2028 = vmatpush1.bf16.xpose.msra.mxu0 0
        %2029 = vmatprep.subr.bf16.mxu0 0
        %2030 = vmatpush1.bf16.xpose.msra.mxu0 0
        %2031 = vmatprep.subr.bf16.mxu0 0
        %2032 = vmatpush1.bf16.xpose.msra.mxu0 0
        %2033 = vmatprep.subr.bf16.mxu0 0
        %2034 = vmatpush1.bf16.xpose.msra.mxu0 0
        %2035 = vmatprep.mubr.bf16.mxu0 %v1977
        %2036 = vmatmul.mubr.bf16.gmra.mrb[0].mxu0 %v1976
        %v2037 = vpop.f32.mrb[0].mxu0
        %v2038 = vadd.f32 0.0, %v2037
        %v2039 = vpop.f32.mrb[0].mxu0
        %v2040 = vpop.f32.mrb[0].mxu0
        %v2041 = vadd.f32 0.0, %v2040
        %v2042 = vpop.f32.mrb[0].mxu0
        %2043 = vdwg.mxu0
        %v2044 = vadd.f32 %v1885, %v2038
        %v2045 = vadd.f32 %v1888, %v2041
        %s2046 = scalar_lea.vmem %s711, 24 [#allocation9]
        %v2047 = vld [vmem:[%s2046] sm:$0xff]
        %v2048 = vld [vmem:[%s2046 + $0x40] sm:$0xff]
        %v2049 = vld [vmem:[%s2046 + $0x80] sm:$0xff]
        %v2050 = vld [vmem:[%s2046 + $0xc0] sm:$0xff]
        %s2051 = scalar_lea.vmem %s841, 6
        %v2052 = vld [vmem:[%s2051] sm:$0x3]
        %v2054 = vlaneseq
        %v2055 = vshrl.u32 %v2054, 7
        %v2056 = vsub.s32 0, %v2055
        %v2057 = vrot.slane %v2052, %v2056
        %v2058 = vlaneseq
        %v2059 = vshrl.u32 %v2058, 7
        %v2060 = vsub.s32 1, %v2059
        %v2061 = vrot.slane %v2052, %v2060
        %v2068 = vunpack.c.l.b16 %v2047
        %v2069 = vunpack.c.h.b16 %v2047
        %v2070 = vunpack.c.l.b16 %v2048
        %v2071 = vunpack.c.h.b16 %v2048
        %v2072 = vunpack.c.l.b16 %v2049
        %v2073 = vunpack.c.h.b16 %v2049
        %v2074 = vunpack.c.l.b16 %v2050
        %v2075 = vunpack.c.h.b16 %v2050
        %v2076 = vpack.c.b16 %v2070, %v2068
        %v2077 = vpack.c.b16 %v2071, %v2069
        %v2078 = vpack.c.b16 %v2074, %v2072
        %v2079 = vpack.c.b16 %v2075, %v2073
        %2084 = vmatprep.subr.bf16.mxu0 %v2077
        %2085 = vmatpush1.bf16.msra.mxu0 %v2076
        %2086 = vmatprep.subr.bf16.mxu0 %v2079
        %2087 = vmatpush1.bf16.msra.mxu0 %v2078
        %2088 = vmatprep.subr.bf16.mxu0 0
        %2089 = vmatpush1.bf16.msra.mxu0 0
        %2090 = vmatprep.subr.bf16.mxu0 0
        %2091 = vmatpush1.bf16.msra.mxu0 0
        %2092 = vmatprep.subr.bf16.mxu0 0
        %2093 = vmatpush1.bf16.msra.mxu0 0
        %2094 = vmatprep.subr.bf16.mxu0 0
        %2095 = vmatpush1.bf16.msra.mxu0 0
        %2096 = vmatprep.subr.bf16.mxu0 0
        %2097 = vmatpush1.bf16.msra.mxu0 0
        %2098 = vmatprep.subr.bf16.mxu0 0
        %2099 = vmatpush1.bf16.msra.mxu0 0
        %2100 = vmatprep.subr.bf16.mxu0 0
        %2101 = vmatpush1.bf16.msra.mxu0 0
        %2102 = vmatprep.subr.bf16.mxu0 0
        %2103 = vmatpush1.bf16.msra.mxu0 0
        %2104 = vmatprep.subr.bf16.mxu0 0
        %2105 = vmatpush1.bf16.msra.mxu0 0
        %2106 = vmatprep.subr.bf16.mxu0 0
        %2107 = vmatpush1.bf16.msra.mxu0 0
        %2108 = vmatprep.subr.bf16.mxu0 0
        %2109 = vmatpush1.bf16.msra.mxu0 0
        %2110 = vmatprep.subr.bf16.mxu0 0
        %2111 = vmatpush1.bf16.msra.mxu0 0
        %2112 = vmatprep.subr.bf16.mxu0 0
        %2113 = vmatpush1.bf16.msra.mxu0 0
        %2114 = vmatprep.subr.bf16.mxu0 0
        %2115 = vmatpush1.bf16.msra.mxu0 0
        %2116 = vmatprep.mubr.bf16.mxu0 0
        %2117 = vmatmul.mubr.bf16.gmra.mrb[0].mxu0 %v1622
        %v2118 = vpop.f32.mrb[0].mxu0
        %v2119 = vadd.f32 %v2057, %v2118
        %v2120 = vpop.f32.mrb[0].mxu0
        %v2121 = vadd.f32 %v2061, %v2120
        %v2122 = vpop.f32.mrb[0].mxu0
        %v2123 = vadd.f32 %v2057, %v2122
        %v2124 = vpop.f32.mrb[0].mxu0
        %v2125 = vadd.f32 %v2061, %v2124
        %2126 = vdwg.mxu0
        %v2127 = vmax.f32 %v2119, 0.0
        %v2128 = vmax.f32 %v2121, 0.0
        %v2129 = vmax.f32 %v2123, 0.0
        %v2130 = vmax.f32 %v2125, 0.0
        %v2131 = vpack.c.bf16 %v2129, %v2127
        %v2132 = vpack.c.bf16 %v2130, %v2128
        %s2133 = scalar_lea.vmem %s720, 24 [#allocation11]
        %v2134 = vld [vmem:[%s2133] sm:$0xff]
        %v2135 = vld [vmem:[%s2133 + $0x40] sm:$0xff]
        %v2136 = vld [vmem:[%s2133 + $0x80] sm:$0xff]
        %v2137 = vld [vmem:[%s2133 + $0xc0] sm:$0xff]
        %v2142 = vunpack.c.l.b16 %v2134
        %v2143 = vunpack.c.h.b16 %v2134
        %v2144 = vunpack.c.l.b16 %v2135
        %v2145 = vunpack.c.h.b16 %v2135
        %v2146 = vunpack.c.l.b16 %v2136
        %v2147 = vunpack.c.h.b16 %v2136
        %v2148 = vunpack.c.l.b16 %v2137
        %v2149 = vunpack.c.h.b16 %v2137
        %v2150 = vpack.c.b16 %v2144, %v2142
        %v2151 = vpack.c.b16 %v2145, %v2143
        %v2152 = vpack.c.b16 %v2148, %v2146
        %v2153 = vpack.c.b16 %v2149, %v2147
        %2158 = vmatprep.subr.bf16.mxu0 %v2151
        %2159 = vmatpush1.bf16.xpose.msra.mxu0 %v2150
        %2160 = vmatprep.subr.bf16.mxu0 %v2153
        %2161 = vmatpush1.bf16.xpose.msra.mxu0 %v2152
        %2162 = vmatprep.subr.bf16.mxu0 0
        %2163 = vmatpush1.bf16.xpose.msra.mxu0 0
        %2164 = vmatprep.subr.bf16.mxu0 0
        %2165 = vmatpush1.bf16.xpose.msra.mxu0 0
        %2166 = vmatprep.subr.bf16.mxu0 0
        %2167 = vmatpush1.bf16.xpose.msra.mxu0 0
        %2168 = vmatprep.subr.bf16.mxu0 0
        %2169 = vmatpush1.bf16.xpose.msra.mxu0 0
        %2170 = vmatprep.subr.bf16.mxu0 0
        %2171 = vmatpush1.bf16.xpose.msra.mxu0 0
        %2172 = vmatprep.subr.bf16.mxu0 0
        %2173 = vmatpush1.bf16.xpose.msra.mxu0 0
        %2174 = vmatprep.subr.bf16.mxu0 0
        %2175 = vmatpush1.bf16.xpose.msra.mxu0 0
        %2176 = vmatprep.subr.bf16.mxu0 0
        %2177 = vmatpush1.bf16.xpose.msra.mxu0 0
        %2178 = vmatprep.subr.bf16.mxu0 0
        %2179 = vmatpush1.bf16.xpose.msra.mxu0 0
        %2180 = vmatprep.subr.bf16.mxu0 0
        %2181 = vmatpush1.bf16.xpose.msra.mxu0 0
        %2182 = vmatprep.subr.bf16.mxu0 0
        %2183 = vmatpush1.bf16.xpose.msra.mxu0 0
        %2184 = vmatprep.subr.bf16.mxu0 0
        %2185 = vmatpush1.bf16.xpose.msra.mxu0 0
        %2186 = vmatprep.subr.bf16.mxu0 0
        %2187 = vmatpush1.bf16.xpose.msra.mxu0 0
        %2188 = vmatprep.subr.bf16.mxu0 0
        %2189 = vmatpush1.bf16.xpose.msra.mxu0 0
        %2190 = vmatprep.mubr.bf16.mxu0 %v2132
        %2191 = vmatmul.mubr.bf16.gmra.mrb[0].mxu0 %v2131
        %v2192 = vpop.f32.mrb[0].mxu0
        %v2193 = vadd.f32 0.0, %v2192
        %v2194 = vpop.f32.mrb[0].mxu0
        %v2195 = vpop.f32.mrb[0].mxu0
        %v2196 = vadd.f32 0.0, %v2195
        %v2197 = vpop.f32.mrb[0].mxu0
        %2198 = vdwg.mxu0
        %v2199 = vadd.f32 %v2044, %v2193
        %v2200 = vadd.f32 %v2045, %v2196
        %s2201 = scalar_lea.vmem %s711, 32 [#allocation9]
        %v2202 = vld [vmem:[%s2201] sm:$0xff]
        %v2203 = vld [vmem:[%s2201 + $0x40] sm:$0xff]
        %v2204 = vld [vmem:[%s2201 + $0x80] sm:$0xff]
        %v2205 = vld [vmem:[%s2201 + $0xc0] sm:$0xff]
        %s2206 = scalar_lea.vmem %s841, 8
        %v2207 = vld [vmem:[%s2206] sm:$0x3]
        %v2209 = vlaneseq
        %v2210 = vshrl.u32 %v2209, 7
        %v2211 = vsub.s32 0, %v2210
        %v2212 = vrot.slane %v2207, %v2211
        %v2213 = vlaneseq
        %v2214 = vshrl.u32 %v2213, 7
        %v2215 = vsub.s32 1, %v2214
        %v2216 = vrot.slane %v2207, %v2215
        %v2223 = vunpack.c.l.b16 %v2202
        %v2224 = vunpack.c.h.b16 %v2202
        %v2225 = vunpack.c.l.b16 %v2203
        %v2226 = vunpack.c.h.b16 %v2203
        %v2227 = vunpack.c.l.b16 %v2204
        %v2228 = vunpack.c.h.b16 %v2204
        %v2229 = vunpack.c.l.b16 %v2205
        %v2230 = vunpack.c.h.b16 %v2205
        %v2231 = vpack.c.b16 %v2225, %v2223
        %v2232 = vpack.c.b16 %v2226, %v2224
        %v2233 = vpack.c.b16 %v2229, %v2227
        %v2234 = vpack.c.b16 %v2230, %v2228
        %2239 = vmatprep.subr.bf16.mxu0 %v2232
        %2240 = vmatpush1.bf16.msra.mxu0 %v2231
        %2241 = vmatprep.subr.bf16.mxu0 %v2234
        %2242 = vmatpush1.bf16.msra.mxu0 %v2233
        %2243 = vmatprep.subr.bf16.mxu0 0
        %2244 = vmatpush1.bf16.msra.mxu0 0
        %2245 = vmatprep.subr.bf16.mxu0 0
        %2246 = vmatpush1.bf16.msra.mxu0 0
        %2247 = vmatprep.subr.bf16.mxu0 0
        %2248 = vmatpush1.bf16.msra.mxu0 0
        %2249 = vmatprep.subr.bf16.mxu0 0
        %2250 = vmatpush1.bf16.msra.mxu0 0
        %2251 = vmatprep.subr.bf16.mxu0 0
        %2252 = vmatpush1.bf16.msra.mxu0 0
        %2253 = vmatprep.subr.bf16.mxu0 0
        %2254 = vmatpush1.bf16.msra.mxu0 0
        %2255 = vmatprep.subr.bf16.mxu0 0
        %2256 = vmatpush1.bf16.msra.mxu0 0
        %2257 = vmatprep.subr.bf16.mxu0 0
        %2258 = vmatpush1.bf16.msra.mxu0 0
        %2259 = vmatprep.subr.bf16.mxu0 0
        %2260 = vmatpush1.bf16.msra.mxu0 0
        %2261 = vmatprep.subr.bf16.mxu0 0
        %2262 = vmatpush1.bf16.msra.mxu0 0
        %2263 = vmatprep.subr.bf16.mxu0 0
        %2264 = vmatpush1.bf16.msra.mxu0 0
        %2265 = vmatprep.subr.bf16.mxu0 0
        %2266 = vmatpush1.bf16.msra.mxu0 0
        %2267 = vmatprep.subr.bf16.mxu0 0
        %2268 = vmatpush1.bf16.msra.mxu0 0
        %2269 = vmatprep.subr.bf16.mxu0 0
        %2270 = vmatpush1.bf16.msra.mxu0 0
        %2271 = vmatprep.mubr.bf16.mxu0 0
        %2272 = vmatmul.mubr.bf16.gmra.mrb[0].mxu0 %v1622
        %v2273 = vpop.f32.mrb[0].mxu0
        %v2274 = vadd.f32 %v2212, %v2273
        %v2275 = vpop.f32.mrb[0].mxu0
        %v2276 = vadd.f32 %v2216, %v2275
        %v2277 = vpop.f32.mrb[0].mxu0
        %v2278 = vadd.f32 %v2212, %v2277
        %v2279 = vpop.f32.mrb[0].mxu0
        %v2280 = vadd.f32 %v2216, %v2279
        %2281 = vdwg.mxu0
        %v2282 = vmax.f32 %v2274, 0.0
        %v2283 = vmax.f32 %v2276, 0.0
        %v2284 = vmax.f32 %v2278, 0.0
        %v2285 = vmax.f32 %v2280, 0.0
        %v2286 = vpack.c.bf16 %v2284, %v2282
        %v2287 = vpack.c.bf16 %v2285, %v2283
        %s2288 = scalar_lea.vmem %s720, 32 [#allocation11]
        %v2289 = vld [vmem:[%s2288] sm:$0xff]
        %v2290 = vld [vmem:[%s2288 + $0x40] sm:$0xff]
        %v2291 = vld [vmem:[%s2288 + $0x80] sm:$0xff]
        %v2292 = vld [vmem:[%s2288 + $0xc0] sm:$0xff]
        %v2297 = vunpack.c.l.b16 %v2289
        %v2298 = vunpack.c.h.b16 %v2289
        %v2299 = vunpack.c.l.b16 %v2290
        %v2300 = vunpack.c.h.b16 %v2290
        %v2301 = vunpack.c.l.b16 %v2291
        %v2302 = vunpack.c.h.b16 %v2291
        %v2303 = vunpack.c.l.b16 %v2292
        %v2304 = vunpack.c.h.b16 %v2292
        %v2305 = vpack.c.b16 %v2299, %v2297
        %v2306 = vpack.c.b16 %v2300, %v2298
        %v2307 = vpack.c.b16 %v2303, %v2301
        %v2308 = vpack.c.b16 %v2304, %v2302
        %2313 = vmatprep.subr.bf16.mxu0 %v2306
        %2314 = vmatpush1.bf16.xpose.msra.mxu0 %v2305
        %2315 = vmatprep.subr.bf16.mxu0 %v2308
        %2316 = vmatpush1.bf16.xpose.msra.mxu0 %v2307
        %2317 = vmatprep.subr.bf16.mxu0 0
        %2318 = vmatpush1.bf16.xpose.msra.mxu0 0
        %2319 = vmatprep.subr.bf16.mxu0 0
        %2320 = vmatpush1.bf16.xpose.msra.mxu0 0
        %2321 = vmatprep.subr.bf16.mxu0 0
        %2322 = vmatpush1.bf16.xpose.msra.mxu0 0
        %2323 = vmatprep.subr.bf16.mxu0 0
        %2324 = vmatpush1.bf16.xpose.msra.mxu0 0
        %2325 = vmatprep.subr.bf16.mxu0 0
        %2326 = vmatpush1.bf16.xpose.msra.mxu0 0
        %2327 = vmatprep.subr.bf16.mxu0 0
        %2328 = vmatpush1.bf16.xpose.msra.mxu0 0
        %2329 = vmatprep.subr.bf16.mxu0 0
        %2330 = vmatpush1.bf16.xpose.msra.mxu0 0
        %2331 = vmatprep.subr.bf16.mxu0 0
        %2332 = vmatpush1.bf16.xpose.msra.mxu0 0
        %2333 = vmatprep.subr.bf16.mxu0 0
        %2334 = vmatpush1.bf16.xpose.msra.mxu0 0
        %2335 = vmatprep.subr.bf16.mxu0 0
        %2336 = vmatpush1.bf16.xpose.msra.mxu0 0
        %2337 = vmatprep.subr.bf16.mxu0 0
        %2338 = vmatpush1.bf16.xpose.msra.mxu0 0
        %2339 = vmatprep.subr.bf16.mxu0 0
        %2340 = vmatpush1.bf16.xpose.msra.mxu0 0
        %2341 = vmatprep.subr.bf16.mxu0 0
        %2342 = vmatpush1.bf16.xpose.msra.mxu0 0
        %2343 = vmatprep.subr.bf16.mxu0 0
        %2344 = vmatpush1.bf16.xpose.msra.mxu0 0
        %2345 = vmatprep.mubr.bf16.mxu0 %v2287
        %2346 = vmatmul.mubr.bf16.gmra.mrb[0].mxu0 %v2286
        %v2347 = vpop.f32.mrb[0].mxu0
        %v2348 = vadd.f32 0.0, %v2347
        %v2349 = vpop.f32.mrb[0].mxu0
        %v2350 = vpop.f32.mrb[0].mxu0
        %v2351 = vadd.f32 0.0, %v2350
        %v2352 = vpop.f32.mrb[0].mxu0
        %2353 = vdwg.mxu0
        %v2354 = vadd.f32 %v2199, %v2348
        %v2355 = vadd.f32 %v2200, %v2351
        %s2356 = scalar_lea.vmem %s711, 40 [#allocation9]
        %v2357 = vld [vmem:[%s2356] sm:$0xff]
        %v2358 = vld [vmem:[%s2356 + $0x40] sm:$0xff]
        %v2359 = vld [vmem:[%s2356 + $0x80] sm:$0xff]
        %v2360 = vld [vmem:[%s2356 + $0xc0] sm:$0xff]
        %s2361 = scalar_lea.vmem %s841, 10
        %v2362 = vld [vmem:[%s2361] sm:$0x3]
        %v2364 = vlaneseq
        %v2365 = vshrl.u32 %v2364, 7
        %v2366 = vsub.s32 0, %v2365
        %v2367 = vrot.slane %v2362, %v2366
        %v2368 = vlaneseq
        %v2369 = vshrl.u32 %v2368, 7
        %v2370 = vsub.s32 1, %v2369
        %v2371 = vrot.slane %v2362, %v2370
        %v2378 = vunpack.c.l.b16 %v2357
        %v2379 = vunpack.c.h.b16 %v2357
        %v2380 = vunpack.c.l.b16 %v2358
        %v2381 = vunpack.c.h.b16 %v2358
        %v2382 = vunpack.c.l.b16 %v2359
        %v2383 = vunpack.c.h.b16 %v2359
        %v2384 = vunpack.c.l.b16 %v2360
        %v2385 = vunpack.c.h.b16 %v2360
        %v2386 = vpack.c.b16 %v2380, %v2378
        %v2387 = vpack.c.b16 %v2381, %v2379
        %v2388 = vpack.c.b16 %v2384, %v2382
        %v2389 = vpack.c.b16 %v2385, %v2383
        %2394 = vmatprep.subr.bf16.mxu0 %v2387
        %2395 = vmatpush1.bf16.msra.mxu0 %v2386
        %2396 = vmatprep.subr.bf16.mxu0 %v2389
        %2397 = vmatpush1.bf16.msra.mxu0 %v2388
        %2398 = vmatprep.subr.bf16.mxu0 0
        %2399 = vmatpush1.bf16.msra.mxu0 0
        %2400 = vmatprep.subr.bf16.mxu0 0
        %2401 = vmatpush1.bf16.msra.mxu0 0
        %2402 = vmatprep.subr.bf16.mxu0 0
        %2403 = vmatpush1.bf16.msra.mxu0 0
        %2404 = vmatprep.subr.bf16.mxu0 0
        %2405 = vmatpush1.bf16.msra.mxu0 0
        %2406 = vmatprep.subr.bf16.mxu0 0
        %2407 = vmatpush1.bf16.msra.mxu0 0
        %2408 = vmatprep.subr.bf16.mxu0 0
        %2409 = vmatpush1.bf16.msra.mxu0 0
        %2410 = vmatprep.subr.bf16.mxu0 0
        %2411 = vmatpush1.bf16.msra.mxu0 0
        %2412 = vmatprep.subr.bf16.mxu0 0
        %2413 = vmatpush1.bf16.msra.mxu0 0
        %2414 = vmatprep.subr.bf16.mxu0 0
        %2415 = vmatpush1.bf16.msra.mxu0 0
        %2416 = vmatprep.subr.bf16.mxu0 0
        %2417 = vmatpush1.bf16.msra.mxu0 0
        %2418 = vmatprep.subr.bf16.mxu0 0
        %2419 = vmatpush1.bf16.msra.mxu0 0
        %2420 = vmatprep.subr.bf16.mxu0 0
        %2421 = vmatpush1.bf16.msra.mxu0 0
        %2422 = vmatprep.subr.bf16.mxu0 0
        %2423 = vmatpush1.bf16.msra.mxu0 0
        %2424 = vmatprep.subr.bf16.mxu0 0
        %2425 = vmatpush1.bf16.msra.mxu0 0
        %2426 = vmatprep.mubr.bf16.mxu0 0
        %2427 = vmatmul.mubr.bf16.gmra.mrb[0].mxu0 %v1622
        %v2428 = vpop.f32.mrb[0].mxu0
        %v2429 = vadd.f32 %v2367, %v2428
        %v2430 = vpop.f32.mrb[0].mxu0
        %v2431 = vadd.f32 %v2371, %v2430
        %v2432 = vpop.f32.mrb[0].mxu0
        %v2433 = vadd.f32 %v2367, %v2432
        %v2434 = vpop.f32.mrb[0].mxu0
        %v2435 = vadd.f32 %v2371, %v2434
        %2436 = vdwg.mxu0
        %v2437 = vmax.f32 %v2429, 0.0
        %v2438 = vmax.f32 %v2431, 0.0
        %v2439 = vmax.f32 %v2433, 0.0
        %v2440 = vmax.f32 %v2435, 0.0
        %v2441 = vpack.c.bf16 %v2439, %v2437
        %v2442 = vpack.c.bf16 %v2440, %v2438
        %s2443 = scalar_lea.vmem %s720, 40 [#allocation11]
        %v2444 = vld [vmem:[%s2443] sm:$0xff]
        %v2445 = vld [vmem:[%s2443 + $0x40] sm:$0xff]
        %v2446 = vld [vmem:[%s2443 + $0x80] sm:$0xff]
        %v2447 = vld [vmem:[%s2443 + $0xc0] sm:$0xff]
        %v2452 = vunpack.c.l.b16 %v2444
        %v2453 = vunpack.c.h.b16 %v2444
        %v2454 = vunpack.c.l.b16 %v2445
        %v2455 = vunpack.c.h.b16 %v2445
        %v2456 = vunpack.c.l.b16 %v2446
        %v2457 = vunpack.c.h.b16 %v2446
        %v2458 = vunpack.c.l.b16 %v2447
        %v2459 = vunpack.c.h.b16 %v2447
        %v2460 = vpack.c.b16 %v2454, %v2452
        %v2461 = vpack.c.b16 %v2455, %v2453
        %v2462 = vpack.c.b16 %v2458, %v2456
        %v2463 = vpack.c.b16 %v2459, %v2457
        %2468 = vmatprep.subr.bf16.mxu0 %v2461
        %2469 = vmatpush1.bf16.xpose.msra.mxu0 %v2460
        %2470 = vmatprep.subr.bf16.mxu0 %v2463
        %2471 = vmatpush1.bf16.xpose.msra.mxu0 %v2462
        %2472 = vmatprep.subr.bf16.mxu0 0
        %2473 = vmatpush1.bf16.xpose.msra.mxu0 0
        %2474 = vmatprep.subr.bf16.mxu0 0
        %2475 = vmatpush1.bf16.xpose.msra.mxu0 0
        %2476 = vmatprep.subr.bf16.mxu0 0
        %2477 = vmatpush1.bf16.xpose.msra.mxu0 0
        %2478 = vmatprep.subr.bf16.mxu0 0
        %2479 = vmatpush1.bf16.xpose.msra.mxu0 0
        %2480 = vmatprep.subr.bf16.mxu0 0
        %2481 = vmatpush1.bf16.xpose.msra.mxu0 0
        %2482 = vmatprep.subr.bf16.mxu0 0
        %2483 = vmatpush1.bf16.xpose.msra.mxu0 0
        %2484 = vmatprep.subr.bf16.mxu0 0
        %2485 = vmatpush1.bf16.xpose.msra.mxu0 0
        %2486 = vmatprep.subr.bf16.mxu0 0
        %2487 = vmatpush1.bf16.xpose.msra.mxu0 0
        %2488 = vmatprep.subr.bf16.mxu0 0
        %2489 = vmatpush1.bf16.xpose.msra.mxu0 0
        %2490 = vmatprep.subr.bf16.mxu0 0
        %2491 = vmatpush1.bf16.xpose.msra.mxu0 0
        %2492 = vmatprep.subr.bf16.mxu0 0
        %2493 = vmatpush1.bf16.xpose.msra.mxu0 0
        %2494 = vmatprep.subr.bf16.mxu0 0
        %2495 = vmatpush1.bf16.xpose.msra.mxu0 0
        %2496 = vmatprep.subr.bf16.mxu0 0
        %2497 = vmatpush1.bf16.xpose.msra.mxu0 0
        %2498 = vmatprep.subr.bf16.mxu0 0
        %2499 = vmatpush1.bf16.xpose.msra.mxu0 0
        %2500 = vmatprep.mubr.bf16.mxu0 %v2442
        %2501 = vmatmul.mubr.bf16.gmra.mrb[0].mxu0 %v2441
        %v2502 = vpop.f32.mrb[0].mxu0
        %v2503 = vadd.f32 0.0, %v2502
        %v2504 = vpop.f32.mrb[0].mxu0
        %v2505 = vpop.f32.mrb[0].mxu0
        %v2506 = vadd.f32 0.0, %v2505
        %v2507 = vpop.f32.mrb[0].mxu0
        %2508 = vdwg.mxu0
        %v2509 = vadd.f32 %v2354, %v2503
        %v2510 = vadd.f32 %v2355, %v2506
        %s2511 = scalar_lea.vmem %s711, 48 [#allocation9]
        %v2512 = vld [vmem:[%s2511] sm:$0xff]
        %v2513 = vld [vmem:[%s2511 + $0x40] sm:$0xff]
        %v2514 = vld [vmem:[%s2511 + $0x80] sm:$0xff]
        %v2515 = vld [vmem:[%s2511 + $0xc0] sm:$0xff]
        %s2516 = scalar_lea.vmem %s841, 12
        %v2517 = vld [vmem:[%s2516] sm:$0x3]
        %v2519 = vlaneseq
        %v2520 = vshrl.u32 %v2519, 7
        %v2521 = vsub.s32 0, %v2520
        %v2522 = vrot.slane %v2517, %v2521
        %v2523 = vlaneseq
        %v2524 = vshrl.u32 %v2523, 7
        %v2525 = vsub.s32 1, %v2524
        %v2526 = vrot.slane %v2517, %v2525
        %v2533 = vunpack.c.l.b16 %v2512
        %v2534 = vunpack.c.h.b16 %v2512
        %v2535 = vunpack.c.l.b16 %v2513
        %v2536 = vunpack.c.h.b16 %v2513
        %v2537 = vunpack.c.l.b16 %v2514
        %v2538 = vunpack.c.h.b16 %v2514
        %v2539 = vunpack.c.l.b16 %v2515
        %v2540 = vunpack.c.h.b16 %v2515
        %v2541 = vpack.c.b16 %v2535, %v2533
        %v2542 = vpack.c.b16 %v2536, %v2534
        %v2543 = vpack.c.b16 %v2539, %v2537
        %v2544 = vpack.c.b16 %v2540, %v2538
        %2549 = vmatprep.subr.bf16.mxu0 %v2542
        %2550 = vmatpush1.bf16.msra.mxu0 %v2541
        %2551 = vmatprep.subr.bf16.mxu0 %v2544
        %2552 = vmatpush1.bf16.msra.mxu0 %v2543
        %2553 = vmatprep.subr.bf16.mxu0 0
        %2554 = vmatpush1.bf16.msra.mxu0 0
        %2555 = vmatprep.subr.bf16.mxu0 0
        %2556 = vmatpush1.bf16.msra.mxu0 0
        %2557 = vmatprep.subr.bf16.mxu0 0
        %2558 = vmatpush1.bf16.msra.mxu0 0
        %2559 = vmatprep.subr.bf16.mxu0 0
        %2560 = vmatpush1.bf16.msra.mxu0 0
        %2561 = vmatprep.subr.bf16.mxu0 0
        %2562 = vmatpush1.bf16.msra.mxu0 0
        %2563 = vmatprep.subr.bf16.mxu0 0
        %2564 = vmatpush1.bf16.msra.mxu0 0
        %2565 = vmatprep.subr.bf16.mxu0 0
        %2566 = vmatpush1.bf16.msra.mxu0 0
        %2567 = vmatprep.subr.bf16.mxu0 0
        %2568 = vmatpush1.bf16.msra.mxu0 0
        %2569 = vmatprep.subr.bf16.mxu0 0
        %2570 = vmatpush1.bf16.msra.mxu0 0
        %2571 = vmatprep.subr.bf16.mxu0 0
        %2572 = vmatpush1.bf16.msra.mxu0 0
        %2573 = vmatprep.subr.bf16.mxu0 0
        %2574 = vmatpush1.bf16.msra.mxu0 0
        %2575 = vmatprep.subr.bf16.mxu0 0
        %2576 = vmatpush1.bf16.msra.mxu0 0
        %2577 = vmatprep.subr.bf16.mxu0 0
        %2578 = vmatpush1.bf16.msra.mxu0 0
        %2579 = vmatprep.subr.bf16.mxu0 0
        %2580 = vmatpush1.bf16.msra.mxu0 0
        %2581 = vmatprep.mubr.bf16.mxu0 0
        %2582 = vmatmul.mubr.bf16.gmra.mrb[0].mxu0 %v1622
        %v2583 = vpop.f32.mrb[0].mxu0
        %v2584 = vadd.f32 %v2522, %v2583
        %v2585 = vpop.f32.mrb[0].mxu0
        %v2586 = vadd.f32 %v2526, %v2585
        %v2587 = vpop.f32.mrb[0].mxu0
        %v2588 = vadd.f32 %v2522, %v2587
        %v2589 = vpop.f32.mrb[0].mxu0
        %v2590 = vadd.f32 %v2526, %v2589
        %2591 = vdwg.mxu0
        %v2592 = vmax.f32 %v2584, 0.0
        %v2593 = vmax.f32 %v2586, 0.0
        %v2594 = vmax.f32 %v2588, 0.0
        %v2595 = vmax.f32 %v2590, 0.0
        %v2596 = vpack.c.bf16 %v2594, %v2592
        %v2597 = vpack.c.bf16 %v2595, %v2593
        %s2598 = scalar_lea.vmem %s720, 48 [#allocation11]
        %v2599 = vld [vmem:[%s2598] sm:$0xff]
        %v2600 = vld [vmem:[%s2598 + $0x40] sm:$0xff]
        %v2601 = vld [vmem:[%s2598 + $0x80] sm:$0xff]
        %v2602 = vld [vmem:[%s2598 + $0xc0] sm:$0xff]
        %v2607 = vunpack.c.l.b16 %v2599
        %v2608 = vunpack.c.h.b16 %v2599
        %v2609 = vunpack.c.l.b16 %v2600
        %v2610 = vunpack.c.h.b16 %v2600
        %v2611 = vunpack.c.l.b16 %v2601
        %v2612 = vunpack.c.h.b16 %v2601
        %v2613 = vunpack.c.l.b16 %v2602
        %v2614 = vunpack.c.h.b16 %v2602
        %v2615 = vpack.c.b16 %v2609, %v2607
        %v2616 = vpack.c.b16 %v2610, %v2608
        %v2617 = vpack.c.b16 %v2613, %v2611
        %v2618 = vpack.c.b16 %v2614, %v2612
        %2623 = vmatprep.subr.bf16.mxu0 %v2616
        %2624 = vmatpush1.bf16.xpose.msra.mxu0 %v2615
        %2625 = vmatprep.subr.bf16.mxu0 %v2618
        %2626 = vmatpush1.bf16.xpose.msra.mxu0 %v2617
        %2627 = vmatprep.subr.bf16.mxu0 0
        %2628 = vmatpush1.bf16.xpose.msra.mxu0 0
        %2629 = vmatprep.subr.bf16.mxu0 0
        %2630 = vmatpush1.bf16.xpose.msra.mxu0 0
        %2631 = vmatprep.subr.bf16.mxu0 0
        %2632 = vmatpush1.bf16.xpose.msra.mxu0 0
        %2633 = vmatprep.subr.bf16.mxu0 0
        %2634 = vmatpush1.bf16.xpose.msra.mxu0 0
        %2635 = vmatprep.subr.bf16.mxu0 0
        %2636 = vmatpush1.bf16.xpose.msra.mxu0 0
        %2637 = vmatprep.subr.bf16.mxu0 0
        %2638 = vmatpush1.bf16.xpose.msra.mxu0 0
        %2639 = vmatprep.subr.bf16.mxu0 0
        %2640 = vmatpush1.bf16.xpose.msra.mxu0 0
        %2641 = vmatprep.subr.bf16.mxu0 0
        %2642 = vmatpush1.bf16.xpose.msra.mxu0 0
        %2643 = vmatprep.subr.bf16.mxu0 0
        %2644 = vmatpush1.bf16.xpose.msra.mxu0 0
        %2645 = vmatprep.subr.bf16.mxu0 0
        %2646 = vmatpush1.bf16.xpose.msra.mxu0 0
        %2647 = vmatprep.subr.bf16.mxu0 0
        %2648 = vmatpush1.bf16.xpose.msra.mxu0 0
        %2649 = vmatprep.subr.bf16.mxu0 0
        %2650 = vmatpush1.bf16.xpose.msra.mxu0 0
        %2651 = vmatprep.subr.bf16.mxu0 0
        %2652 = vmatpush1.bf16.xpose.msra.mxu0 0
        %2653 = vmatprep.subr.bf16.mxu0 0
        %2654 = vmatpush1.bf16.xpose.msra.mxu0 0
        %2655 = vmatprep.mubr.bf16.mxu0 %v2597
        %2656 = vmatmul.mubr.bf16.gmra.mrb[0].mxu0 %v2596
        %v2657 = vpop.f32.mrb[0].mxu0
        %v2658 = vadd.f32 0.0, %v2657
        %v2659 = vpop.f32.mrb[0].mxu0
        %v2660 = vpop.f32.mrb[0].mxu0
        %v2661 = vadd.f32 0.0, %v2660
        %v2662 = vpop.f32.mrb[0].mxu0
        %2663 = vdwg.mxu0
        %v2664 = vadd.f32 %v2509, %v2658
        %v2665 = vadd.f32 %v2510, %v2661
        %s2666 = scalar_lea.vmem %s711, 56 [#allocation9]
        %v2667 = vld [vmem:[%s2666] sm:$0xff]
        %v2668 = vld [vmem:[%s2666 + $0x40] sm:$0xff]
        %v2669 = vld [vmem:[%s2666 + $0x80] sm:$0xff]
        %v2670 = vld [vmem:[%s2666 + $0xc0] sm:$0xff]
        %s2671 = scalar_lea.vmem %s841, 14
        %v2672 = vld [vmem:[%s2671] sm:$0x3]
        %v2674 = vlaneseq
        %v2675 = vshrl.u32 %v2674, 7
        %v2676 = vsub.s32 0, %v2675
        %v2677 = vrot.slane %v2672, %v2676
        %v2678 = vlaneseq
        %v2679 = vshrl.u32 %v2678, 7
        %v2680 = vsub.s32 1, %v2679
        %v2681 = vrot.slane %v2672, %v2680
        %v2688 = vunpack.c.l.b16 %v2667
        %v2689 = vunpack.c.h.b16 %v2667
        %v2690 = vunpack.c.l.b16 %v2668
        %v2691 = vunpack.c.h.b16 %v2668
        %v2692 = vunpack.c.l.b16 %v2669
        %v2693 = vunpack.c.h.b16 %v2669
        %v2694 = vunpack.c.l.b16 %v2670
        %v2695 = vunpack.c.h.b16 %v2670
        %v2696 = vpack.c.b16 %v2690, %v2688
        %v2697 = vpack.c.b16 %v2691, %v2689
        %v2698 = vpack.c.b16 %v2694, %v2692
        %v2699 = vpack.c.b16 %v2695, %v2693
        %2704 = vmatprep.subr.bf16.mxu0 %v2697
        %2705 = vmatpush1.bf16.msra.mxu0 %v2696
        %2706 = vmatprep.subr.bf16.mxu0 %v2699
        %2707 = vmatpush1.bf16.msra.mxu0 %v2698
        %2708 = vmatprep.subr.bf16.mxu0 0
        %2709 = vmatpush1.bf16.msra.mxu0 0
        %2710 = vmatprep.subr.bf16.mxu0 0
        %2711 = vmatpush1.bf16.msra.mxu0 0
        %2712 = vmatprep.subr.bf16.mxu0 0
        %2713 = vmatpush1.bf16.msra.mxu0 0
        %2714 = vmatprep.subr.bf16.mxu0 0
        %2715 = vmatpush1.bf16.msra.mxu0 0
        %2716 = vmatprep.subr.bf16.mxu0 0
        %2717 = vmatpush1.bf16.msra.mxu0 0
        %2718 = vmatprep.subr.bf16.mxu0 0
        %2719 = vmatpush1.bf16.msra.mxu0 0
        %2720 = vmatprep.subr.bf16.mxu0 0
        %2721 = vmatpush1.bf16.msra.mxu0 0
        %2722 = vmatprep.subr.bf16.mxu0 0
        %2723 = vmatpush1.bf16.msra.mxu0 0
        %2724 = vmatprep.subr.bf16.mxu0 0
        %2725 = vmatpush1.bf16.msra.mxu0 0
        %2726 = vmatprep.subr.bf16.mxu0 0
        %2727 = vmatpush1.bf16.msra.mxu0 0
        %2728 = vmatprep.subr.bf16.mxu0 0
        %2729 = vmatpush1.bf16.msra.mxu0 0
        %2730 = vmatprep.subr.bf16.mxu0 0
        %2731 = vmatpush1.bf16.msra.mxu0 0
        %2732 = vmatprep.subr.bf16.mxu0 0
        %2733 = vmatpush1.bf16.msra.mxu0 0
        %2734 = vmatprep.subr.bf16.mxu0 0
        %2735 = vmatpush1.bf16.msra.mxu0 0
        %2736 = vmatprep.mubr.bf16.mxu0 0
        %2737 = vmatmul.mubr.bf16.gmra.mrb[0].mxu0 %v1622
        %v2738 = vpop.f32.mrb[0].mxu0
        %v2739 = vadd.f32 %v2677, %v2738
        %v2740 = vpop.f32.mrb[0].mxu0
        %v2741 = vadd.f32 %v2681, %v2740
        %v2742 = vpop.f32.mrb[0].mxu0
        %v2743 = vadd.f32 %v2677, %v2742
        %v2744 = vpop.f32.mrb[0].mxu0
        %v2745 = vadd.f32 %v2681, %v2744
        %2746 = vdwg.mxu0
        %v2747 = vmax.f32 %v2739, 0.0
        %v2748 = vmax.f32 %v2741, 0.0
        %v2749 = vmax.f32 %v2743, 0.0
        %v2750 = vmax.f32 %v2745, 0.0
        %v2751 = vpack.c.bf16 %v2749, %v2747
        %v2752 = vpack.c.bf16 %v2750, %v2748
        %s2753 = scalar_lea.vmem %s720, 56 [#allocation11]
        %v2754 = vld [vmem:[%s2753] sm:$0xff]
        %v2755 = vld [vmem:[%s2753 + $0x40] sm:$0xff]
        %v2756 = vld [vmem:[%s2753 + $0x80] sm:$0xff]
        %v2757 = vld [vmem:[%s2753 + $0xc0] sm:$0xff]
        %v2762 = vunpack.c.l.b16 %v2754
        %v2763 = vunpack.c.h.b16 %v2754
        %v2764 = vunpack.c.l.b16 %v2755
        %v2765 = vunpack.c.h.b16 %v2755
        %v2766 = vunpack.c.l.b16 %v2756
        %v2767 = vunpack.c.h.b16 %v2756
        %v2768 = vunpack.c.l.b16 %v2757
        %v2769 = vunpack.c.h.b16 %v2757
        %v2770 = vpack.c.b16 %v2764, %v2762
        %v2771 = vpack.c.b16 %v2765, %v2763
        %v2772 = vpack.c.b16 %v2768, %v2766
        %v2773 = vpack.c.b16 %v2769, %v2767
        %2778 = vmatprep.subr.bf16.mxu0 %v2771
        %2779 = vmatpush1.bf16.xpose.msra.mxu0 %v2770
        %2780 = vmatprep.subr.bf16.mxu0 %v2773
        %2781 = vmatpush1.bf16.xpose.msra.mxu0 %v2772
        %2782 = vmatprep.subr.bf16.mxu0 0
        %2783 = vmatpush1.bf16.xpose.msra.mxu0 0
        %2784 = vmatprep.subr.bf16.mxu0 0
        %2785 = vmatpush1.bf16.xpose.msra.mxu0 0
        %2786 = vmatprep.subr.bf16.mxu0 0
        %2787 = vmatpush1.bf16.xpose.msra.mxu0 0
        %2788 = vmatprep.subr.bf16.mxu0 0
        %2789 = vmatpush1.bf16.xpose.msra.mxu0 0
        %2790 = vmatprep.subr.bf16.mxu0 0
        %2791 = vmatpush1.bf16.xpose.msra.mxu0 0
        %2792 = vmatprep.subr.bf16.mxu0 0
        %2793 = vmatpush1.bf16.xpose.msra.mxu0 0
        %2794 = vmatprep.subr.bf16.mxu0 0
        %2795 = vmatpush1.bf16.xpose.msra.mxu0 0
        %2796 = vmatprep.subr.bf16.mxu0 0
        %2797 = vmatpush1.bf16.xpose.msra.mxu0 0
        %2798 = vmatprep.subr.bf16.mxu0 0
        %2799 = vmatpush1.bf16.xpose.msra.mxu0 0
        %2800 = vmatprep.subr.bf16.mxu0 0
        %2801 = vmatpush1.bf16.xpose.msra.mxu0 0
        %2802 = vmatprep.subr.bf16.mxu0 0
        %2803 = vmatpush1.bf16.xpose.msra.mxu0 0
        %2804 = vmatprep.subr.bf16.mxu0 0
        %2805 = vmatpush1.bf16.xpose.msra.mxu0 0
        %2806 = vmatprep.subr.bf16.mxu0 0
        %2807 = vmatpush1.bf16.xpose.msra.mxu0 0
        %2808 = vmatprep.subr.bf16.mxu0 0
        %2809 = vmatpush1.bf16.xpose.msra.mxu0 0
        %2810 = vmatprep.mubr.bf16.mxu0 %v2752
        %2811 = vmatmul.mubr.bf16.gmra.mrb[0].mxu0 %v2751
        %v2812 = vpop.f32.mrb[0].mxu0
        %v2813 = vadd.f32 0.0, %v2812
        %v2814 = vpop.f32.mrb[0].mxu0
        %v2815 = vpop.f32.mrb[0].mxu0
        %v2816 = vadd.f32 0.0, %v2815
        %v2817 = vpop.f32.mrb[0].mxu0
        %2818 = vdwg.mxu0
        %v2819 = vadd.f32 %v2664, %v2813
        %v2820 = vadd.f32 %v2665, %v2816
        %v2821 = vld [vmem:[%s844] sm:$0x1]
        %v2823 = vlaneseq
        %v2824 = vshrl.u32 %v2823, 7
        %v2825 = vsub.s32 0, %v2824
        %v2826 = vrot.slane %v2821, %v2825
        %v2828 = vadd.f32 %v2819, %v2826
        %v2829 = vadd.f32 %v2820, %v2826
        %v2830 = vadd.f32 %v1582, %v2828
        %v2831 = vadd.f32 %v1583, %v2829
        %v2832 = vld [vmem:[%s834] sm:$0x1]
        %v2833 = vld [vmem:[%s837] sm:$0x1]
        %v2834 = vsel %vm960, %v2830, 0.0
        %2835 = vadd.xlane.f32.xlu0 %v2834
        %v2836 = vpop.xlane.xlu0 %2835
        %v2837 = vsel %vm960, %v2831, 0.0
        %2838 = vadd.xlane.f32.xlu0 %v2837
        %v2839 = vpop.xlane.xlu0 %2838
        %v2840 = vmul.f32 %v2836, %v1547
        %v2841 = vmul.f32 %v2839, %v1547
        %v2842 = vsub.f32 %v2830, %v2840
        %v2843 = vsub.f32 %v2831, %v2841
        %v2844 = vmul.f32 %v2842, %v2842
        %v2845 = vmul.f32 %v2843, %v2843
        %v2846 = vsel %vm960, %v2844, 0.0
        %2847 = vadd.xlane.f32.xlu0 %v2846
        %v2848 = vpop.xlane.xlu0 %2847
        %v2849 = vsel %vm960, %v2845, 0.0
        %2850 = vadd.xlane.f32.xlu0 %v2849
        %v2851 = vpop.xlane.xlu0 %2850
        %v2852 = vmul.f32 %v2848, %v1547
        %v2853 = vmul.f32 %v2851, %v1547
        %v2854 = vadd.f32 %v2852, 1e-05
        %v2855 = vadd.f32 %v2853, 1e-05
        %v2856 = vrsqrt.pop %v2854
        %v2857 = vrsqrt.pop %v2855
        %v2858 = vmul.f32 %v2842, %v2856
        %v2859 = vmul.f32 %v2843, %v2857
        %v2861 = vlaneseq
        %v2862 = vshrl.u32 %v2861, 7
        %v2863 = vsub.s32 0, %v2862
        %v2864 = vrot.slane %v2832, %v2863
        %v2866 = vmul.f32 %v2858, %v2864
        %v2867 = vmul.f32 %v2859, %v2864
        %v2869 = vlaneseq
        %v2870 = vshrl.u32 %v2869, 7
        %v2871 = vsub.s32 0, %v2870
        %v2872 = vrot.slane %v2833, %v2871
        %v2874 = vadd.f32 %v2866, %v2872
        %v2875 = vadd.f32 %v2867, %v2872
        %2876 = vst.msk [vmem:[#allocation2] sm:$0xff] %vm960, %v2874
        %2877 = vst.msk [vmem:[#allocation2 + $0x8] sm:$0xff] %vm960, %v2875
        %p2878 = scmp.eq.s32.totalorder %s36, 1
        // Predicated region
        $region121: #{tpu_custom_call.1} parent=95 // pred_check
          %p2879 = pneg %p2878
        $region122: #{tpu_custom_call.1} parent=95 // pred_check_branch
          %2881 = sbr.rel (%p2879) target = $region124
        $region123: #{tpu_custom_call.1} parent=95 // pred_region
          %v2882 = vld [vmem:[%s17] sm:$0xff]
          %v2883 = vld [vmem:[%s17 + $0x8] sm:$0xff]
          %v2884 = vld [vmem:[%s17 + $0x10] sm:$0xff]
          %v2885 = vld [vmem:[%s17 + $0x18] sm:$0xff]
          %v2886 = vld [vmem:[%s18] sm:$0x1]
          %v2888 = vlaneseq
          %v2889 = vshrl.u32 %v2888, 7
          %v2890 = vsub.s32 0, %v2889
          %v2891 = vrot.slane %v2886, %v2890
          %v2894 = vsel %vm960, %v2874, 0
          %v2897 = vsel %vm960, %v2875, 0
          %2899 = vmatprep.subr.mxu0 0.0
          %2900 = vmatpush1.msra.mxu0 %v2882
          %2901 = vmatprep.subr.mxu0 0.0
          %2902 = vmatpush1.msra.mxu0 %v2883
          %2903 = vmatprep.subr.mxu0 0.0
          %2904 = vmatpush1.msra.mxu0 %v2884
          %2905 = vmatprep.subr.mxu0 0.0
          %2906 = vmatpush1.msra.mxu0 %v2885
          %2907 = vmatprep.subr.mxu0 0.0
          %2908 = vmatpush1.msra.mxu0 0.0
          %2909 = vmatprep.subr.mxu0 0.0
          %2910 = vmatpush1.msra.mxu0 0.0
          %2911 = vmatprep.subr.mxu0 0.0
          %2912 = vmatpush1.msra.mxu0 0.0
          %2913 = vmatprep.subr.mxu0 0.0
          %2914 = vmatpush1.msra.mxu0 0.0
          %2915 = vmatprep.subr.mxu0 0.0
          %2916 = vmatpush1.msra.mxu0 0.0
          %2917 = vmatprep.subr.mxu0 0.0
          %2918 = vmatpush1.msra.mxu0 0.0
          %2919 = vmatprep.subr.mxu0 0.0
          %2920 = vmatpush1.msra.mxu0 0.0
          %2921 = vmatprep.subr.mxu0 0.0
          %2922 = vmatpush1.msra.mxu0 0.0
          %2923 = vmatprep.subr.mxu0 0.0
          %2924 = vmatpush1.msra.mxu0 0.0
          %2925 = vmatprep.subr.mxu0 0.0
          %2926 = vmatpush1.msra.mxu0 0.0
          %2927 = vmatprep.subr.mxu0 0.0
          %2928 = vmatpush1.msra.mxu0 0.0
          %2929 = vmatprep.subr.mxu0 0.0
          %2930 = vmatpush1.msra.mxu0 0.0
          %2931 = vmatprep.subr.mxu0 0.0
          %2932 = vmatpush1.msra.mxu0 0.0
          %2933 = vmatprep.subr.mxu0 0.0
          %2934 = vmatpush1.msra.mxu0 0.0
          %2935 = vmatprep.subr.mxu0 0.0
          %2936 = vmatpush1.msra.mxu0 0.0
          %2937 = vmatprep.subr.mxu0 0.0
          %2938 = vmatpush1.msra.mxu0 0.0
          %2939 = vmatprep.subr.mxu0 0.0
          %2940 = vmatpush1.msra.mxu0 0.0
          %2941 = vmatprep.subr.mxu0 0.0
          %2942 = vmatpush1.msra.mxu0 0.0
          %2943 = vmatprep.subr.mxu0 0.0
          %2944 = vmatpush1.msra.mxu0 0.0
          %2945 = vmatprep.subr.mxu0 0.0
          %2946 = vmatpush1.msra.mxu0 0.0
          %2947 = vmatprep.subr.mxu0 0.0
          %2948 = vmatpush1.msra.mxu0 0.0
          %2949 = vmatprep.subr.mxu0 0.0
          %2950 = vmatpush1.msra.mxu0 0.0
          %2951 = vmatprep.subr.mxu0 0.0
          %2952 = vmatpush1.msra.mxu0 0.0
          %2953 = vmatprep.subr.mxu0 0.0
          %2954 = vmatpush1.msra.mxu0 0.0
          %2955 = vmatprep.subr.mxu0 0.0
          %2956 = vmatpush1.msra.mxu0 0.0
          %2957 = vmatprep.subr.mxu0 0.0
          %2958 = vmatpush1.msra.mxu0 0.0
          %2959 = vmatprep.subr.mxu0 0.0
          %2960 = vmatpush1.msra.mxu0 0.0
          %2961 = vmatprep.subr.mxu0 0.0
          %2962 = vmatpush1.msra.mxu0 0.0
          %2963 = vmatprep.mubr.f32.mxu0 0.0
          %2964 = vmatmul.mubr.f32.gmra.mrb[0].mxu0 %v2894
          %v2965 = vpop.f32.mrb[0].mxu0
          %v2966 = vadd.f32 %v2891, %v2965
          %v2967 = vpop.f32.mrb[0].mxu0
          %2968 = vmatprep.mubr.f32.mxu0 0.0
          %2969 = vmatmul.mubr.f32.gmra.mrb[0].mxu0 %v2897
          %v2970 = vpop.f32.mrb[0].mxu0
          %v2971 = vadd.f32 %v2891, %v2970
          %v2972 = vpop.f32.mrb[0].mxu0
          %2973 = vdwg.mxu0
          %2974 = vst [vmem:[#allocation12] sm:$0xff] %v2966
          %2975 = vst [vmem:[#allocation12 + $0x8] sm:$0xff] %v2971
        $region124: #{tpu_custom_call.1} parent=95 // pred_fallthru
          _
        // Predicated region
        $region125: #{tpu_custom_call.1} parent=95 // pred_check
          %p2976 = pneg %p508
        $region126: #{tpu_custom_call.1} parent=95 // pred_check_branch
          %2978 = sbr.rel (%p2976) target = $region128
        $region127: #{tpu_custom_call.1} parent=95 // pred_region
          %s2980 = ssub.s32 256, 256
          %2981 = vsyncadd [#allocation5], %s2980
          %s2982 = sshll.u32 [#allocation12], 4
          %s2983 = int_to_ptr.vmem [resolvable:$true] %s2982
          %2988 = dma.vmem_to_hbm [thread:$0]  %s2983, 256, %s19, [#allocation5], 128, 128, 8
        $region128: #{tpu_custom_call.1} parent=95 // pred_fallthru
          _
        // Predicated region
        $region129: #{tpu_custom_call.1} parent=95 // pred_check
          %p2989 = pneg %p508
        $region130: #{tpu_custom_call.1} parent=95 // pred_check_branch
          %2991 = sbr.rel (%p2989) target = $region132
        $region131: #{tpu_custom_call.1} parent=95 // pred_region
          %2992 = dma.done [#allocation5], 256
        $region132: #{tpu_custom_call.1} parent=95 // pred_fallthru
          _
      $region96: #{tpu_custom_call.1} parent=5 // pred_fallthru
        _
      %p2993 = scmp.le.s32.totalorder 2, %s31
      // Predicated region
      $region133: #{tpu_custom_call.1} parent=5 // pred_check
        %p2994 = pneg %p2993
      $region134: #{tpu_custom_call.1} parent=5 // pred_check_branch
        %2996 = sbr.rel (%p2994) target = $region136
      $region135: #{tpu_custom_call.1} parent=5 // pred_region
        %s2997 = ssub.s32 %s31, 2
      $region136: #{tpu_custom_call.1} parent=5 // pred_fallthru
        _
    $region6: #{tpu_custom_call.1} parent=1 // loop_footer
      %s35 = sadd.s32 1, %s31
    $region7: #{tpu_custom_call.1} parent=1 // loop_footer_branch
      %30 = sbr.rel target = $region3
    $region8: #{tpu_custom_call.1} parent=1 // loop_exit
      _
    %2998 = vsyncpa [#allocation4], 1
    %s2999 = scalar_lea.sflag [#allocation4], 1
    %3000 = vsyncpa %s2999, 1
    %3001 = vsyncpa [#allocation7], 1
    %3002 = vsyncpa [#allocation10], 1
    %s3003 = scalar_lea.sflag [#allocation10], 1
    %3004 = vsyncpa %s3003, 1
    %3005 = vsyncpa [#allocation5], 1
    %s3006 = scalar_lea.sflag [#allocation5], 1
    %3007 = vsyncpa %s3006, 1

</llo_original>
